<compile_context>
chip_gen: v7x
topology: tpu7x:2x2x1
jax: 0.10.0
libtpu: 0.0.40
codegen_flags: <defaults>
</compile_context>

<pallas_src>
import functools

import jax
import jax.numpy as jnp
from jax.experimental import pallas as pl
from jax.experimental.pallas import tpu as pltpu

BN_EPS = 1e-5
LANE = 128
SUBLANE = 8


def _round_up(x, m):
    return (x + m - 1) // m * m


# ------------------------------ Pallas kernels ------------------------------ #
def _accumulate_taps(x_ref, w_ref, acc_ref, taps, seg_len):
    """Shift-and-matmul implicit GEMM: acc[m, :] = sum_t x[phase_t, off_t + m, :] @ w[t]."""
    for t, (phase, off) in enumerate(taps):           # statically unrolled taps
        lhs = x_ref[0, phase, pl.ds(off, seg_len), :]  # (L_pad, C), static contiguous slice
        contrib = jnp.dot(lhs, w_ref[t], preferred_element_type=jnp.float32)
        if t == 0:
            acc_ref[...] = contrib
        else:
            acc_ref[...] += contrib
    return acc_ref[...]


def _conv_stats_kernel(x_ref, w_ref, b_ref, mask_ref, out_ref, sum_ref, sq_ref,
                       acc_ref, *, taps, seg_len):
    """One batch element: conv (+bias) output plus partial BN statistics (pre-bias)."""
    acc = _accumulate_taps(x_ref, w_ref, acc_ref, taps, seg_len)      # f32 (L_pad, O_pad)
    out_ref[0] = (acc + b_ref[...]).astype(out_ref.dtype)
    av = acc * mask_ref[...]                      # zero structurally-invalid (slack) rows
    sum_ref[...] = jnp.sum(av, axis=0, keepdims=True)[None]           # (1, 1, O_pad)
    sq_ref[...] = jnp.sum(av * acc, axis=0, keepdims=True)[None]      # mask * acc^2


def _conv_kernel(x_ref, w_ref, b_ref, out_ref, acc_ref, *, taps, seg_len):
    """act=False path: conv + bias only, no statistics."""
    acc = _accumulate_taps(x_ref, w_ref, acc_ref, taps, seg_len)
    out_ref[0] = (acc + b_ref[...]).astype(out_ref.dtype)


def _bn_relu_kernel(x_ref, scale_ref, shift_ref, o_ref):
    """Per-channel affine (folded BatchNorm) + ReLU over one batch element's slab."""
    y = x_ref[0].astype(jnp.float32) * scale_ref[...] + shift_ref[...]
    o_ref[0] = jnp.maximum(y, 0.0).astype(o_ref.dtype)


# ------------------------------- glue (JAX) --------------------------------- #
def _vmem_limit_bytes():
    """Generation-aware VMEM limit (128 MiB on v5e/v6e, 64 MiB per TC on v7x)."""
    try:
        cap = int(pltpu.get_tpu_info().vmem_capacity_bytes)
    except Exception:
        cap = 64 << 20                     # conservative fallback (v7x per-TC VMEM)
    return max(32 << 20, min(100 << 20, (cap * 3) // 4))


@functools.partial(
    jax.jit,
    static_argnames=("kernel_size", "stride", "padding", "transpose", "act",
                     "compute_dtype"))
def convolutional_block(x, params, *, kernel_size, stride, padding, transpose,
                        act=True, compute_dtype=jnp.bfloat16):
    """Forward pass of ConvolutionalBlock. x is NCHW f32, returns NCHW f32."""
    w, b, gamma, beta = params
    kh = kw = kernel_size

    # NCHW -> NHWC once (channel-minor); cast early so glue moves compute_dtype bytes.
    x_nhwc = jnp.transpose(x, (0, 2, 3, 1)).astype(compute_dtype)

    if transpose:
        # ConvTranspose2d == stride-1 Conv2d on the zero-dilated input with the spatially
        # flipped, in/out-swapped kernel and padding = k - 1 - padding.
        N, H, W, C = x_nhwc.shape
        xd = jnp.zeros((N, (H - 1) * stride + 1, (W - 1) * stride + 1, C), x_nhwc.dtype)
        x_nhwc = xd.at[:, ::stride, ::stride, :].set(x_nhwc)
        w_eq = jnp.flip(w, axis=(2, 3)).transpose(1, 0, 2, 3)      # (O, C, kh, kw)
        s, pad = 1, kernel_size - 1 - padding
    else:
        w_eq = w                                                   # (O, C, kh, kw)
        s, pad = stride, padding

    N, H, W, C = x_nhwc.shape
    O = w_eq.shape[0]
    OH = (H + 2 * pad - kh) // s + 1
    OW = (W + 2 * pad - kw) // s + 1

    # ---- phase-split by the stride (space-to-depth), flatten spatial per phase ---- #
    Hp, Wp = H + 2 * pad, W + 2 * pad
    Hq, Wq = pl.cdiv(Hp, s), pl.cdiv(Wp, s)
    xp = jnp.pad(x_nhwc, ((0, 0),
                          (pad, Hq * s - Hp + pad),
                          (pad, Wq * s - Wp + pad),
                          (0, 0)))
    if s > 1:
        xps = xp.reshape(N, Hq, s, Wq, s, C).transpose(0, 2, 4, 1, 3, 5)
        x_flat = xps.reshape(N, s * s, Hq * Wq, C)
    else:
        x_flat = xp.reshape(N, 1, Hp * Wp, C)
    P, Sq = x_flat.shape[1], x_flat.shape[2]

    # Per-tap (phase index, flat row offset); every tap reads the contiguous window
    # [off, off + L) of its phase, so the kernel needs only static slices.
    taps = tuple(((i % s) * s + (j % s), (i // s) * Wq + (j // s))
                 for i in range(kh) for j in range(kw))
    L = (OH - 1) * Wq + OW                       # rows covering all valid outputs
    L_pad = _round_up(L, SUBLANE)                # sublane-aligned slab rows
    x_flat = jnp.pad(x_flat, ((0, 0), (0, 0), (0, L_pad - L), (0, 0)))
    Sq_pad = Sq + (L_pad - L)

    KK = kh * kw
    O_pad = _round_up(O, LANE)                   # lane-dense output stores
    w_tap = w_eq.transpose(2, 3, 1, 0).reshape(KK, C, O)           # (tap, cin, cout)
    w_tap = jnp.pad(w_tap, ((0, 0), (0, 0), (0, O_pad - O))).astype(compute_dtype)
    b_row = jnp.pad(b, (0, O_pad - O)).reshape(1, O_pad).astype(jnp.float32)

    inter_dtype = compute_dtype if act else jnp.float32
    cparams = pltpu.CompilerParams(
        dimension_semantics=("parallel",),       # batch elements -> megacore / 2 TCs
        vmem_limit_bytes=_vmem_limit_bytes())

    x_spec = pl.BlockSpec((1, P, Sq_pad, C), lambda n: (n, 0, 0, 0))
    w_spec = pl.BlockSpec((KK, C, O_pad), lambda n: (0, 0, 0))     # resident across grid
    b_spec = pl.BlockSpec((1, O_pad), lambda n: (0, 0))
    slab_spec = pl.BlockSpec((1, L_pad, O_pad), lambda n: (n, 0, 0))
    scratch = [pltpu.VMEM((L_pad, O_pad), jnp.float32)]            # f32 accumulator

    if act:
        # Validity column: row m is output (oh=m//Wq, ow=m%Wq); only ow < OW and m < L are
        # real outputs (the rest is shift-and-matmul slack, excluded from the statistics).
        m_idx = jnp.arange(L_pad)
        mask = (((m_idx % Wq) < OW) & (m_idx < L)).astype(jnp.float32).reshape(L_pad, 1)

        kern = functools.partial(_conv_stats_kernel, taps=taps, seg_len=L_pad)
        conv_out, psum, psq = pl.pallas_call(
            kern,
            grid=(N,),
            in_specs=[x_spec, w_spec, b_spec,
                      pl.BlockSpec((L_pad, 1), lambda n: (0, 0))],
            out_specs=[slab_spec,
                       pl.BlockSpec((1, 1, O_pad), lambda n: (n, 0, 0)),
                       pl.BlockSpec((1, 1, O_pad), lambda n: (n, 0, 0))],
            out_shape=[jax.ShapeDtypeStruct((N, L_pad, O_pad), inter_dtype),
                       jax.ShapeDtypeStruct((N, 1, O_pad), jnp.float32),
                       jax.ShapeDtypeStruct((N, 1, O_pad), jnp.float32)],
            scratch_shapes=scratch,
            compiler_params=cparams,
        )(x_flat, w_tap, b_row, mask)

        # Fold batch statistics into a per-channel affine.  Stats were taken on the
        # PRE-BIAS accumulator (better conditioned); the bias only shifts the mean.
        m_valid = N * OH * OW
        total = jnp.sum(psum, axis=(0, 1))
        total_sq = jnp.sum(psq, axis=(0, 1))
        mean_acc = total / m_valid
        var = jnp.maximum(total_sq / m_valid - mean_acc * mean_acc, 0.0)
        mean = mean_acc + jnp.pad(b, (0, O_pad - O)).astype(jnp.float32)
        inv = jax.lax.rsqrt(var + BN_EPS)
        gamma_p = jnp.pad(gamma, (0, O_pad - O)).astype(jnp.float32)
        beta_p = jnp.pad(beta, (0, O_pad - O)).astype(jnp.float32)
        scale = (gamma_p * inv).reshape(1, O_pad)
        shift = (beta_p - mean * gamma_p * inv).reshape(1, O_pad)

        conv_out = pl.pallas_call(
            _bn_relu_kernel,
            grid=(N,),
            in_specs=[slab_spec,
                      pl.BlockSpec((1, O_pad), lambda n: (0, 0)),
                      pl.BlockSpec((1, O_pad), lambda n: (0, 0))],
            out_specs=slab_spec,
            out_shape=jax.ShapeDtypeStruct((N, L_pad, O_pad), jnp.float32),
            compiler_params=cparams,
        )(conv_out, scale, shift)
    else:
        kern = functools.partial(_conv_kernel, taps=taps, seg_len=L_pad)
        conv_out = pl.pallas_call(
            kern,
            grid=(N,),
            in_specs=[x_spec, w_spec, b_spec],
            out_specs=slab_spec,
            out_shape=jax.ShapeDtypeStruct((N, L_pad, O_pad), jnp.float32),
            scratch_shapes=scratch,
            compiler_params=cparams,
        )(x_flat, w_tap, b_row)

    # De-flatten: row m -> (oh = m // Wq, ow = m % Wq); keep ow < OW; -> NCHW f32.
    rows = conv_out[:, :L, :O].astype(jnp.float32)
    rows = jnp.pad(rows, ((0, 0), (0, OH * Wq - L), (0, 0)))
    y = rows.reshape(N, OH, Wq, O)[:, :, :OW, :]
    return jnp.transpose(y, (0, 3, 1, 2))


# ---------------------------- pure-JAX reference ----------------------------- #
def _reference(x, params, *, kernel_size, stride, padding, transpose, act=True):
    w, b, gamma, beta = params
    if transpose:
        w_eq = jnp.flip(w, axis=(2, 3)).transpose(1, 0, 2, 3)
        p = kernel_size - 1 - padding
        y = jax.lax.conv_general_dilated(
            x, w_eq, window_strides=(1, 1), padding=[(p, p), (p, p)],
            lhs_dilation=(stride, stride),
            dimension_numbers=("NCHW", "OIHW", "NCHW"),
            preferred_element_type=jnp.float32)
    else:
        y = jax.lax.conv_general_dilated(
            x, w, window_strides=(stride, stride),
            padding=[(padding, padding), (padding, padding)],
            dimension_numbers=("NCHW", "OIHW", "NCHW"),
            preferred_element_type=jnp.float32)
    y = y + b[None, :, None, None]
    if act:
        mean = y.mean(axis=(0, 2, 3), keepdims=True)
        var = ((y - mean) ** 2).mean(axis=(0, 2, 3), keepdims=True)
        y = (y - mean) * jax.lax.rsqrt(var + BN_EPS) \
            * gamma[None, :, None, None] + beta[None, :, None, None]
        y = jnp.maximum(y, 0.0)
    return y


# ----------------------------------- main ------------------------------------ #
if __name__ == "__main__":
    key = jax.random.PRNGKey(0)
    k_x, k_w1, k_b1, k_w2, k_b2 = jax.random.split(key, 5)

    N, C_in, H, W = 2, 4, 16, 16
    C_out, ksize = 8, 3
    x = jax.random.normal(k_x, (N, C_in, H, W), jnp.float32)

    # PyTorch Conv2d weight: (out, in, kh, kw); BatchNorm defaults gamma=1, beta=0.
    w1 = 0.1 * jax.random.normal(k_w1, (C_out, C_in, ksize, ksize), jnp.float32)
    b1 = 0.1 * jax.random.normal(k_b1, (C_out,), jnp.float32)
    gamma1 = jnp.ones((C_out,), jnp.float32)
    beta1 = jnp.zeros((C_out,), jnp.float32)
    params1 = (w1, b1, gamma1, beta1)

    def check(got, want, tol, what):
        assert got.shape == want.shape, (what, got.shape, want.shape)
        err = float(jnp.max(jnp.abs(got - want)))
        assert err <= tol, (what, err)

    # --- Conv2d(4->8, k=3, s=1, p=1) + BN + ReLU ---
    r1 = _reference(x, params1, kernel_size=ksize, stride=1, padding=1,
                    transpose=False, act=True)
    y = jax.block_until_ready(convolutional_block(
        x, params1, kernel_size=ksize, stride=1, padding=1, transpose=False,
        act=True, compute_dtype=jnp.float32))
    check(y, r1, 3e-4, "conv s1 f32")
    y = jax.block_until_ready(convolutional_block(
        x, params1, kernel_size=ksize, stride=1, padding=1, transpose=False, act=True))
    check(y, r1, 5e-2, "conv s1 bf16")                 # bf16 MXU + bf16 intermediate

    # --- Conv2d(4->8, k=3, s=2, p=1): exercises the stride phase-split path ---
    r2 = _reference(x, params1, kernel_size=ksize, stride=2, padding=1,
                    transpose=False, act=True)
    y = jax.block_until_ready(convolutional_block(
        x, params1, kernel_size=ksize, stride=2, padding=1, transpose=False,
        act=True, compute_dtype=jnp.float32))
    check(y, r2, 3e-4, "conv s2 f32")

    # --- ConvTranspose2d(4->8, k=3, s=2, p=1) + BN + ReLU ---
    # PyTorch ConvTranspose2d weight: (in, out, kh, kw).
    w2 = 0.1 * jax.random.normal(k_w2, (C_in, C_out, ksize, ksize), jnp.float32)
    b2 = 0.1 * jax.random.normal(k_b2, (C_out,), jnp.float32)
    params2 = (w2, b2, gamma1, beta1)
    r3 = _reference(x, params2, kernel_size=ksize, stride=2, padding=1,
                    transpose=True, act=True)
    OH_t = (H - 1) * 2 - 2 * 1 + ksize
    y = jax.block_until_ready(convolutional_block(
        x, params2, kernel_size=ksize, stride=2, padding=1, transpose=True,
        act=True, compute_dtype=jnp.float32))
    assert y.shape == (N, C_out, OH_t, OH_t), y.shape
    check(y, r3, 3e-4, "convT s2 f32")
    y = jax.block_until_ready(convolutional_block(
        x, params2, kernel_size=ksize, stride=2, padding=1, transpose=True, act=True))
    check(y, r3, 5e-2, "convT s2 bf16")

    # --- act=False path (conv + bias only, no BN/ReLU) ---
    r4 = _reference(x, params1, kernel_size=ksize, stride=1, padding=1,
                    transpose=False, act=False)
    y = jax.block_until_ready(convolutional_block(
        x, params1, kernel_size=ksize, stride=1, padding=1, transpose=False,
        act=False, compute_dtype=jnp.float32))
    check(y, r4, 3e-4, "conv act=False f32")

    print("KERNEL_OK")
</pallas_src>

<mosaic_0001>
module attributes {stable_mosaic.version = 11 : i64} {
  func.func @_conv_stats_kernel(%arg0: i32, %arg1: memref<1x1x326x4xf32, #tpu.memory_space<vmem>>, %arg2: memref<9x4x128xf32, #tpu.memory_space<vmem>>, %arg3: memref<1x128xf32, #tpu.memory_space<vmem>>, %arg4: memref<288x1xf32, #tpu.memory_space<vmem>>, %arg5: memref<1x288x128xf32, #tpu.memory_space<vmem>>, %arg6: memref<1x1x128xf32, #tpu.memory_space<vmem>>, %arg7: memref<1x1x128xf32, #tpu.memory_space<vmem>>, %arg8: memref<288x128xf32, #tpu.memory_space<vmem>>) attributes {dimension_semantics = [#tpu.dimension_semantics<parallel>], iteration_bounds = array<i64: 2>, scalar_prefetch = 0 : i64, scratch_operands = 1 : i64, tpu.core_type = #tpu.core_type<tc>, window_params = [{transform_indices = @transform_0, window_bounds = array<i64: 1, 1, 326, 4>}, {pipeline_mode = #tpu.pipeline_mode<synchronous>, transform_indices = @transform_1, window_bounds = array<i64: 9, 4, 128>}, {pipeline_mode = #tpu.pipeline_mode<synchronous>, transform_indices = @transform_2, window_bounds = array<i64: 1, 128>}, {pipeline_mode = #tpu.pipeline_mode<synchronous>, transform_indices = @transform_3, window_bounds = array<i64: 288, 1>}, {transform_indices = @transform_4, window_bounds = array<i64: 1, 288, 128>}, {transform_indices = @transform_5, window_bounds = array<i64: 1, 1, 128>}, {transform_indices = @transform_6, window_bounds = array<i64: 1, 1, 128>}]} {
    %c0 = arith.constant 0 : index
    %c0_0 = arith.constant 0 : index
    %c0_1 = arith.constant 0 : index
    %c0_2 = arith.constant 0 : index
    %0 = vector.load %arg1[%c0, %c0_0, %c0_1, %c0_2] : memref<1x1x326x4xf32, #tpu.memory_space<vmem>>, vector<1x1x288x4xf32>
    %1 = vector.shape_cast %0 : vector<1x1x288x4xf32> to vector<288x4xf32>
    %c0_3 = arith.constant 0 : index
    %c0_4 = arith.constant 0 : index
    %c0_5 = arith.constant 0 : index
    %2 = vector.load %arg2[%c0_3, %c0_4, %c0_5] : memref<9x4x128xf32, #tpu.memory_space<vmem>>, vector<1x4x128xf32>
    %3 = vector.shape_cast %2 : vector<1x4x128xf32> to vector<4x128xf32>
    %cst = arith.constant dense<0.000000e+00> : vector<288x128xf32>
    %4 = tpu.matmul %1, %3, %cst {dimension_numbers = #tpu.dot_dimension_numbers<[1], [0], [0], [1], [0, 0, 1, 1], [], []>} : vector<288x4xf32>, vector<4x128xf32>, vector<288x128xf32> -> vector<288x128xf32>
    %c0_6 = arith.constant 0 : index
    %c0_7 = arith.constant 0 : index
    %5 = vector.load %arg8[%c0_6, %c0_7] : memref<288x128xf32, #tpu.memory_space<vmem>>, vector<288x128xf32>
    tpu.vector_store %arg8[%c0_6, %c0_7], %4 {strides = array<i32>} : memref<288x128xf32, #tpu.memory_space<vmem>>, vector<288x128xf32>,
    %c0_8 = arith.constant 0 : index
    %c0_9 = arith.constant 0 : index
    %c1 = arith.constant 1 : index
    %c0_10 = arith.constant 0 : index
    %6 = vector.load %arg1[%c0_8, %c0_9, %c1, %c0_10] : memref<1x1x326x4xf32, #tpu.memory_space<vmem>>, vector<1x1x288x4xf32>
    %7 = vector.shape_cast %6 : vector<1x1x288x4xf32> to vector<288x4xf32>
    %c1_11 = arith.constant 1 : index
    %c0_12 = arith.constant 0 : index
    %c0_13 = arith.constant 0 : index
    %8 = vector.load %arg2[%c1_11, %c0_12, %c0_13] : memref<9x4x128xf32, #tpu.memory_space<vmem>>, vector<1x4x128xf32>
    %9 = vector.shape_cast %8 : vector<1x4x128xf32> to vector<4x128xf32>
    %cst_14 = arith.constant dense<0.000000e+00> : vector<288x128xf32>
    %10 = tpu.matmul %7, %9, %cst_14 {dimension_numbers = #tpu.dot_dimension_numbers<[1], [0], [0], [1], [0, 0, 1, 1], [], []>} : vector<288x4xf32>, vector<4x128xf32>, vector<288x128xf32> -> vector<288x128xf32>
    %c0_15 = arith.constant 0 : index
    %c0_16 = arith.constant 0 : index
    %11 = vector.load %arg8[%c0_15, %c0_16] : memref<288x128xf32, #tpu.memory_space<vmem>>, vector<288x128xf32>
    %12 = arith.addf %11, %10 : vector<288x128xf32>
    %c0_17 = arith.constant 0 : index
    %c0_18 = arith.constant 0 : index
    %13 = vector.load %arg8[%c0_17, %c0_18] : memref<288x128xf32, #tpu.memory_space<vmem>>, vector<288x128xf32>
    tpu.vector_store %arg8[%c0_17, %c0_18], %12 {strides = array<i32>} : memref<288x128xf32, #tpu.memory_space<vmem>>, vector<288x128xf32>,
    %c0_19 = arith.constant 0 : index
    %c0_20 = arith.constant 0 : index
    %c2 = arith.constant 2 : index
    %c0_21 = arith.constant 0 : index
    %14 = vector.load %arg1[%c0_19, %c0_20, %c2, %c0_21] : memref<1x1x326x4xf32, #tpu.memory_space<vmem>>, vector<1x1x288x4xf32>
    %15 = vector.shape_cast %14 : vector<1x1x288x4xf32> to vector<288x4xf32>
    %c2_22 = arith.constant 2 : index
    %c0_23 = arith.constant 0 : index
    %c0_24 = arith.constant 0 : index
    %16 = vector.load %arg2[%c2_22, %c0_23, %c0_24] : memref<9x4x128xf32, #tpu.memory_space<vmem>>, vector<1x4x128xf32>
    %17 = vector.shape_cast %16 : vector<1x4x128xf32> to vector<4x128xf32>
    %cst_25 = arith.constant dense<0.000000e+00> : vector<288x128xf32>
    %18 = tpu.matmul %15, %17, %cst_25 {dimension_numbers = #tpu.dot_dimension_numbers<[1], [0], [0], [1], [0, 0, 1, 1], [], []>} : vector<288x4xf32>, vector<4x128xf32>, vector<288x128xf32> -> vector<288x128xf32>
    %c0_26 = arith.constant 0 : index
    %c0_27 = arith.constant 0 : index
    %19 = vector.load %arg8[%c0_26, %c0_27] : memref<288x128xf32, #tpu.memory_space<vmem>>, vector<288x128xf32>
    %20 = arith.addf %19, %18 : vector<288x128xf32>
    %c0_28 = arith.constant 0 : index
    %c0_29 = arith.constant 0 : index
    %21 = vector.load %arg8[%c0_28, %c0_29] : memref<288x128xf32, #tpu.memory_space<vmem>>, vector<288x128xf32>
    tpu.vector_store %arg8[%c0_28, %c0_29], %20 {strides = array<i32>} : memref<288x128xf32, #tpu.memory_space<vmem>>, vector<288x128xf32>,
    %c0_30 = arith.constant 0 : index
    %c0_31 = arith.constant 0 : index
    %c18 = arith.constant 18 : index
    %c0_32 = arith.constant 0 : index
    %22 = vector.load %arg1[%c0_30, %c0_31, %c18, %c0_32] : memref<1x1x326x4xf32, #tpu.memory_space<vmem>>, vector<1x1x288x4xf32>
    %23 = vector.shape_cast %22 : vector<1x1x288x4xf32> to vector<288x4xf32>
    %c3 = arith.constant 3 : index
    %c0_33 = arith.constant 0 : index
    %c0_34 = arith.constant 0 : index
    %24 = vector.load %arg2[%c3, %c0_33, %c0_34] : memref<9x4x128xf32, #tpu.memory_space<vmem>>, vector<1x4x128xf32>
    %25 = vector.shape_cast %24 : vector<1x4x128xf32> to vector<4x128xf32>
    %cst_35 = arith.constant dense<0.000000e+00> : vector<288x128xf32>
    %26 = tpu.matmul %23, %25, %cst_35 {dimension_numbers = #tpu.dot_dimension_numbers<[1], [0], [0], [1], [0, 0, 1, 1], [], []>} : vector<288x4xf32>, vector<4x128xf32>, vector<288x128xf32> -> vector<288x128xf32>
    %c0_36 = arith.constant 0 : index
    %c0_37 = arith.constant 0 : index
    %27 = vector.load %arg8[%c0_36, %c0_37] : memref<288x128xf32, #tpu.memory_space<vmem>>, vector<288x128xf32>
    %28 = arith.addf %27, %26 : vector<288x128xf32>
    %c0_38 = arith.constant 0 : index
    %c0_39 = arith.constant 0 : index
    %29 = vector.load %arg8[%c0_38, %c0_39] : memref<288x128xf32, #tpu.memory_space<vmem>>, vector<288x128xf32>
    tpu.vector_store %arg8[%c0_38, %c0_39], %28 {strides = array<i32>} : memref<288x128xf32, #tpu.memory_space<vmem>>, vector<288x128xf32>,
    %c0_40 = arith.constant 0 : index
    %c0_41 = arith.constant 0 : index
    %c19 = arith.constant 19 : index
    %c0_42 = arith.constant 0 : index
    %30 = vector.load %arg1[%c0_40, %c0_41, %c19, %c0_42] : memref<1x1x326x4xf32, #tpu.memory_space<vmem>>, vector<1x1x288x4xf32>
    %31 = vector.shape_cast %30 : vector<1x1x288x4xf32> to vector<288x4xf32>
    %c4 = arith.constant 4 : index
    %c0_43 = arith.constant 0 : index
    %c0_44 = arith.constant 0 : index
    %32 = vector.load %arg2[%c4, %c0_43, %c0_44] : memref<9x4x128xf32, #tpu.memory_space<vmem>>, vector<1x4x128xf32>
    %33 = vector.shape_cast %32 : vector<1x4x128xf32> to vector<4x128xf32>
    %cst_45 = arith.constant dense<0.000000e+00> : vector<288x128xf32>
    %34 = tpu.matmul %31, %33, %cst_45 {dimension_numbers = #tpu.dot_dimension_numbers<[1], [0], [0], [1], [0, 0, 1, 1], [], []>} : vector<288x4xf32>, vector<4x128xf32>, vector<288x128xf32> -> vector<288x128xf32>
    %c0_46 = arith.constant 0 : index
    %c0_47 = arith.constant 0 : index
    %35 = vector.load %arg8[%c0_46, %c0_47] : memref<288x128xf32, #tpu.memory_space<vmem>>, vector<288x128xf32>
    %36 = arith.addf %35, %34 : vector<288x128xf32>
    %c0_48 = arith.constant 0 : index
    %c0_49 = arith.constant 0 : index
    %37 = vector.load %arg8[%c0_48, %c0_49] : memref<288x128xf32, #tpu.memory_space<vmem>>, vector<288x128xf32>
    tpu.vector_store %arg8[%c0_48, %c0_49], %36 {strides = array<i32>} : memref<288x128xf32, #tpu.memory_space<vmem>>, vector<288x128xf32>,
    %c0_50 = arith.constant 0 : index
    %c0_51 = arith.constant 0 : index
    %c20 = arith.constant 20 : index
    %c0_52 = arith.constant 0 : index
    %38 = vector.load %arg1[%c0_50, %c0_51, %c20, %c0_52] : memref<1x1x326x4xf32, #tpu.memory_space<vmem>>, vector<1x1x288x4xf32>
    %39 = vector.shape_cast %38 : vector<1x1x288x4xf32> to vector<288x4xf32>
    %c5 = arith.constant 5 : index
    %c0_53 = arith.constant 0 : index
    %c0_54 = arith.constant 0 : index
    %40 = vector.load %arg2[%c5, %c0_53, %c0_54] : memref<9x4x128xf32, #tpu.memory_space<vmem>>, vector<1x4x128xf32>
    %41 = vector.shape_cast %40 : vector<1x4x128xf32> to vector<4x128xf32>
    %cst_55 = arith.constant dense<0.000000e+00> : vector<288x128xf32>
    %42 = tpu.matmul %39, %41, %cst_55 {dimension_numbers = #tpu.dot_dimension_numbers<[1], [0], [0], [1], [0, 0, 1, 1], [], []>} : vector<288x4xf32>, vector<4x128xf32>, vector<288x128xf32> -> vector<288x128xf32>
    %c0_56 = arith.constant 0 : index
    %c0_57 = arith.constant 0 : index
    %43 = vector.load %arg8[%c0_56, %c0_57] : memref<288x128xf32, #tpu.memory_space<vmem>>, vector<288x128xf32>
    %44 = arith.addf %43, %42 : vector<288x128xf32>
    %c0_58 = arith.constant 0 : index
    %c0_59 = arith.constant 0 : index
    %45 = vector.load %arg8[%c0_58, %c0_59] : memref<288x128xf32, #tpu.memory_space<vmem>>, vector<288x128xf32>
    tpu.vector_store %arg8[%c0_58, %c0_59], %44 {strides = array<i32>} : memref<288x128xf32, #tpu.memory_space<vmem>>, vector<288x128xf32>,
    %c0_60 = arith.constant 0 : index
    %c0_61 = arith.constant 0 : index
    %c36 = arith.constant 36 : index
    %c0_62 = arith.constant 0 : index
    %46 = vector.load %arg1[%c0_60, %c0_61, %c36, %c0_62] : memref<1x1x326x4xf32, #tpu.memory_space<vmem>>, vector<1x1x288x4xf32>
    %47 = vector.shape_cast %46 : vector<1x1x288x4xf32> to vector<288x4xf32>
    %c6 = arith.constant 6 : index
    %c0_63 = arith.constant 0 : index
    %c0_64 = arith.constant 0 : index
    %48 = vector.load %arg2[%c6, %c0_63, %c0_64] : memref<9x4x128xf32, #tpu.memory_space<vmem>>, vector<1x4x128xf32>
    %49 = vector.shape_cast %48 : vector<1x4x128xf32> to vector<4x128xf32>
    %cst_65 = arith.constant dense<0.000000e+00> : vector<288x128xf32>
    %50 = tpu.matmul %47, %49, %cst_65 {dimension_numbers = #tpu.dot_dimension_numbers<[1], [0], [0], [1], [0, 0, 1, 1], [], []>} : vector<288x4xf32>, vector<4x128xf32>, vector<288x128xf32> -> vector<288x128xf32>
    %c0_66 = arith.constant 0 : index
    %c0_67 = arith.constant 0 : index
    %51 = vector.load %arg8[%c0_66, %c0_67] : memref<288x128xf32, #tpu.memory_space<vmem>>, vector<288x128xf32>
    %52 = arith.addf %51, %50 : vector<288x128xf32>
    %c0_68 = arith.constant 0 : index
    %c0_69 = arith.constant 0 : index
    %53 = vector.load %arg8[%c0_68, %c0_69] : memref<288x128xf32, #tpu.memory_space<vmem>>, vector<288x128xf32>
    tpu.vector_store %arg8[%c0_68, %c0_69], %52 {strides = array<i32>} : memref<288x128xf32, #tpu.memory_space<vmem>>, vector<288x128xf32>,
    %c0_70 = arith.constant 0 : index
    %c0_71 = arith.constant 0 : index
    %c37 = arith.constant 37 : index
    %c0_72 = arith.constant 0 : index
    %54 = vector.load %arg1[%c0_70, %c0_71, %c37, %c0_72] : memref<1x1x326x4xf32, #tpu.memory_space<vmem>>, vector<1x1x288x4xf32>
    %55 = vector.shape_cast %54 : vector<1x1x288x4xf32> to vector<288x4xf32>
    %c7 = arith.constant 7 : index
    %c0_73 = arith.constant 0 : index
    %c0_74 = arith.constant 0 : index
    %56 = vector.load %arg2[%c7, %c0_73, %c0_74] : memref<9x4x128xf32, #tpu.memory_space<vmem>>, vector<1x4x128xf32>
    %57 = vector.shape_cast %56 : vector<1x4x128xf32> to vector<4x128xf32>
    %cst_75 = arith.constant dense<0.000000e+00> : vector<288x128xf32>
    %58 = tpu.matmul %55, %57, %cst_75 {dimension_numbers = #tpu.dot_dimension_numbers<[1], [0], [0], [1], [0, 0, 1, 1], [], []>} : vector<288x4xf32>, vector<4x128xf32>, vector<288x128xf32> -> vector<288x128xf32>
    %c0_76 = arith.constant 0 : index
    %c0_77 = arith.constant 0 : index
    %59 = vector.load %arg8[%c0_76, %c0_77] : memref<288x128xf32, #tpu.memory_space<vmem>>, vector<288x128xf32>
    %60 = arith.addf %59, %58 : vector<288x128xf32>
    %c0_78 = arith.constant 0 : index
    %c0_79 = arith.constant 0 : index
    %61 = vector.load %arg8[%c0_78, %c0_79] : memref<288x128xf32, #tpu.memory_space<vmem>>, vector<288x128xf32>
    tpu.vector_store %arg8[%c0_78, %c0_79], %60 {strides = array<i32>} : memref<288x128xf32, #tpu.memory_space<vmem>>, vector<288x128xf32>,
    %c0_80 = arith.constant 0 : index
    %c0_81 = arith.constant 0 : index
    %c38 = arith.constant 38 : index
    %c0_82 = arith.constant 0 : index
    %62 = vector.load %arg1[%c0_80, %c0_81, %c38, %c0_82] : memref<1x1x326x4xf32, #tpu.memory_space<vmem>>, vector<1x1x288x4xf32>
    %63 = vector.shape_cast %62 : vector<1x1x288x4xf32> to vector<288x4xf32>
    %c8 = arith.constant 8 : index
    %c0_83 = arith.constant 0 : index
    %c0_84 = arith.constant 0 : index
    %64 = vector.load %arg2[%c8, %c0_83, %c0_84] : memref<9x4x128xf32, #tpu.memory_space<vmem>>, vector<1x4x128xf32>
    %65 = vector.shape_cast %64 : vector<1x4x128xf32> to vector<4x128xf32>
    %cst_85 = arith.constant dense<0.000000e+00> : vector<288x128xf32>
    %66 = tpu.matmul %63, %65, %cst_85 {dimension_numbers = #tpu.dot_dimension_numbers<[1], [0], [0], [1], [0, 0, 1, 1], [], []>} : vector<288x4xf32>, vector<4x128xf32>, vector<288x128xf32> -> vector<288x128xf32>
    %c0_86 = arith.constant 0 : index
    %c0_87 = arith.constant 0 : index
    %67 = vector.load %arg8[%c0_86, %c0_87] : memref<288x128xf32, #tpu.memory_space<vmem>>, vector<288x128xf32>
    %68 = arith.addf %67, %66 : vector<288x128xf32>
    %c0_88 = arith.constant 0 : index
    %c0_89 = arith.constant 0 : index
    %69 = vector.load %arg8[%c0_88, %c0_89] : memref<288x128xf32, #tpu.memory_space<vmem>>, vector<288x128xf32>
    tpu.vector_store %arg8[%c0_88, %c0_89], %68 {strides = array<i32>} : memref<288x128xf32, #tpu.memory_space<vmem>>, vector<288x128xf32>,
    %c0_90 = arith.constant 0 : index
    %c0_91 = arith.constant 0 : index
    %70 = vector.load %arg8[%c0_90, %c0_91] : memref<288x128xf32, #tpu.memory_space<vmem>>, vector<288x128xf32>
    %c0_92 = arith.constant 0 : index
    %c0_93 = arith.constant 0 : index
    %71 = vector.load %arg3[%c0_92, %c0_93] : memref<1x128xf32, #tpu.memory_space<vmem>>, vector<1x128xf32>
    %72 = vector.broadcast %71 : vector<1x128xf32> to vector<288x128xf32>
    %73 = arith.addf %70, %72 : vector<288x128xf32>
    %c0_94 = arith.constant 0 : index
    %c0_95 = arith.constant 0 : index
    %c0_96 = arith.constant 0 : index
    %74 = vector.load %arg5[%c0_94, %c0_95, %c0_96] : memref<1x288x128xf32, #tpu.memory_space<vmem>>, vector<1x288x128xf32>
    %75 = vector.shape_cast %74 : vector<1x288x128xf32> to vector<288x128xf32>
    %76 = vector.shape_cast %73 : vector<288x128xf32> to vector<1x288x128xf32>
    tpu.vector_store %arg5[%c0_94, %c0_95, %c0_96], %76 {strides = array<i32>} : memref<1x288x128xf32, #tpu.memory_space<vmem>>, vector<1x288x128xf32>,
    %c0_97 = arith.constant 0 : index
    %c0_98 = arith.constant 0 : index
    %77 = vector.load %arg4[%c0_97, %c0_98] : memref<288x1xf32, #tpu.memory_space<vmem>>, vector<288x1xf32>
    %78 = vector.broadcast %77 : vector<288x1xf32> to vector<288x128xf32>
    %79 = arith.mulf %70, %78 : vector<288x128xf32>
    %cst_99 = arith.constant dense<0.000000e+00> : vector<128xf32>
    %80 = vector.multi_reduction <add>, %79, %cst_99 [0] : vector<288x128xf32> to vector<128xf32>
    %81 = vector.shape_cast %80 : vector<128xf32> to vector<1x128xf32>
    %82 = vector.shape_cast %81 : vector<1x128xf32> to vector<1x1x128xf32>
    %c0_100 = arith.constant 0 : index
    %c0_101 = arith.constant 0 : index
    %c0_102 = arith.constant 0 : index
    %83 = vector.load %arg6[%c0_100, %c0_101, %c0_102] : memref<1x1x128xf32, #tpu.memory_space<vmem>>, vector<1x1x128xf32>
    tpu.vector_store %arg6[%c0_100, %c0_101, %c0_102], %82 {strides = array<i32>} : memref<1x1x128xf32, #tpu.memory_space<vmem>>, vector<1x1x128xf32>,
    %84 = arith.mulf %79, %70 : vector<288x128xf32>
    %cst_103 = arith.constant dense<0.000000e+00> : vector<128xf32>
    %85 = vector.multi_reduction <add>, %84, %cst_103 [0] : vector<288x128xf32> to vector<128xf32>
    %86 = vector.shape_cast %85 : vector<128xf32> to vector<1x128xf32>
    %87 = vector.shape_cast %86 : vector<1x128xf32> to vector<1x1x128xf32>
    %c0_104 = arith.constant 0 : index
    %c0_105 = arith.constant 0 : index
    %c0_106 = arith.constant 0 : index
    %88 = vector.load %arg7[%c0_104, %c0_105, %c0_106] : memref<1x1x128xf32, #tpu.memory_space<vmem>>, vector<1x1x128xf32>
    tpu.vector_store %arg7[%c0_104, %c0_105, %c0_106], %87 {strides = array<i32>} : memref<1x1x128xf32, #tpu.memory_space<vmem>>, vector<1x1x128xf32>,
    return
  }
  func.func @transform_0(%arg0: i32) -> (i32, i32, i32, i32) {
    %c0_i32 = arith.constant 0 : i32
    %c0_i32_0 = arith.constant 0 : i32
    %c0_i32_1 = arith.constant 0 : i32
    %c0_i32_2 = arith.constant 0 : i32
    return %arg0, %c0_i32, %c0_i32_0, %c0_i32_1 : i32, i32, i32, i32
  }
  func.func @transform_1(%arg0: i32) -> (i32, i32, i32) {
    %c0_i32 = arith.constant 0 : i32
    %c0_i32_0 = arith.constant 0 : i32
    %c0_i32_1 = arith.constant 0 : i32
    %c0_i32_2 = arith.constant 0 : i32
    return %c0_i32, %c0_i32_0, %c0_i32_1 : i32, i32, i32
  }
  func.func @transform_2(%arg0: i32) -> (i32, i32) {
    %c0_i32 = arith.constant 0 : i32
    %c0_i32_0 = arith.constant 0 : i32
    %c0_i32_1 = arith.constant 0 : i32
    return %c0_i32, %c0_i32_0 : i32, i32
  }
  func.func @transform_3(%arg0: i32) -> (i32, i32) {
    %c0_i32 = arith.constant 0 : i32
    %c0_i32_0 = arith.constant 0 : i32
    %c0_i32_1 = arith.constant 0 : i32
    return %c0_i32, %c0_i32_0 : i32, i32
  }
  func.func @transform_4(%arg0: i32) -> (i32, i32, i32) {
    %c0_i32 = arith.constant 0 : i32
    %c0_i32_0 = arith.constant 0 : i32
    %c0_i32_1 = arith.constant 0 : i32
    return %arg0, %c0_i32, %c0_i32_0 : i32, i32, i32
  }
  func.func @transform_5(%arg0: i32) -> (i32, i32, i32) {
    %c0_i32 = arith.constant 0 : i32
    %c0_i32_0 = arith.constant 0 : i32
    %c0_i32_1 = arith.constant 0 : i32
    return %arg0, %c0_i32, %c0_i32_0 : i32, i32, i32
  }
  func.func @transform_6(%arg0: i32) -> (i32, i32, i32) {
    %c0_i32 = arith.constant 0 : i32
    %c0_i32_0 = arith.constant 0 : i32
    %c0_i32_1 = arith.constant 0 : i32
    return %arg0, %c0_i32, %c0_i32_0 : i32, i32, i32
  }
}

module attributes {stable_mosaic.version = 11 : i64} {
  func.func @_bn_relu_kernel(%arg0: i32, %arg1: memref<1x288x128xf32, #tpu.memory_space<vmem>>, %arg2: memref<1x128xf32, #tpu.memory_space<vmem>>, %arg3: memref<1x128xf32, #tpu.memory_space<vmem>>, %arg4: memref<1x288x128xf32, #tpu.memory_space<vmem>>) attributes {dimension_semantics = [#tpu.dimension_semantics<parallel>], iteration_bounds = array<i64: 2>, scalar_prefetch = 0 : i64, scratch_operands = 0 : i64, tpu.core_type = #tpu.core_type<tc>, window_params = [{transform_indices = @transform_0, window_bounds = array<i64: 1, 288, 128>}, {pipeline_mode = #tpu.pipeline_mode<synchronous>, transform_indices = @transform_1, window_bounds = array<i64: 1, 128>}, {pipeline_mode = #tpu.pipeline_mode<synchronous>, transform_indices = @transform_2, window_bounds = array<i64: 1, 128>}, {transform_indices = @transform_3, window_bounds = array<i64: 1, 288, 128>}]} {
    %c0 = arith.constant 0 : index
    %c0_0 = arith.constant 0 : index
    %c0_1 = arith.constant 0 : index
    %0 = vector.load %arg1[%c0, %c0_0, %c0_1] : memref<1x288x128xf32, #tpu.memory_space<vmem>>, vector<1x288x128xf32>
    %1 = vector.shape_cast %0 : vector<1x288x128xf32> to vector<288x128xf32>
    %c0_2 = arith.constant 0 : index
    %c0_3 = arith.constant 0 : index
    %2 = vector.load %arg2[%c0_2, %c0_3] : memref<1x128xf32, #tpu.memory_space<vmem>>, vector<1x128xf32>
    %3 = vector.broadcast %2 : vector<1x128xf32> to vector<288x128xf32>
    %4 = arith.mulf %1, %3 : vector<288x128xf32>
    %c0_4 = arith.constant 0 : index
    %c0_5 = arith.constant 0 : index
    %5 = vector.load %arg3[%c0_4, %c0_5] : memref<1x128xf32, #tpu.memory_space<vmem>>, vector<1x128xf32>
    %6 = vector.broadcast %5 : vector<1x128xf32> to vector<288x128xf32>
    %7 = arith.addf %4, %6 : vector<288x128xf32>
    %cst = arith.constant 0.000000e+00 : f32
    %8 = vector.broadcast %cst : f32 to vector<288x128xf32>
    %9 = arith.maximumf %7, %8 : vector<288x128xf32>
    %c0_6 = arith.constant 0 : index
    %c0_7 = arith.constant 0 : index
    %c0_8 = arith.constant 0 : index
    %10 = vector.load %arg4[%c0_6, %c0_7, %c0_8] : memref<1x288x128xf32, #tpu.memory_space<vmem>>, vector<1x288x128xf32>
    %11 = vector.shape_cast %10 : vector<1x288x128xf32> to vector<288x128xf32>
    %12 = vector.shape_cast %9 : vector<288x128xf32> to vector<1x288x128xf32>
    tpu.vector_store %arg4[%c0_6, %c0_7, %c0_8], %12 {strides = array<i32>} : memref<1x288x128xf32, #tpu.memory_space<vmem>>, vector<1x288x128xf32>,
    return
  }
  func.func @transform_0(%arg0: i32) -> (i32, i32, i32) {
    %c0_i32 = arith.constant 0 : i32
    %c0_i32_0 = arith.constant 0 : i32
    %c0_i32_1 = arith.constant 0 : i32
    return %arg0, %c0_i32, %c0_i32_0 : i32, i32, i32
  }
  func.func @transform_1(%arg0: i32) -> (i32, i32) {
    %c0_i32 = arith.constant 0 : i32
    %c0_i32_0 = arith.constant 0 : i32
    %c0_i32_1 = arith.constant 0 : i32
    return %c0_i32, %c0_i32_0 : i32, i32
  }
  func.func @transform_2(%arg0: i32) -> (i32, i32) {
    %c0_i32 = arith.constant 0 : i32
    %c0_i32_0 = arith.constant 0 : i32
    %c0_i32_1 = arith.constant 0 : i32
    return %c0_i32, %c0_i32_0 : i32, i32
  }
  func.func @transform_3(%arg0: i32) -> (i32, i32, i32) {
    %c0_i32 = arith.constant 0 : i32
    %c0_i32_0 = arith.constant 0 : i32
    %c0_i32_1 = arith.constant 0 : i32
    return %arg0, %c0_i32, %c0_i32_0 : i32, i32, i32
  }
}

</mosaic_0001>

<llo_original>
// kernel: convolutional_block.3
$region0: #{convolutional_block.3}
  #allocation0 [shape = 'u32[]', space=smem, size = 0x4, offset = 0x4, fixed_abs, tag = 'smem constant byte address 0x4 - core index']
  #allocation1 [shape = 'u32[144,128]{1,0:T(1,128)}', space=vmem, size = 0x12000, scoped, tag = 'internal scratch']
  %s0 = inlined_call_operand.vmem [shape: f32[2,288,128], index: 0, kind: input, shape index: {}]
  %s1 = inlined_call_operand.vmem [shape: f32[1,128], index: 1, kind: input, shape index: {}]
  %s2 = inlined_call_operand.vmem [shape: f32[1,128], index: 2, kind: input, shape index: {}]
  %s3 = inlined_call_operand.vmem [shape: f32[2,288,128], index: 3, kind: output, shape index: {}]
  %s4 = sld [smem:[#allocation0]]
  $region45: #{convolutional_block.3} parent=0
    _
  %s6 = ssub.s32 1, %s4
  %s7 = scalar_select 0, %s6, %s4
  loop: start=0, step=1, limit=4
  $region2: #{convolutional_block.3} parent=0 // loop_pre_header
    _
  $region3: #{convolutional_block.3} parent=0 // loop_header
    %s9 = sphi 0, %s13
    %p10 = scmp.ge.s32.totalorder %s9, 4
    %s19 = sphi 0, %s21
    %s22 = sphi 0, %s19
    %s23 = sphi 0, %s22
    %s39 = sphi 0, %s23
    %s43 = sphi 0, %s43
    %s45 = sphi 0, %s43
    %s46 = sphi 0, %s45
    %s60 = sphi 0, %s46
    %s64 = sphi 0, %s64
    %s66 = sphi 0, %s64
    %s67 = sphi 0, %s66
    %s81 = sphi 0, %s67
    %s87 = sphi 0, %s89
    %s90 = sphi 0, %s87
    %s91 = sphi 0, %s90
    %s107 = sphi 0, %s91
  $region4: #{convolutional_block.3} parent=0 // loop_header_branch
    %12 = sbr.rel (%p10) target = $region8
  $region5: #{convolutional_block.3} parent=0 // loop_body
    %s14 = ssub.s32 %s9, 1
    %s15 = ssub.s32 %s9, 2
    %s16 = sadd.s32 %s9, 1
    %s17 = ssub.s32 %s9, %s16
    %p18 = scmp.eq.s32.totalorder %s17, 0
    %s20 = sadd.s32 %s19, 1
    %s21 = scalar_select %p18, %s19, %s20
    %p24 = pneg %p18
    %p25 = scmp.eq.s32.totalorder %s9, 1
    %p26 = por %p24, %p25
    %p27 = scmp.ne.s32.totalorder %s19, %s22
    %p28 = scmp.eq.s32.totalorder %s9, 0
    %p29 = por %p27, %p28
    %p30 = scmp.ne.s32.totalorder %s19, %s22
    %p31 = scmp.eq.s32.totalorder %s14, 1
    %p32 = por %p30, %p31
    %p33 = scmp.ne.s32.totalorder %s22, %s23
    %p34 = scmp.eq.s32.totalorder %s14, 0
    %p35 = por %p33, %p34
    %p36 = scmp.ne.s32.totalorder %s22, %s23
    %p37 = scmp.eq.s32.totalorder %s15, 1
    %p38 = por %p36, %p37
    %p40 = scmp.ne.s32.totalorder %s23, %s39
    %p41 = scmp.eq.s32.totalorder %s15, 0
    %p42 = por %p40, %p41
    %s44 = sadd.s32 %s43, 1
    %p47 = scmp.eq.s32.totalorder %s9, 1
    %p48 = scmp.ne.s32.totalorder %s43, %s45
    %p49 = scmp.eq.s32.totalorder %s9, 0
    %p50 = por %p48, %p49
    %p51 = scmp.ne.s32.totalorder %s43, %s45
    %p52 = scmp.eq.s32.totalorder %s14, 1
    %p53 = por %p51, %p52
    %p54 = scmp.ne.s32.totalorder %s45, %s46
    %p55 = scmp.eq.s32.totalorder %s14, 0
    %p56 = por %p54, %p55
    %p57 = scmp.ne.s32.totalorder %s45, %s46
    %p58 = scmp.eq.s32.totalorder %s15, 1
    %p59 = por %p57, %p58
    %p61 = scmp.ne.s32.totalorder %s46, %s60
    %p62 = scmp.eq.s32.totalorder %s15, 0
    %p63 = por %p61, %p62
    %s65 = sadd.s32 %s64, 1
    %p68 = scmp.eq.s32.totalorder %s9, 1
    %p69 = scmp.ne.s32.totalorder %s64, %s66
    %p70 = scmp.eq.s32.totalorder %s9, 0
    %p71 = por %p69, %p70
    %p72 = scmp.ne.s32.totalorder %s64, %s66
    %p73 = scmp.eq.s32.totalorder %s14, 1
    %p74 = por %p72, %p73
    %p75 = scmp.ne.s32.totalorder %s66, %s67
    %p76 = scmp.eq.s32.totalorder %s14, 0
    %p77 = por %p75, %p76
    %p78 = scmp.ne.s32.totalorder %s66, %s67
    %p79 = scmp.eq.s32.totalorder %s15, 1
    %p80 = por %p78, %p79
    %p82 = scmp.ne.s32.totalorder %s67, %s81
    %p83 = scmp.eq.s32.totalorder %s15, 0
    %p84 = por %p82, %p83
    %s85 = ssub.s32 %s9, %s16
    %p86 = scmp.eq.s32.totalorder %s85, 0
    %s88 = sadd.s32 %s87, 1
    %s89 = scalar_select %p86, %s87, %s88
    %p92 = pneg %p86
    %p93 = scmp.eq.s32.totalorder %s9, 1
    %p94 = por %p92, %p93
    %p95 = scmp.ne.s32.totalorder %s87, %s90
    %p96 = scmp.eq.s32.totalorder %s9, 0
    %p97 = por %p95, %p96
    %p98 = scmp.ne.s32.totalorder %s87, %s90
    %p99 = scmp.eq.s32.totalorder %s14, 1
    %p100 = por %p98, %p99
    %p101 = scmp.ne.s32.totalorder %s90, %s91
    %p102 = scmp.eq.s32.totalorder %s14, 0
    %p103 = por %p101, %p102
    %p104 = scmp.ne.s32.totalorder %s90, %s91
    %p105 = scmp.eq.s32.totalorder %s15, 1
    %p106 = por %p104, %p105
    %p108 = scmp.ne.s32.totalorder %s91, %s107
    %p109 = scmp.eq.s32.totalorder %s15, 0
    %p110 = por %p108, %p109
    %p111 = scmp.le.s32.totalorder 1, %s9
    %p112 = scmp.lt.s32.totalorder %s9, 3
    %p113 = pnand %p111, %p112
    %p114 = pneg %p113
    // Predicated region
    $region9: #{convolutional_block.3} parent=5 // pred_check
      _
    $region10: #{convolutional_block.3} parent=5 // pred_check_branch
      %116 = sbr.rel (%p113) target = $region12
    $region11: #{convolutional_block.3} parent=5 // pred_region
      %s117 = ssub.s32 %s9, 1
      // Predicated region
      $region13: #{convolutional_block.3} parent=11 // pred_check
        %p118 = pneg %p56
      $region14: #{convolutional_block.3} parent=11 // pred_check_branch
        %120 = sbr.rel (%p118) target = $region16
      $region15: #{convolutional_block.3} parent=11 // pred_region
        _
      $region16: #{convolutional_block.3} parent=11 // pred_fallthru
        _
      // Predicated region
      $region17: #{convolutional_block.3} parent=11 // pred_check
        %p121 = pneg %p77
      $region18: #{convolutional_block.3} parent=11 // pred_check_branch
        %123 = sbr.rel (%p121) target = $region20
      $region19: #{convolutional_block.3} parent=11 // pred_region
        _
      $region20: #{convolutional_block.3} parent=11 // pred_fallthru
        _
    $region12: #{convolutional_block.3} parent=5 // pred_fallthru
      _
    %p124 = scmp.lt.s32.totalorder %s9, 2
    // Predicated region
    $region21: #{convolutional_block.3} parent=5 // pred_check
      %p125 = pneg %p124
    $region22: #{convolutional_block.3} parent=5 // pred_check_branch
      %127 = sbr.rel (%p125) target = $region24
    $region23: #{convolutional_block.3} parent=5 // pred_region
      // Predicated region
      $region25: #{convolutional_block.3} parent=23 // pred_check
        %p128 = pneg %p29
      $region26: #{convolutional_block.3} parent=23 // pred_check_branch
        %130 = sbr.rel (%p128) target = $region28
      $region27: #{convolutional_block.3} parent=23 // pred_region
        %p131 = scmp.lt.s32.totalorder %s9, 1
        %s132 = scalar_select %p131, %s9, 1
        %s133 = smul.addr %s132, 36
        %s134 = smul.addr %s133, 8
        %s135 = scalar_lea.vmem %s0, %s134
      $region28: #{convolutional_block.3} parent=23 // pred_fallthru
        _
    $region24: #{convolutional_block.3} parent=5 // pred_fallthru
      _
    %p136 = scmp.le.s32.totalorder 1, %s9
    %p137 = scmp.lt.s32.totalorder %s9, 3
    %p138 = pnand %p136, %p137
    %p139 = pneg %p138
    // Predicated region
    $region29: #{convolutional_block.3} parent=5 // pred_check
      _
    $region30: #{convolutional_block.3} parent=5 // pred_check_branch
      %141 = sbr.rel (%p138) target = $region32
    $region31: #{convolutional_block.3} parent=5 // pred_region
      %s142 = ssub.s32 %s9, 1
      %p143 = scmp.lt.s32.totalorder %s14, 1
      %s144 = scalar_select %p143, %s14, 1
      %s145 = smul.addr %s144, 36
      %s146 = smul.addr %s145, 8
      %s147 = scalar_lea.vmem %s0, %s146
      %p148 = pneg %p35
      %p149 = pneg %p32
      %p150 = pneg %p56
      %p151 = pneg %p53
      %p152 = pneg %p77
      %p153 = pneg %p74
      %p154 = pneg %p103
      %p155 = pneg %p100
      %p156 = scmp.lt.s32.totalorder %s14, 1
      %s157 = scalar_select %p156, %s14, 1
      %s158 = smul.addr %s157, 36
      %s159 = smul.addr %s158, 8
      %s160 = scalar_lea.vmem %s3, %s159
      %p161 = scmp.lt.s32.totalorder %s14, 1
      %s162 = scalar_select %p161, %s14, 1
      %s163 = smul.addr %s162, 36
      %s164 = smul.addr %s163, 8
      %s165 = scalar_lea.vmem %s0, %s164
      %p166 = scmp.lt.s32.totalorder %s14, 1
      %s167 = scalar_select %p166, %s14, 1
      %s168 = smul.addr %s167, 36
      %s169 = smul.addr %s168, 8
      %s170 = scalar_lea.vmem %s3, %s169
      %v171 = vld [vmem:[%s165] sm:$0xff]
      %v172 = vld [vmem:[%s165 + $0x8] sm:$0xff]
      %v173 = vld [vmem:[%s165 + $0x10] sm:$0xff]
      %v174 = vld [vmem:[%s165 + $0x18] sm:$0xff]
      %v175 = vld [vmem:[%s165 + $0x20] sm:$0xff]
      %v176 = vld [vmem:[%s165 + $0x28] sm:$0xff]
      %v177 = vld [vmem:[%s165 + $0x30] sm:$0xff]
      %v178 = vld [vmem:[%s165 + $0x38] sm:$0xff]
      %v179 = vld [vmem:[%s165 + $0x40] sm:$0xff]
      %v180 = vld [vmem:[%s165 + $0x48] sm:$0xff]
      %v181 = vld [vmem:[%s165 + $0x50] sm:$0xff]
      %v182 = vld [vmem:[%s165 + $0x58] sm:$0xff]
      %v183 = vld [vmem:[%s165 + $0x60] sm:$0xff]
      %v184 = vld [vmem:[%s165 + $0x68] sm:$0xff]
      %v185 = vld [vmem:[%s165 + $0x70] sm:$0xff]
      %v186 = vld [vmem:[%s165 + $0x78] sm:$0xff]
      %v187 = vld [vmem:[%s165 + $0x80] sm:$0xff]
      %v188 = vld [vmem:[%s165 + $0x88] sm:$0xff]
      %v189 = vld [vmem:[%s165 + $0x90] sm:$0xff]
      %v190 = vld [vmem:[%s165 + $0x98] sm:$0xff]
      %v191 = vld [vmem:[%s165 + $0xa0] sm:$0xff]
      %v192 = vld [vmem:[%s165 + $0xa8] sm:$0xff]
      %v193 = vld [vmem:[%s165 + $0xb0] sm:$0xff]
      %v194 = vld [vmem:[%s165 + $0xb8] sm:$0xff]
      %v195 = vld [vmem:[%s165 + $0xc0] sm:$0xff]
      %v196 = vld [vmem:[%s165 + $0xc8] sm:$0xff]
      %v197 = vld [vmem:[%s165 + $0xd0] sm:$0xff]
      %v198 = vld [vmem:[%s165 + $0xd8] sm:$0xff]
      %v199 = vld [vmem:[%s165 + $0xe0] sm:$0xff]
      %v200 = vld [vmem:[%s165 + $0xe8] sm:$0xff]
      %v201 = vld [vmem:[%s165 + $0xf0] sm:$0xff]
      %v202 = vld [vmem:[%s165 + $0xf8] sm:$0xff]
      %v203 = vld [vmem:[%s165 + $0x100] sm:$0xff]
      %v204 = vld [vmem:[%s165 + $0x108] sm:$0xff]
      %v205 = vld [vmem:[%s165 + $0x110] sm:$0xff]
      %v206 = vld [vmem:[%s165 + $0x118] sm:$0xff]
      %v207 = vld [vmem:[%s1] sm:$0x1]
      %v209 = vlaneseq
      %v210 = vshrl.u32 %v209, 7
      %v211 = vsub.s32 0, %v210
      %v212 = vrot.slane %v207, %v211
      %v214 = vmul.f32 %v171, %v212
      %v215 = vmul.f32 %v172, %v212
      %v216 = vmul.f32 %v173, %v212
      %v217 = vmul.f32 %v174, %v212
      %v218 = vmul.f32 %v175, %v212
      %v219 = vmul.f32 %v176, %v212
      %v220 = vmul.f32 %v177, %v212
      %v221 = vmul.f32 %v178, %v212
      %v222 = vmul.f32 %v179, %v212
      %v223 = vmul.f32 %v180, %v212
      %v224 = vmul.f32 %v181, %v212
      %v225 = vmul.f32 %v182, %v212
      %v226 = vmul.f32 %v183, %v212
      %v227 = vmul.f32 %v184, %v212
      %v228 = vmul.f32 %v185, %v212
      %v229 = vmul.f32 %v186, %v212
      %v230 = vmul.f32 %v187, %v212
      %v231 = vmul.f32 %v188, %v212
      %v232 = vmul.f32 %v189, %v212
      %v233 = vmul.f32 %v190, %v212
      %v234 = vmul.f32 %v191, %v212
      %v235 = vmul.f32 %v192, %v212
      %v236 = vmul.f32 %v193, %v212
      %v237 = vmul.f32 %v194, %v212
      %v238 = vmul.f32 %v195, %v212
      %v239 = vmul.f32 %v196, %v212
      %v240 = vmul.f32 %v197, %v212
      %v241 = vmul.f32 %v198, %v212
      %v242 = vmul.f32 %v199, %v212
      %v243 = vmul.f32 %v200, %v212
      %v244 = vmul.f32 %v201, %v212
      %v245 = vmul.f32 %v202, %v212
      %v246 = vmul.f32 %v203, %v212
      %v247 = vmul.f32 %v204, %v212
      %v248 = vmul.f32 %v205, %v212
      %v249 = vmul.f32 %v206, %v212
      %v250 = vld [vmem:[%s2] sm:$0x1]
      %v252 = vlaneseq
      %v253 = vshrl.u32 %v252, 7
      %v254 = vsub.s32 0, %v253
      %v255 = vrot.slane %v250, %v254
      %v257 = vadd.f32 %v214, %v255
      %v258 = vadd.f32 %v215, %v255
      %v259 = vadd.f32 %v216, %v255
      %v260 = vadd.f32 %v217, %v255
      %v261 = vadd.f32 %v218, %v255
      %v262 = vadd.f32 %v219, %v255
      %v263 = vadd.f32 %v220, %v255
      %v264 = vadd.f32 %v221, %v255
      %v265 = vadd.f32 %v222, %v255
      %v266 = vadd.f32 %v223, %v255
      %v267 = vadd.f32 %v224, %v255
      %v268 = vadd.f32 %v225, %v255
      %v269 = vadd.f32 %v226, %v255
      %v270 = vadd.f32 %v227, %v255
      %v271 = vadd.f32 %v228, %v255
      %v272 = vadd.f32 %v229, %v255
      %v273 = vadd.f32 %v230, %v255
      %v274 = vadd.f32 %v231, %v255
      %v275 = vadd.f32 %v232, %v255
      %v276 = vadd.f32 %v233, %v255
      %v277 = vadd.f32 %v234, %v255
      %v278 = vadd.f32 %v235, %v255
      %v279 = vadd.f32 %v236, %v255
      %v280 = vadd.f32 %v237, %v255
      %v281 = vadd.f32 %v238, %v255
      %v282 = vadd.f32 %v239, %v255
      %v283 = vadd.f32 %v240, %v255
      %v284 = vadd.f32 %v241, %v255
      %v285 = vadd.f32 %v242, %v255
      %v286 = vadd.f32 %v243, %v255
      %v287 = vadd.f32 %v244, %v255
      %v288 = vadd.f32 %v245, %v255
      %v289 = vadd.f32 %v246, %v255
      %v290 = vadd.f32 %v247, %v255
      %v291 = vadd.f32 %v248, %v255
      %v292 = vadd.f32 %v249, %v255
      %v293 = vmax.f32 %v257, 0.0
      %v294 = vmax.f32 %v258, 0.0
      %v295 = vmax.f32 %v259, 0.0
      %v296 = vmax.f32 %v260, 0.0
      %v297 = vmax.f32 %v261, 0.0
      %v298 = vmax.f32 %v262, 0.0
      %v299 = vmax.f32 %v263, 0.0
      %v300 = vmax.f32 %v264, 0.0
      %v301 = vmax.f32 %v265, 0.0
      %v302 = vmax.f32 %v266, 0.0
      %v303 = vmax.f32 %v267, 0.0
      %v304 = vmax.f32 %v268, 0.0
      %v305 = vmax.f32 %v269, 0.0
      %v306 = vmax.f32 %v270, 0.0
      %v307 = vmax.f32 %v271, 0.0
      %v308 = vmax.f32 %v272, 0.0
      %v309 = vmax.f32 %v273, 0.0
      %v310 = vmax.f32 %v274, 0.0
      %v311 = vmax.f32 %v275, 0.0
      %v312 = vmax.f32 %v276, 0.0
      %v313 = vmax.f32 %v277, 0.0
      %v314 = vmax.f32 %v278, 0.0
      %v315 = vmax.f32 %v279, 0.0
      %v316 = vmax.f32 %v280, 0.0
      %v317 = vmax.f32 %v281, 0.0
      %v318 = vmax.f32 %v282, 0.0
      %v319 = vmax.f32 %v283, 0.0
      %v320 = vmax.f32 %v284, 0.0
      %v321 = vmax.f32 %v285, 0.0
      %v322 = vmax.f32 %v286, 0.0
      %v323 = vmax.f32 %v287, 0.0
      %v324 = vmax.f32 %v288, 0.0
      %v325 = vmax.f32 %v289, 0.0
      %v326 = vmax.f32 %v290, 0.0
      %v327 = vmax.f32 %v291, 0.0
      %v328 = vmax.f32 %v292, 0.0
      %329 = vst [vmem:[%s170] sm:$0xff] %v293
      %330 = vst [vmem:[%s170 + $0x8] sm:$0xff] %v294
      %331 = vst [vmem:[%s170 + $0x10] sm:$0xff] %v295
      %332 = vst [vmem:[%s170 + $0x18] sm:$0xff] %v296
      %333 = vst [vmem:[%s170 + $0x20] sm:$0xff] %v297
      %334 = vst [vmem:[%s170 + $0x28] sm:$0xff] %v298
      %335 = vst [vmem:[%s170 + $0x30] sm:$0xff] %v299
      %336 = vst [vmem:[%s170 + $0x38] sm:$0xff] %v300
      %337 = vst [vmem:[%s170 + $0x40] sm:$0xff] %v301
      %338 = vst [vmem:[%s170 + $0x48] sm:$0xff] %v302
      %339 = vst [vmem:[%s170 + $0x50] sm:$0xff] %v303
      %340 = vst [vmem:[%s170 + $0x58] sm:$0xff] %v304
      %341 = vst [vmem:[%s170 + $0x60] sm:$0xff] %v305
      %342 = vst [vmem:[%s170 + $0x68] sm:$0xff] %v306
      %343 = vst [vmem:[%s170 + $0x70] sm:$0xff] %v307
      %344 = vst [vmem:[%s170 + $0x78] sm:$0xff] %v308
      %345 = vst [vmem:[%s170 + $0x80] sm:$0xff] %v309
      %346 = vst [vmem:[%s170 + $0x88] sm:$0xff] %v310
      %347 = vst [vmem:[%s170 + $0x90] sm:$0xff] %v311
      %348 = vst [vmem:[%s170 + $0x98] sm:$0xff] %v312
      %349 = vst [vmem:[%s170 + $0xa0] sm:$0xff] %v313
      %350 = vst [vmem:[%s170 + $0xa8] sm:$0xff] %v314
      %351 = vst [vmem:[%s170 + $0xb0] sm:$0xff] %v315
      %352 = vst [vmem:[%s170 + $0xb8] sm:$0xff] %v316
      %353 = vst [vmem:[%s170 + $0xc0] sm:$0xff] %v317
      %354 = vst [vmem:[%s170 + $0xc8] sm:$0xff] %v318
      %355 = vst [vmem:[%s170 + $0xd0] sm:$0xff] %v319
      %356 = vst [vmem:[%s170 + $0xd8] sm:$0xff] %v320
      %357 = vst [vmem:[%s170 + $0xe0] sm:$0xff] %v321
      %358 = vst [vmem:[%s170 + $0xe8] sm:$0xff] %v322
      %359 = vst [vmem:[%s170 + $0xf0] sm:$0xff] %v323
      %360 = vst [vmem:[%s170 + $0xf8] sm:$0xff] %v324
      %361 = vst [vmem:[%s170 + $0x100] sm:$0xff] %v325
      %362 = vst [vmem:[%s170 + $0x108] sm:$0xff] %v326
      %363 = vst [vmem:[%s170 + $0x110] sm:$0xff] %v327
      %364 = vst [vmem:[%s170 + $0x118] sm:$0xff] %v328
      %p365 = scmp.lt.s32.totalorder %s14, 1
      %s366 = scalar_select %p365, %s14, 1
      %s367 = smul.addr %s366, 36
      %s368 = smul.addr %s367, 8
      %s369 = scalar_lea.vmem %s3, %s368
      // Predicated region
      $region33: #{convolutional_block.3} parent=31 // pred_check
        %p370 = pneg %p100
      $region34: #{convolutional_block.3} parent=31 // pred_check_branch
        %372 = sbr.rel (%p370) target = $region36
      $region35: #{convolutional_block.3} parent=31 // pred_region
        _
      $region36: #{convolutional_block.3} parent=31 // pred_fallthru
        _
    $region32: #{convolutional_block.3} parent=5 // pred_fallthru
      _
    %p373 = scmp.le.s32.totalorder 2, %s9
    // Predicated region
    $region37: #{convolutional_block.3} parent=5 // pred_check
      %p374 = pneg %p373
    $region38: #{convolutional_block.3} parent=5 // pred_check_branch
      %376 = sbr.rel (%p374) target = $region40
    $region39: #{convolutional_block.3} parent=5 // pred_region
      %s377 = ssub.s32 %s9, 2
      // Predicated region
      $region41: #{convolutional_block.3} parent=39 // pred_check
        %p378 = pneg %p106
      $region42: #{convolutional_block.3} parent=39 // pred_check_branch
        %380 = sbr.rel (%p378) target = $region44
      $region43: #{convolutional_block.3} parent=39 // pred_region
        %p381 = scmp.lt.s32.totalorder %s15, 1
        %s382 = scalar_select %p381, %s15, 1
        %s383 = smul.addr %s382, 36
        %s384 = smul.addr %s383, 8
        %s385 = scalar_lea.vmem %s3, %s384
      $region44: #{convolutional_block.3} parent=39 // pred_fallthru
        _
    $region40: #{convolutional_block.3} parent=5 // pred_fallthru
      _
  $region6: #{convolutional_block.3} parent=0 // loop_footer
    %s13 = sadd.s32 1, %s9
  $region7: #{convolutional_block.3} parent=0 // loop_footer_branch
    %8 = sbr.rel target = $region3
  $region8: #{convolutional_block.3} parent=0 // loop_exit
    _

// kernel: convolutional_block.2
$region0: #{convolutional_block.2}
  #allocation0 [shape = 'u32[]', space=smem, size = 0x4, offset = 0x4, fixed_abs, tag = 'smem constant byte address 0x4 - core index']
  #allocation1 [shape = 'u32[144,128]{1,0:T(1,128)}', space=vmem, size = 0x12000, scoped, tag = 'internal scratch']
  #allocation2 [shape = 'f32[288,128]{1,0:T(8,128)}', space=vmem, size = 0x24000, scoped, tag = 'scratch operand']
  %s0 = inlined_call_operand.vmem [shape: f32[2,1,326,4], index: 0, kind: input, shape index: {}]
  %s1 = inlined_call_operand.vmem [shape: f32[9,4,128], index: 1, kind: input, shape index: {}]
  %s2 = inlined_call_operand.vmem [shape: f32[1,128], index: 2, kind: input, shape index: {}]
  %s3 = inlined_call_operand.vmem [shape: f32[288,1], index: 3, kind: input, shape index: {}]
  %s4 = inlined_call_operand.vmem [shape: f32[2,288,128], index: 4, kind: output, shape index: {0}]
  %s5 = inlined_call_operand.vmem [shape: f32[2,1,128], index: 5, kind: output, shape index: {1}]
  %s6 = inlined_call_operand.vmem [shape: f32[2,1,128], index: 6, kind: output, shape index: {2}]
  %7 = xla_tuple %s4, %s5, %s6
  %s8 = sld [smem:[#allocation0]]
  $region65: #{convolutional_block.2} parent=0
    _
  %s10 = ssub.s32 1, %s8
  %s11 = scalar_select 0, %s10, %s8
  loop: start=0, step=1, limit=4
  $region2: #{convolutional_block.2} parent=0 // loop_pre_header
    _
  $region3: #{convolutional_block.2} parent=0 // loop_header
    %s13 = sphi 0, %s17
    %p14 = scmp.ge.s32.totalorder %s13, 4
    %s23 = sphi 0, %s25
    %s26 = sphi 0, %s23
    %s27 = sphi 0, %s26
    %s43 = sphi 0, %s27
    %s47 = sphi 0, %s47
    %s49 = sphi 0, %s47
    %s50 = sphi 0, %s49
    %s64 = sphi 0, %s50
    %s68 = sphi 0, %s68
    %s70 = sphi 0, %s68
    %s71 = sphi 0, %s70
    %s85 = sphi 0, %s71
    %s89 = sphi 0, %s89
    %s91 = sphi 0, %s89
    %s92 = sphi 0, %s91
    %s106 = sphi 0, %s92
    %s112 = sphi 0, %s114
    %s115 = sphi 0, %s112
    %s116 = sphi 0, %s115
    %s132 = sphi 0, %s116
    %s138 = sphi 0, %s140
    %s141 = sphi 0, %s138
    %s142 = sphi 0, %s141
    %s158 = sphi 0, %s142
    %s164 = sphi 0, %s166
    %s167 = sphi 0, %s164
    %s168 = sphi 0, %s167
    %s184 = sphi 0, %s168
  $region4: #{convolutional_block.2} parent=0 // loop_header_branch
    %16 = sbr.rel (%p14) target = $region8
  $region5: #{convolutional_block.2} parent=0 // loop_body
    %s18 = ssub.s32 %s13, 1
    %s19 = ssub.s32 %s13, 2
    %s20 = sadd.s32 %s13, 1
    %s21 = ssub.s32 %s13, %s20
    %p22 = scmp.eq.s32.totalorder %s21, 0
    %s24 = sadd.s32 %s23, 1
    %s25 = scalar_select %p22, %s23, %s24
    %p28 = pneg %p22
    %p29 = scmp.eq.s32.totalorder %s13, 1
    %p30 = por %p28, %p29
    %p31 = scmp.ne.s32.totalorder %s23, %s26
    %p32 = scmp.eq.s32.totalorder %s13, 0
    %p33 = por %p31, %p32
    %p34 = scmp.ne.s32.totalorder %s23, %s26
    %p35 = scmp.eq.s32.totalorder %s18, 1
    %p36 = por %p34, %p35
    %p37 = scmp.ne.s32.totalorder %s26, %s27
    %p38 = scmp.eq.s32.totalorder %s18, 0
    %p39 = por %p37, %p38
    %p40 = scmp.ne.s32.totalorder %s26, %s27
    %p41 = scmp.eq.s32.totalorder %s19, 1
    %p42 = por %p40, %p41
    %p44 = scmp.ne.s32.totalorder %s27, %s43
    %p45 = scmp.eq.s32.totalorder %s19, 0
    %p46 = por %p44, %p45
    %s48 = sadd.s32 %s47, 1
    %p51 = scmp.eq.s32.totalorder %s13, 1
    %p52 = scmp.ne.s32.totalorder %s47, %s49
    %p53 = scmp.eq.s32.totalorder %s13, 0
    %p54 = por %p52, %p53
    %p55 = scmp.ne.s32.totalorder %s47, %s49
    %p56 = scmp.eq.s32.totalorder %s18, 1
    %p57 = por %p55, %p56
    %p58 = scmp.ne.s32.totalorder %s49, %s50
    %p59 = scmp.eq.s32.totalorder %s18, 0
    %p60 = por %p58, %p59
    %p61 = scmp.ne.s32.totalorder %s49, %s50
    %p62 = scmp.eq.s32.totalorder %s19, 1
    %p63 = por %p61, %p62
    %p65 = scmp.ne.s32.totalorder %s50, %s64
    %p66 = scmp.eq.s32.totalorder %s19, 0
    %p67 = por %p65, %p66
    %s69 = sadd.s32 %s68, 1
    %p72 = scmp.eq.s32.totalorder %s13, 1
    %p73 = scmp.ne.s32.totalorder %s68, %s70
    %p74 = scmp.eq.s32.totalorder %s13, 0
    %p75 = por %p73, %p74
    %p76 = scmp.ne.s32.totalorder %s68, %s70
    %p77 = scmp.eq.s32.totalorder %s18, 1
    %p78 = por %p76, %p77
    %p79 = scmp.ne.s32.totalorder %s70, %s71
    %p80 = scmp.eq.s32.totalorder %s18, 0
    %p81 = por %p79, %p80
    %p82 = scmp.ne.s32.totalorder %s70, %s71
    %p83 = scmp.eq.s32.totalorder %s19, 1
    %p84 = por %p82, %p83
    %p86 = scmp.ne.s32.totalorder %s71, %s85
    %p87 = scmp.eq.s32.totalorder %s19, 0
    %p88 = por %p86, %p87
    %s90 = sadd.s32 %s89, 1
    %p93 = scmp.eq.s32.totalorder %s13, 1
    %p94 = scmp.ne.s32.totalorder %s89, %s91
    %p95 = scmp.eq.s32.totalorder %s13, 0
    %p96 = por %p94, %p95
    %p97 = scmp.ne.s32.totalorder %s89, %s91
    %p98 = scmp.eq.s32.totalorder %s18, 1
    %p99 = por %p97, %p98
    %p100 = scmp.ne.s32.totalorder %s91, %s92
    %p101 = scmp.eq.s32.totalorder %s18, 0
    %p102 = por %p100, %p101
    %p103 = scmp.ne.s32.totalorder %s91, %s92
    %p104 = scmp.eq.s32.totalorder %s19, 1
    %p105 = por %p103, %p104
    %p107 = scmp.ne.s32.totalorder %s92, %s106
    %p108 = scmp.eq.s32.totalorder %s19, 0
    %p109 = por %p107, %p108
    %s110 = ssub.s32 %s13, %s20
    %p111 = scmp.eq.s32.totalorder %s110, 0
    %s113 = sadd.s32 %s112, 1
    %s114 = scalar_select %p111, %s112, %s113
    %p117 = pneg %p111
    %p118 = scmp.eq.s32.totalorder %s13, 1
    %p119 = por %p117, %p118
    %p120 = scmp.ne.s32.totalorder %s112, %s115
    %p121 = scmp.eq.s32.totalorder %s13, 0
    %p122 = por %p120, %p121
    %p123 = scmp.ne.s32.totalorder %s112, %s115
    %p124 = scmp.eq.s32.totalorder %s18, 1
    %p125 = por %p123, %p124
    %p126 = scmp.ne.s32.totalorder %s115, %s116
    %p127 = scmp.eq.s32.totalorder %s18, 0
    %p128 = por %p126, %p127
    %p129 = scmp.ne.s32.totalorder %s115, %s116
    %p130 = scmp.eq.s32.totalorder %s19, 1
    %p131 = por %p129, %p130
    %p133 = scmp.ne.s32.totalorder %s116, %s132
    %p134 = scmp.eq.s32.totalorder %s19, 0
    %p135 = por %p133, %p134
    %s136 = ssub.s32 %s13, %s20
    %p137 = scmp.eq.s32.totalorder %s136, 0
    %s139 = sadd.s32 %s138, 1
    %s140 = scalar_select %p137, %s138, %s139
    %p143 = pneg %p137
    %p144 = scmp.eq.s32.totalorder %s13, 1
    %p145 = por %p143, %p144
    %p146 = scmp.ne.s32.totalorder %s138, %s141
    %p147 = scmp.eq.s32.totalorder %s13, 0
    %p148 = por %p146, %p147
    %p149 = scmp.ne.s32.totalorder %s138, %s141
    %p150 = scmp.eq.s32.totalorder %s18, 1
    %p151 = por %p149, %p150
    %p152 = scmp.ne.s32.totalorder %s141, %s142
    %p153 = scmp.eq.s32.totalorder %s18, 0
    %p154 = por %p152, %p153
    %p155 = scmp.ne.s32.totalorder %s141, %s142
    %p156 = scmp.eq.s32.totalorder %s19, 1
    %p157 = por %p155, %p156
    %p159 = scmp.ne.s32.totalorder %s142, %s158
    %p160 = scmp.eq.s32.totalorder %s19, 0
    %p161 = por %p159, %p160
    %s162 = ssub.s32 %s13, %s20
    %p163 = scmp.eq.s32.totalorder %s162, 0
    %s165 = sadd.s32 %s164, 1
    %s166 = scalar_select %p163, %s164, %s165
    %p169 = pneg %p163
    %p170 = scmp.eq.s32.totalorder %s13, 1
    %p171 = por %p169, %p170
    %p172 = scmp.ne.s32.totalorder %s164, %s167
    %p173 = scmp.eq.s32.totalorder %s13, 0
    %p174 = por %p172, %p173
    %p175 = scmp.ne.s32.totalorder %s164, %s167
    %p176 = scmp.eq.s32.totalorder %s18, 1
    %p177 = por %p175, %p176
    %p178 = scmp.ne.s32.totalorder %s167, %s168
    %p179 = scmp.eq.s32.totalorder %s18, 0
    %p180 = por %p178, %p179
    %p181 = scmp.ne.s32.totalorder %s167, %s168
    %p182 = scmp.eq.s32.totalorder %s19, 1
    %p183 = por %p181, %p182
    %p185 = scmp.ne.s32.totalorder %s168, %s184
    %p186 = scmp.eq.s32.totalorder %s19, 0
    %p187 = por %p185, %p186
    %p188 = scmp.le.s32.totalorder 1, %s13
    %p189 = scmp.lt.s32.totalorder %s13, 3
    %p190 = pnand %p188, %p189
    %p191 = pneg %p190
    // Predicated region
    $region9: #{convolutional_block.2} parent=5 // pred_check
      _
    $region10: #{convolutional_block.2} parent=5 // pred_check_branch
      %193 = sbr.rel (%p190) target = $region12
    $region11: #{convolutional_block.2} parent=5 // pred_region
      %s194 = ssub.s32 %s13, 1
      // Predicated region
      $region13: #{convolutional_block.2} parent=11 // pred_check
        %p195 = pneg %p60
      $region14: #{convolutional_block.2} parent=11 // pred_check_branch
        %197 = sbr.rel (%p195) target = $region16
      $region15: #{convolutional_block.2} parent=11 // pred_region
        _
      $region16: #{convolutional_block.2} parent=11 // pred_fallthru
        _
      // Predicated region
      $region17: #{convolutional_block.2} parent=11 // pred_check
        %p198 = pneg %p81
      $region18: #{convolutional_block.2} parent=11 // pred_check_branch
        %200 = sbr.rel (%p198) target = $region20
      $region19: #{convolutional_block.2} parent=11 // pred_region
        _
      $region20: #{convolutional_block.2} parent=11 // pred_fallthru
        _
      // Predicated region
      $region21: #{convolutional_block.2} parent=11 // pred_check
        %p201 = pneg %p102
      $region22: #{convolutional_block.2} parent=11 // pred_check_branch
        %203 = sbr.rel (%p201) target = $region24
      $region23: #{convolutional_block.2} parent=11 // pred_region
        _
      $region24: #{convolutional_block.2} parent=11 // pred_fallthru
        _
    $region12: #{convolutional_block.2} parent=5 // pred_fallthru
      _
    %p204 = scmp.lt.s32.totalorder %s13, 2
    // Predicated region
    $region25: #{convolutional_block.2} parent=5 // pred_check
      %p205 = pneg %p204
    $region26: #{convolutional_block.2} parent=5 // pred_check_branch
      %207 = sbr.rel (%p205) target = $region28
    $region27: #{convolutional_block.2} parent=5 // pred_region
      // Predicated region
      $region29: #{convolutional_block.2} parent=27 // pred_check
        %p208 = pneg %p33
      $region30: #{convolutional_block.2} parent=27 // pred_check_branch
        %210 = sbr.rel (%p208) target = $region32
      $region31: #{convolutional_block.2} parent=27 // pred_region
        %p211 = scmp.lt.s32.totalorder %s13, 1
        %s212 = scalar_select %p211, %s13, 1
        %s213 = smul.addr %s212, 41
        %s214 = smul.addr %s213, 8
        %s215 = scalar_lea.vmem %s0, %s214
      $region32: #{convolutional_block.2} parent=27 // pred_fallthru
        _
    $region28: #{convolutional_block.2} parent=5 // pred_fallthru
      _
    %p216 = scmp.le.s32.totalorder 1, %s13
    %p217 = scmp.lt.s32.totalorder %s13, 3
    %p218 = pnand %p216, %p217
    %p219 = pneg %p218
    // Predicated region
    $region33: #{convolutional_block.2} parent=5 // pred_check
      _
    $region34: #{convolutional_block.2} parent=5 // pred_check_branch
      %221 = sbr.rel (%p218) target = $region36
    $region35: #{convolutional_block.2} parent=5 // pred_region
      %s222 = ssub.s32 %s13, 1
      %p223 = scmp.lt.s32.totalorder %s18, 1
      %s224 = scalar_select %p223, %s18, 1
      %s225 = smul.addr %s224, 41
      %s226 = smul.addr %s225, 8
      %s227 = scalar_lea.vmem %s0, %s226
      %p228 = pneg %p39
      %p229 = pneg %p36
      %p230 = pneg %p60
      %p231 = pneg %p57
      %p232 = pneg %p81
      %p233 = pneg %p78
      %p234 = pneg %p102
      %p235 = pneg %p99
      %p236 = pneg %p128
      %p237 = pneg %p125
      %p238 = scmp.lt.s32.totalorder %s18, 1
      %s239 = scalar_select %p238, %s18, 1
      %s240 = smul.addr %s239, 36
      %s241 = smul.addr %s240, 8
      %s242 = scalar_lea.vmem %s4, %s241
      %p243 = pneg %p154
      %p244 = pneg %p151
      %p245 = scmp.lt.s32.totalorder %s18, 1
      %s246 = scalar_select %p245, %s18, 1
      %s247 = scalar_lea.vmem %s5, %s246
      %p248 = pneg %p180
      %p249 = pneg %p177
      %p250 = scmp.lt.s32.totalorder %s18, 1
      %s251 = scalar_select %p250, %s18, 1
      %s252 = scalar_lea.vmem %s6, %s251
      %p253 = scmp.lt.s32.totalorder %s18, 1
      %s254 = scalar_select %p253, %s18, 1
      %s255 = smul.addr %s254, 41
      %s256 = smul.addr %s255, 8
      %s257 = scalar_lea.vmem %s0, %s256
      %p258 = scmp.lt.s32.totalorder %s18, 1
      %s259 = scalar_select %p258, %s18, 1
      %s260 = smul.addr %s259, 36
      %s261 = smul.addr %s260, 8
      %s262 = scalar_lea.vmem %s4, %s261
      %p263 = scmp.lt.s32.totalorder %s18, 1
      %s264 = scalar_select %p263, %s18, 1
      %s265 = scalar_lea.vmem %s5, %s264
      %p266 = scmp.lt.s32.totalorder %s18, 1
      %s267 = scalar_select %p266, %s18, 1
      %s268 = scalar_lea.vmem %s6, %s267
      %v269 = vld [vmem:[%s257] sm:$0xff]
      %v270 = vld [vmem:[%s257 + $0x8] sm:$0xff]
      %v271 = vld [vmem:[%s257 + $0x10] sm:$0xff]
      %v272 = vld [vmem:[%s257 + $0x18] sm:$0xff]
      %v273 = vld [vmem:[%s257 + $0x20] sm:$0xff]
      %v274 = vld [vmem:[%s257 + $0x28] sm:$0xff]
      %v275 = vld [vmem:[%s257 + $0x30] sm:$0xff]
      %v276 = vld [vmem:[%s257 + $0x38] sm:$0xff]
      %v277 = vld [vmem:[%s257 + $0x40] sm:$0xff]
      %v278 = vld [vmem:[%s257 + $0x48] sm:$0xff]
      %v279 = vld [vmem:[%s257 + $0x50] sm:$0xff]
      %v280 = vld [vmem:[%s257 + $0x58] sm:$0xff]
      %v281 = vld [vmem:[%s257 + $0x60] sm:$0xff]
      %v282 = vld [vmem:[%s257 + $0x68] sm:$0xff]
      %v283 = vld [vmem:[%s257 + $0x70] sm:$0xff]
      %v284 = vld [vmem:[%s257 + $0x78] sm:$0xff]
      %v285 = vld [vmem:[%s257 + $0x80] sm:$0xff]
      %v286 = vld [vmem:[%s257 + $0x88] sm:$0xff]
      %v287 = vld [vmem:[%s257 + $0x90] sm:$0xff]
      %v288 = vld [vmem:[%s257 + $0x98] sm:$0xff]
      %v289 = vld [vmem:[%s257 + $0xa0] sm:$0xff]
      %v290 = vld [vmem:[%s257 + $0xa8] sm:$0xff]
      %v291 = vld [vmem:[%s257 + $0xb0] sm:$0xff]
      %v292 = vld [vmem:[%s257 + $0xb8] sm:$0xff]
      %v293 = vld [vmem:[%s257 + $0xc0] sm:$0xff]
      %v294 = vld [vmem:[%s257 + $0xc8] sm:$0xff]
      %v295 = vld [vmem:[%s257 + $0xd0] sm:$0xff]
      %v296 = vld [vmem:[%s257 + $0xd8] sm:$0xff]
      %v297 = vld [vmem:[%s257 + $0xe0] sm:$0xff]
      %v298 = vld [vmem:[%s257 + $0xe8] sm:$0xff]
      %v299 = vld [vmem:[%s257 + $0xf0] sm:$0xff]
      %v300 = vld [vmem:[%s257 + $0xf8] sm:$0xff]
      %v301 = vld [vmem:[%s257 + $0x100] sm:$0xff]
      %v302 = vld [vmem:[%s257 + $0x108] sm:$0xff]
      %v303 = vld [vmem:[%s257 + $0x110] sm:$0xff]
      %v304 = vld [vmem:[%s257 + $0x118] sm:$0xff]
      %v305 = vld [vmem:[%s1] sm:$0xf]
      %vm306 = vcmask 31744
      %v308 = vsel %vm306, %v269, 0
      %v311 = vsel %vm306, %v270, 0
      %v314 = vsel %vm306, %v271, 0
      %v317 = vsel %vm306, %v272, 0
      %v320 = vsel %vm306, %v273, 0
      %v323 = vsel %vm306, %v274, 0
      %v326 = vsel %vm306, %v275, 0
      %v329 = vsel %vm306, %v276, 0
      %v332 = vsel %vm306, %v277, 0
      %v335 = vsel %vm306, %v278, 0
      %v338 = vsel %vm306, %v279, 0
      %v341 = vsel %vm306, %v280, 0
      %v344 = vsel %vm306, %v281, 0
      %v347 = vsel %vm306, %v282, 0
      %v350 = vsel %vm306, %v283, 0
      %v353 = vsel %vm306, %v284, 0
      %v356 = vsel %vm306, %v285, 0
      %v359 = vsel %vm306, %v286, 0
      %v362 = vsel %vm306, %v287, 0
      %v365 = vsel %vm306, %v288, 0
      %v368 = vsel %vm306, %v289, 0
      %v371 = vsel %vm306, %v290, 0
      %v374 = vsel %vm306, %v291, 0
      %v377 = vsel %vm306, %v292, 0
      %v380 = vsel %vm306, %v293, 0
      %v383 = vsel %vm306, %v294, 0
      %v386 = vsel %vm306, %v295, 0
      %v389 = vsel %vm306, %v296, 0
      %v392 = vsel %vm306, %v297, 0
      %v395 = vsel %vm306, %v298, 0
      %v398 = vsel %vm306, %v299, 0
      %v401 = vsel %vm306, %v300, 0
      %v404 = vsel %vm306, %v301, 0
      %v407 = vsel %vm306, %v302, 0
      %v410 = vsel %vm306, %v303, 0
      %v413 = vsel %vm306, %v304, 0
      %vm415 = vcmask 1043456
      %v417 = vsel %vm415, %v305, 0
      %419 = vmatprep.subr.mxu0 0.0
      %420 = vmatpush1.msra.mxu0 %v417
      %421 = vmatprep.subr.mxu0 0.0
      %422 = vmatpush1.msra.mxu0 0.0
      %423 = vmatprep.subr.mxu0 0.0
      %424 = vmatpush1.msra.mxu0 0.0
      %425 = vmatprep.subr.mxu0 0.0
      %426 = vmatpush1.msra.mxu0 0.0
      %427 = vmatprep.subr.mxu0 0.0
      %428 = vmatpush1.msra.mxu0 0.0
      %429 = vmatprep.subr.mxu0 0.0
      %430 = vmatpush1.msra.mxu0 0.0
      %431 = vmatprep.subr.mxu0 0.0
      %432 = vmatpush1.msra.mxu0 0.0
      %433 = vmatprep.subr.mxu0 0.0
      %434 = vmatpush1.msra.mxu0 0.0
      %435 = vmatprep.subr.mxu0 0.0
      %436 = vmatpush1.msra.mxu0 0.0
      %437 = vmatprep.subr.mxu0 0.0
      %438 = vmatpush1.msra.mxu0 0.0
      %439 = vmatprep.subr.mxu0 0.0
      %440 = vmatpush1.msra.mxu0 0.0
      %441 = vmatprep.subr.mxu0 0.0
      %442 = vmatpush1.msra.mxu0 0.0
      %443 = vmatprep.subr.mxu0 0.0
      %444 = vmatpush1.msra.mxu0 0.0
      %445 = vmatprep.subr.mxu0 0.0
      %446 = vmatpush1.msra.mxu0 0.0
      %447 = vmatprep.subr.mxu0 0.0
      %448 = vmatpush1.msra.mxu0 0.0
      %449 = vmatprep.subr.mxu0 0.0
      %450 = vmatpush1.msra.mxu0 0.0
      %451 = vmatprep.subr.mxu0 0.0
      %452 = vmatpush1.msra.mxu0 0.0
      %453 = vmatprep.subr.mxu0 0.0
      %454 = vmatpush1.msra.mxu0 0.0
      %455 = vmatprep.subr.mxu0 0.0
      %456 = vmatpush1.msra.mxu0 0.0
      %457 = vmatprep.subr.mxu0 0.0
      %458 = vmatpush1.msra.mxu0 0.0
      %459 = vmatprep.subr.mxu0 0.0
      %460 = vmatpush1.msra.mxu0 0.0
      %461 = vmatprep.subr.mxu0 0.0
      %462 = vmatpush1.msra.mxu0 0.0
      %463 = vmatprep.subr.mxu0 0.0
      %464 = vmatpush1.msra.mxu0 0.0
      %465 = vmatprep.subr.mxu0 0.0
      %466 = vmatpush1.msra.mxu0 0.0
      %467 = vmatprep.subr.mxu0 0.0
      %468 = vmatpush1.msra.mxu0 0.0
      %469 = vmatprep.subr.mxu0 0.0
      %470 = vmatpush1.msra.mxu0 0.0
      %471 = vmatprep.subr.mxu0 0.0
      %472 = vmatpush1.msra.mxu0 0.0
      %473 = vmatprep.subr.mxu0 0.0
      %474 = vmatpush1.msra.mxu0 0.0
      %475 = vmatprep.subr.mxu0 0.0
      %476 = vmatpush1.msra.mxu0 0.0
      %477 = vmatprep.subr.mxu0 0.0
      %478 = vmatpush1.msra.mxu0 0.0
      %479 = vmatprep.subr.mxu0 0.0
      %480 = vmatpush1.msra.mxu0 0.0
      %481 = vmatprep.subr.mxu0 0.0
      %482 = vmatpush1.msra.mxu0 0.0
      %483 = vmatprep.mubr.f32.mxu0 0.0
      %484 = vmatmul.mubr.f32.gmra.mrb[0].mxu0 %v308
      %v485 = vpop.f32.mrb[0].mxu0
      %v486 = vadd.f32 0.0, %v485
      %v487 = vpop.f32.mrb[0].mxu0
      %488 = vmatprep.mubr.f32.mxu0 0.0
      %489 = vmatmul.mubr.f32.gmra.mrb[0].mxu0 %v311
      %v490 = vpop.f32.mrb[0].mxu0
      %v491 = vadd.f32 0.0, %v490
      %v492 = vpop.f32.mrb[0].mxu0
      %493 = vmatprep.mubr.f32.mxu0 0.0
      %494 = vmatmul.mubr.f32.gmra.mrb[0].mxu0 %v314
      %v495 = vpop.f32.mrb[0].mxu0
      %v496 = vadd.f32 0.0, %v495
      %v497 = vpop.f32.mrb[0].mxu0
      %498 = vmatprep.mubr.f32.mxu0 0.0
      %499 = vmatmul.mubr.f32.gmra.mrb[0].mxu0 %v317
      %v500 = vpop.f32.mrb[0].mxu0
      %v501 = vadd.f32 0.0, %v500
      %v502 = vpop.f32.mrb[0].mxu0
      %503 = vmatprep.mubr.f32.mxu0 0.0
      %504 = vmatmul.mubr.f32.gmra.mrb[0].mxu0 %v320
      %v505 = vpop.f32.mrb[0].mxu0
      %v506 = vadd.f32 0.0, %v505
      %v507 = vpop.f32.mrb[0].mxu0
      %508 = vmatprep.mubr.f32.mxu0 0.0
      %509 = vmatmul.mubr.f32.gmra.mrb[0].mxu0 %v323
      %v510 = vpop.f32.mrb[0].mxu0
      %v511 = vadd.f32 0.0, %v510
      %v512 = vpop.f32.mrb[0].mxu0
      %513 = vmatprep.mubr.f32.mxu0 0.0
      %514 = vmatmul.mubr.f32.gmra.mrb[0].mxu0 %v326
      %v515 = vpop.f32.mrb[0].mxu0
      %v516 = vadd.f32 0.0, %v515
      %v517 = vpop.f32.mrb[0].mxu0
      %518 = vmatprep.mubr.f32.mxu0 0.0
      %519 = vmatmul.mubr.f32.gmra.mrb[0].mxu0 %v329
      %v520 = vpop.f32.mrb[0].mxu0
      %v521 = vadd.f32 0.0, %v520
      %v522 = vpop.f32.mrb[0].mxu0
      %523 = vmatprep.mubr.f32.mxu0 0.0
      %524 = vmatmul.mubr.f32.gmra.mrb[0].mxu0 %v332
      %v525 = vpop.f32.mrb[0].mxu0
      %v526 = vadd.f32 0.0, %v525
      %v527 = vpop.f32.mrb[0].mxu0
      %528 = vmatprep.mubr.f32.mxu0 0.0
      %529 = vmatmul.mubr.f32.gmra.mrb[0].mxu0 %v335
      %v530 = vpop.f32.mrb[0].mxu0
      %v531 = vadd.f32 0.0, %v530
      %v532 = vpop.f32.mrb[0].mxu0
      %533 = vmatprep.mubr.f32.mxu0 0.0
      %534 = vmatmul.mubr.f32.gmra.mrb[0].mxu0 %v338
      %v535 = vpop.f32.mrb[0].mxu0
      %v536 = vadd.f32 0.0, %v535
      %v537 = vpop.f32.mrb[0].mxu0
      %538 = vmatprep.mubr.f32.mxu0 0.0
      %539 = vmatmul.mubr.f32.gmra.mrb[0].mxu0 %v341
      %v540 = vpop.f32.mrb[0].mxu0
      %v541 = vadd.f32 0.0, %v540
      %v542 = vpop.f32.mrb[0].mxu0
      %543 = vmatprep.mubr.f32.mxu0 0.0
      %544 = vmatmul.mubr.f32.gmra.mrb[0].mxu0 %v344
      %v545 = vpop.f32.mrb[0].mxu0
      %v546 = vadd.f32 0.0, %v545
      %v547 = vpop.f32.mrb[0].mxu0
      %548 = vmatprep.mubr.f32.mxu0 0.0
      %549 = vmatmul.mubr.f32.gmra.mrb[0].mxu0 %v347
      %v550 = vpop.f32.mrb[0].mxu0
      %v551 = vadd.f32 0.0, %v550
      %v552 = vpop.f32.mrb[0].mxu0
      %553 = vmatprep.mubr.f32.mxu0 0.0
      %554 = vmatmul.mubr.f32.gmra.mrb[0].mxu0 %v350
      %v555 = vpop.f32.mrb[0].mxu0
      %v556 = vadd.f32 0.0, %v555
      %v557 = vpop.f32.mrb[0].mxu0
      %558 = vmatprep.mubr.f32.mxu0 0.0
      %559 = vmatmul.mubr.f32.gmra.mrb[0].mxu0 %v353
      %v560 = vpop.f32.mrb[0].mxu0
      %v561 = vadd.f32 0.0, %v560
      %v562 = vpop.f32.mrb[0].mxu0
      %563 = vmatprep.mubr.f32.mxu0 0.0
      %564 = vmatmul.mubr.f32.gmra.mrb[0].mxu0 %v356
      %v565 = vpop.f32.mrb[0].mxu0
      %v566 = vadd.f32 0.0, %v565
      %v567 = vpop.f32.mrb[0].mxu0
      %568 = vmatprep.mubr.f32.mxu0 0.0
      %569 = vmatmul.mubr.f32.gmra.mrb[0].mxu0 %v359
      %v570 = vpop.f32.mrb[0].mxu0
      %v571 = vadd.f32 0.0, %v570
      %v572 = vpop.f32.mrb[0].mxu0
      %573 = vmatprep.mubr.f32.mxu0 0.0
      %574 = vmatmul.mubr.f32.gmra.mrb[0].mxu0 %v362
      %v575 = vpop.f32.mrb[0].mxu0
      %v576 = vadd.f32 0.0, %v575
      %v577 = vpop.f32.mrb[0].mxu0
      %578 = vmatprep.mubr.f32.mxu0 0.0
      %579 = vmatmul.mubr.f32.gmra.mrb[0].mxu0 %v365
      %v580 = vpop.f32.mrb[0].mxu0
      %v581 = vadd.f32 0.0, %v580
      %v582 = vpop.f32.mrb[0].mxu0
      %583 = vmatprep.mubr.f32.mxu0 0.0
      %584 = vmatmul.mubr.f32.gmra.mrb[0].mxu0 %v368
      %v585 = vpop.f32.mrb[0].mxu0
      %v586 = vadd.f32 0.0, %v585
      %v587 = vpop.f32.mrb[0].mxu0
      %588 = vmatprep.mubr.f32.mxu0 0.0
      %589 = vmatmul.mubr.f32.gmra.mrb[0].mxu0 %v371
      %v590 = vpop.f32.mrb[0].mxu0
      %v591 = vadd.f32 0.0, %v590
      %v592 = vpop.f32.mrb[0].mxu0
      %593 = vmatprep.mubr.f32.mxu0 0.0
      %594 = vmatmul.mubr.f32.gmra.mrb[0].mxu0 %v374
      %v595 = vpop.f32.mrb[0].mxu0
      %v596 = vadd.f32 0.0, %v595
      %v597 = vpop.f32.mrb[0].mxu0
      %598 = vmatprep.mubr.f32.mxu0 0.0
      %599 = vmatmul.mubr.f32.gmra.mrb[0].mxu0 %v377
      %v600 = vpop.f32.mrb[0].mxu0
      %v601 = vadd.f32 0.0, %v600
      %v602 = vpop.f32.mrb[0].mxu0
      %603 = vmatprep.mubr.f32.mxu0 0.0
      %604 = vmatmul.mubr.f32.gmra.mrb[0].mxu0 %v380
      %v605 = vpop.f32.mrb[0].mxu0
      %v606 = vadd.f32 0.0, %v605
      %v607 = vpop.f32.mrb[0].mxu0
      %608 = vmatprep.mubr.f32.mxu0 0.0
      %609 = vmatmul.mubr.f32.gmra.mrb[0].mxu0 %v383
      %v610 = vpop.f32.mrb[0].mxu0
      %v611 = vadd.f32 0.0, %v610
      %v612 = vpop.f32.mrb[0].mxu0
      %613 = vmatprep.mubr.f32.mxu0 0.0
      %614 = vmatmul.mubr.f32.gmra.mrb[0].mxu0 %v386
      %v615 = vpop.f32.mrb[0].mxu0
      %v616 = vadd.f32 0.0, %v615
      %v617 = vpop.f32.mrb[0].mxu0
      %618 = vmatprep.mubr.f32.mxu0 0.0
      %619 = vmatmul.mubr.f32.gmra.mrb[0].mxu0 %v389
      %v620 = vpop.f32.mrb[0].mxu0
      %v621 = vadd.f32 0.0, %v620
      %v622 = vpop.f32.mrb[0].mxu0
      %623 = vmatprep.mubr.f32.mxu0 0.0
      %624 = vmatmul.mubr.f32.gmra.mrb[0].mxu0 %v392
      %v625 = vpop.f32.mrb[0].mxu0
      %v626 = vadd.f32 0.0, %v625
      %v627 = vpop.f32.mrb[0].mxu0
      %628 = vmatprep.mubr.f32.mxu0 0.0
      %629 = vmatmul.mubr.f32.gmra.mrb[0].mxu0 %v395
      %v630 = vpop.f32.mrb[0].mxu0
      %v631 = vadd.f32 0.0, %v630
      %v632 = vpop.f32.mrb[0].mxu0
      %633 = vmatprep.mubr.f32.mxu0 0.0
      %634 = vmatmul.mubr.f32.gmra.mrb[0].mxu0 %v398
      %v635 = vpop.f32.mrb[0].mxu0
      %v636 = vadd.f32 0.0, %v635
      %v637 = vpop.f32.mrb[0].mxu0
      %638 = vmatprep.mubr.f32.mxu0 0.0
      %639 = vmatmul.mubr.f32.gmra.mrb[0].mxu0 %v401
      %v640 = vpop.f32.mrb[0].mxu0
      %v641 = vadd.f32 0.0, %v640
      %v642 = vpop.f32.mrb[0].mxu0
      %643 = vmatprep.mubr.f32.mxu0 0.0
      %644 = vmatmul.mubr.f32.gmra.mrb[0].mxu0 %v404
      %v645 = vpop.f32.mrb[0].mxu0
      %v646 = vadd.f32 0.0, %v645
      %v647 = vpop.f32.mrb[0].mxu0
      %648 = vmatprep.mubr.f32.mxu0 0.0
      %649 = vmatmul.mubr.f32.gmra.mrb[0].mxu0 %v407
      %v650 = vpop.f32.mrb[0].mxu0
      %v651 = vadd.f32 0.0, %v650
      %v652 = vpop.f32.mrb[0].mxu0
      %653 = vmatprep.mubr.f32.mxu0 0.0
      %654 = vmatmul.mubr.f32.gmra.mrb[0].mxu0 %v410
      %v655 = vpop.f32.mrb[0].mxu0
      %v656 = vadd.f32 0.0, %v655
      %v657 = vpop.f32.mrb[0].mxu0
      %658 = vmatprep.mubr.f32.mxu0 0.0
      %659 = vmatmul.mubr.f32.gmra.mrb[0].mxu0 %v413
      %v660 = vpop.f32.mrb[0].mxu0
      %v661 = vadd.f32 0.0, %v660
      %v662 = vpop.f32.mrb[0].mxu0
      %663 = vdwg.mxu0
      %664 = vst [vmem:[#allocation2] sm:$0xff] %v486
      %665 = vst [vmem:[#allocation2 + $0x8] sm:$0xff] %v491
      %666 = vst [vmem:[#allocation2 + $0x10] sm:$0xff] %v496
      %667 = vst [vmem:[#allocation2 + $0x18] sm:$0xff] %v501
      %668 = vst [vmem:[#allocation2 + $0x20] sm:$0xff] %v506
      %669 = vst [vmem:[#allocation2 + $0x28] sm:$0xff] %v511
      %670 = vst [vmem:[#allocation2 + $0x30] sm:$0xff] %v516
      %671 = vst [vmem:[#allocation2 + $0x38] sm:$0xff] %v521
      %672 = vst [vmem:[#allocation2 + $0x40] sm:$0xff] %v526
      %673 = vst [vmem:[#allocation2 + $0x48] sm:$0xff] %v531
      %674 = vst [vmem:[#allocation2 + $0x50] sm:$0xff] %v536
      %675 = vst [vmem:[#allocation2 + $0x58] sm:$0xff] %v541
      %676 = vst [vmem:[#allocation2 + $0x60] sm:$0xff] %v546
      %677 = vst [vmem:[#allocation2 + $0x68] sm:$0xff] %v551
      %678 = vst [vmem:[#allocation2 + $0x70] sm:$0xff] %v556
      %679 = vst [vmem:[#allocation2 + $0x78] sm:$0xff] %v561
      %680 = vst [vmem:[#allocation2 + $0x80] sm:$0xff] %v566
      %681 = vst [vmem:[#allocation2 + $0x88] sm:$0xff] %v571
      %682 = vst [vmem:[#allocation2 + $0x90] sm:$0xff] %v576
      %683 = vst [vmem:[#allocation2 + $0x98] sm:$0xff] %v581
      %684 = vst [vmem:[#allocation2 + $0xa0] sm:$0xff] %v586
      %685 = vst [vmem:[#allocation2 + $0xa8] sm:$0xff] %v591
      %686 = vst [vmem:[#allocation2 + $0xb0] sm:$0xff] %v596
      %687 = vst [vmem:[#allocation2 + $0xb8] sm:$0xff] %v601
      %688 = vst [vmem:[#allocation2 + $0xc0] sm:$0xff] %v606
      %689 = vst [vmem:[#allocation2 + $0xc8] sm:$0xff] %v611
      %690 = vst [vmem:[#allocation2 + $0xd0] sm:$0xff] %v616
      %691 = vst [vmem:[#allocation2 + $0xd8] sm:$0xff] %v621
      %692 = vst [vmem:[#allocation2 + $0xe0] sm:$0xff] %v626
      %693 = vst [vmem:[#allocation2 + $0xe8] sm:$0xff] %v631
      %694 = vst [vmem:[#allocation2 + $0xf0] sm:$0xff] %v636
      %695 = vst [vmem:[#allocation2 + $0xf8] sm:$0xff] %v641
      %696 = vst [vmem:[#allocation2 + $0x100] sm:$0xff] %v646
      %697 = vst [vmem:[#allocation2 + $0x108] sm:$0xff] %v651
      %698 = vst [vmem:[#allocation2 + $0x110] sm:$0xff] %v656
      %699 = vst [vmem:[#allocation2 + $0x118] sm:$0xff] %v661
      %v700 = vld [vmem:[%s257 + $0x1] sm:$0xff]
      %v701 = vld [vmem:[%s257 + $0x9] sm:$0xff]
      %v702 = vld [vmem:[%s257 + $0x11] sm:$0xff]
      %v703 = vld [vmem:[%s257 + $0x19] sm:$0xff]
      %v704 = vld [vmem:[%s257 + $0x21] sm:$0xff]
      %v705 = vld [vmem:[%s257 + $0x29] sm:$0xff]
      %v706 = vld [vmem:[%s257 + $0x31] sm:$0xff]
      %v707 = vld [vmem:[%s257 + $0x39] sm:$0xff]
      %v708 = vld [vmem:[%s257 + $0x41] sm:$0xff]
      %v709 = vld [vmem:[%s257 + $0x49] sm:$0xff]
      %v710 = vld [vmem:[%s257 + $0x51] sm:$0xff]
      %v711 = vld [vmem:[%s257 + $0x59] sm:$0xff]
      %v712 = vld [vmem:[%s257 + $0x61] sm:$0xff]
      %v713 = vld [vmem:[%s257 + $0x69] sm:$0xff]
      %v714 = vld [vmem:[%s257 + $0x71] sm:$0xff]
      %v715 = vld [vmem:[%s257 + $0x79] sm:$0xff]
      %v716 = vld [vmem:[%s257 + $0x81] sm:$0xff]
      %v717 = vld [vmem:[%s257 + $0x89] sm:$0xff]
      %v718 = vld [vmem:[%s257 + $0x91] sm:$0xff]
      %v719 = vld [vmem:[%s257 + $0x99] sm:$0xff]
      %v720 = vld [vmem:[%s257 + $0xa1] sm:$0xff]
      %v721 = vld [vmem:[%s257 + $0xa9] sm:$0xff]
      %v722 = vld [vmem:[%s257 + $0xb1] sm:$0xff]
      %v723 = vld [vmem:[%s257 + $0xb9] sm:$0xff]
      %v724 = vld [vmem:[%s257 + $0xc1] sm:$0xff]
      %v725 = vld [vmem:[%s257 + $0xc9] sm:$0xff]
      %v726 = vld [vmem:[%s257 + $0xd1] sm:$0xff]
      %v727 = vld [vmem:[%s257 + $0xd9] sm:$0xff]
      %v728 = vld [vmem:[%s257 + $0xe1] sm:$0xff]
      %v729 = vld [vmem:[%s257 + $0xe9] sm:$0xff]
      %v730 = vld [vmem:[%s257 + $0xf1] sm:$0xff]
      %v731 = vld [vmem:[%s257 + $0xf9] sm:$0xff]
      %v732 = vld [vmem:[%s257 + $0x101] sm:$0xff]
      %v733 = vld [vmem:[%s257 + $0x109] sm:$0xff]
      %v734 = vld [vmem:[%s257 + $0x111] sm:$0xff]
      %v735 = vld [vmem:[%s257 + $0x119] sm:$0xff]
      %s736 = scalar_lea.vmem %s1, 4
      %v737 = vld [vmem:[%s736] sm:$0xf]
      %v739 = vsel %vm306, %v700, 0
      %v742 = vsel %vm306, %v701, 0
      %v745 = vsel %vm306, %v702, 0
      %v748 = vsel %vm306, %v703, 0
      %v751 = vsel %vm306, %v704, 0
      %v754 = vsel %vm306, %v705, 0
      %v757 = vsel %vm306, %v706, 0
      %v760 = vsel %vm306, %v707, 0
      %v763 = vsel %vm306, %v708, 0
      %v766 = vsel %vm306, %v709, 0
      %v769 = vsel %vm306, %v710, 0
      %v772 = vsel %vm306, %v711, 0
      %v775 = vsel %vm306, %v712, 0
      %v778 = vsel %vm306, %v713, 0
      %v781 = vsel %vm306, %v714, 0
      %v784 = vsel %vm306, %v715, 0
      %v787 = vsel %vm306, %v716, 0
      %v790 = vsel %vm306, %v717, 0
      %v793 = vsel %vm306, %v718, 0
      %v796 = vsel %vm306, %v719, 0
      %v799 = vsel %vm306, %v720, 0
      %v802 = vsel %vm306, %v721, 0
      %v805 = vsel %vm306, %v722, 0
      %v808 = vsel %vm306, %v723, 0
      %v811 = vsel %vm306, %v724, 0
      %v814 = vsel %vm306, %v725, 0
      %v817 = vsel %vm306, %v726, 0
      %v820 = vsel %vm306, %v727, 0
      %v823 = vsel %vm306, %v728, 0
      %v826 = vsel %vm306, %v729, 0
      %v829 = vsel %vm306, %v730, 0
      %v832 = vsel %vm306, %v731, 0
      %v835 = vsel %vm306, %v732, 0
      %v838 = vsel %vm306, %v733, 0
      %v841 = vsel %vm306, %v734, 0
      %v844 = vsel %vm306, %v735, 0
      %v847 = vsel %vm415, %v737, 0
      %849 = vmatprep.subr.mxu0 0.0
      %850 = vmatpush1.msra.mxu0 %v847
      %851 = vmatprep.subr.mxu0 0.0
      %852 = vmatpush1.msra.mxu0 0.0
      %853 = vmatprep.subr.mxu0 0.0
      %854 = vmatpush1.msra.mxu0 0.0
      %855 = vmatprep.subr.mxu0 0.0
      %856 = vmatpush1.msra.mxu0 0.0
      %857 = vmatprep.subr.mxu0 0.0
      %858 = vmatpush1.msra.mxu0 0.0
      %859 = vmatprep.subr.mxu0 0.0
      %860 = vmatpush1.msra.mxu0 0.0
      %861 = vmatprep.subr.mxu0 0.0
      %862 = vmatpush1.msra.mxu0 0.0
      %863 = vmatprep.subr.mxu0 0.0
      %864 = vmatpush1.msra.mxu0 0.0
      %865 = vmatprep.subr.mxu0 0.0
      %866 = vmatpush1.msra.mxu0 0.0
      %867 = vmatprep.subr.mxu0 0.0
      %868 = vmatpush1.msra.mxu0 0.0
      %869 = vmatprep.subr.mxu0 0.0
      %870 = vmatpush1.msra.mxu0 0.0
      %871 = vmatprep.subr.mxu0 0.0
      %872 = vmatpush1.msra.mxu0 0.0
      %873 = vmatprep.subr.mxu0 0.0
      %874 = vmatpush1.msra.mxu0 0.0
      %875 = vmatprep.subr.mxu0 0.0
      %876 = vmatpush1.msra.mxu0 0.0
      %877 = vmatprep.subr.mxu0 0.0
      %878 = vmatpush1.msra.mxu0 0.0
      %879 = vmatprep.subr.mxu0 0.0
      %880 = vmatpush1.msra.mxu0 0.0
      %881 = vmatprep.subr.mxu0 0.0
      %882 = vmatpush1.msra.mxu0 0.0
      %883 = vmatprep.subr.mxu0 0.0
      %884 = vmatpush1.msra.mxu0 0.0
      %885 = vmatprep.subr.mxu0 0.0
      %886 = vmatpush1.msra.mxu0 0.0
      %887 = vmatprep.subr.mxu0 0.0
      %888 = vmatpush1.msra.mxu0 0.0
      %889 = vmatprep.subr.mxu0 0.0
      %890 = vmatpush1.msra.mxu0 0.0
      %891 = vmatprep.subr.mxu0 0.0
      %892 = vmatpush1.msra.mxu0 0.0
      %893 = vmatprep.subr.mxu0 0.0
      %894 = vmatpush1.msra.mxu0 0.0
      %895 = vmatprep.subr.mxu0 0.0
      %896 = vmatpush1.msra.mxu0 0.0
      %897 = vmatprep.subr.mxu0 0.0
      %898 = vmatpush1.msra.mxu0 0.0
      %899 = vmatprep.subr.mxu0 0.0
      %900 = vmatpush1.msra.mxu0 0.0
      %901 = vmatprep.subr.mxu0 0.0
      %902 = vmatpush1.msra.mxu0 0.0
      %903 = vmatprep.subr.mxu0 0.0
      %904 = vmatpush1.msra.mxu0 0.0
      %905 = vmatprep.subr.mxu0 0.0
      %906 = vmatpush1.msra.mxu0 0.0
      %907 = vmatprep.subr.mxu0 0.0
      %908 = vmatpush1.msra.mxu0 0.0
      %909 = vmatprep.subr.mxu0 0.0
      %910 = vmatpush1.msra.mxu0 0.0
      %911 = vmatprep.subr.mxu0 0.0
      %912 = vmatpush1.msra.mxu0 0.0
      %913 = vmatprep.mubr.f32.mxu0 0.0
      %914 = vmatmul.mubr.f32.gmra.mrb[0].mxu0 %v739
      %v915 = vpop.f32.mrb[0].mxu0
      %v916 = vadd.f32 0.0, %v915
      %v917 = vpop.f32.mrb[0].mxu0
      %918 = vmatprep.mubr.f32.mxu0 0.0
      %919 = vmatmul.mubr.f32.gmra.mrb[0].mxu0 %v742
      %v920 = vpop.f32.mrb[0].mxu0
      %v921 = vadd.f32 0.0, %v920
      %v922 = vpop.f32.mrb[0].mxu0
      %923 = vmatprep.mubr.f32.mxu0 0.0
      %924 = vmatmul.mubr.f32.gmra.mrb[0].mxu0 %v745
      %v925 = vpop.f32.mrb[0].mxu0
      %v926 = vadd.f32 0.0, %v925
      %v927 = vpop.f32.mrb[0].mxu0
      %928 = vmatprep.mubr.f32.mxu0 0.0
      %929 = vmatmul.mubr.f32.gmra.mrb[0].mxu0 %v748
      %v930 = vpop.f32.mrb[0].mxu0
      %v931 = vadd.f32 0.0, %v930
      %v932 = vpop.f32.mrb[0].mxu0
      %933 = vmatprep.mubr.f32.mxu0 0.0
      %934 = vmatmul.mubr.f32.gmra.mrb[0].mxu0 %v751
      %v935 = vpop.f32.mrb[0].mxu0
      %v936 = vadd.f32 0.0, %v935
      %v937 = vpop.f32.mrb[0].mxu0
      %938 = vmatprep.mubr.f32.mxu0 0.0
      %939 = vmatmul.mubr.f32.gmra.mrb[0].mxu0 %v754
      %v940 = vpop.f32.mrb[0].mxu0
      %v941 = vadd.f32 0.0, %v940
      %v942 = vpop.f32.mrb[0].mxu0
      %943 = vmatprep.mubr.f32.mxu0 0.0
      %944 = vmatmul.mubr.f32.gmra.mrb[0].mxu0 %v757
      %v945 = vpop.f32.mrb[0].mxu0
      %v946 = vadd.f32 0.0, %v945
      %v947 = vpop.f32.mrb[0].mxu0
      %948 = vmatprep.mubr.f32.mxu0 0.0
      %949 = vmatmul.mubr.f32.gmra.mrb[0].mxu0 %v760
      %v950 = vpop.f32.mrb[0].mxu0
      %v951 = vadd.f32 0.0, %v950
      %v952 = vpop.f32.mrb[0].mxu0
      %953 = vmatprep.mubr.f32.mxu0 0.0
      %954 = vmatmul.mubr.f32.gmra.mrb[0].mxu0 %v763
      %v955 = vpop.f32.mrb[0].mxu0
      %v956 = vadd.f32 0.0, %v955
      %v957 = vpop.f32.mrb[0].mxu0
      %958 = vmatprep.mubr.f32.mxu0 0.0
      %959 = vmatmul.mubr.f32.gmra.mrb[0].mxu0 %v766
      %v960 = vpop.f32.mrb[0].mxu0
      %v961 = vadd.f32 0.0, %v960
      %v962 = vpop.f32.mrb[0].mxu0
      %963 = vmatprep.mubr.f32.mxu0 0.0
      %964 = vmatmul.mubr.f32.gmra.mrb[0].mxu0 %v769
      %v965 = vpop.f32.mrb[0].mxu0
      %v966 = vadd.f32 0.0, %v965
      %v967 = vpop.f32.mrb[0].mxu0
      %968 = vmatprep.mubr.f32.mxu0 0.0
      %969 = vmatmul.mubr.f32.gmra.mrb[0].mxu0 %v772
      %v970 = vpop.f32.mrb[0].mxu0
      %v971 = vadd.f32 0.0, %v970
      %v972 = vpop.f32.mrb[0].mxu0
      %973 = vmatprep.mubr.f32.mxu0 0.0
      %974 = vmatmul.mubr.f32.gmra.mrb[0].mxu0 %v775
      %v975 = vpop.f32.mrb[0].mxu0
      %v976 = vadd.f32 0.0, %v975
      %v977 = vpop.f32.mrb[0].mxu0
      %978 = vmatprep.mubr.f32.mxu0 0.0
      %979 = vmatmul.mubr.f32.gmra.mrb[0].mxu0 %v778
      %v980 = vpop.f32.mrb[0].mxu0
      %v981 = vadd.f32 0.0, %v980
      %v982 = vpop.f32.mrb[0].mxu0
      %983 = vmatprep.mubr.f32.mxu0 0.0
      %984 = vmatmul.mubr.f32.gmra.mrb[0].mxu0 %v781
      %v985 = vpop.f32.mrb[0].mxu0
      %v986 = vadd.f32 0.0, %v985
      %v987 = vpop.f32.mrb[0].mxu0
      %988 = vmatprep.mubr.f32.mxu0 0.0
      %989 = vmatmul.mubr.f32.gmra.mrb[0].mxu0 %v784
      %v990 = vpop.f32.mrb[0].mxu0
      %v991 = vadd.f32 0.0, %v990
      %v992 = vpop.f32.mrb[0].mxu0
      %993 = vmatprep.mubr.f32.mxu0 0.0
      %994 = vmatmul.mubr.f32.gmra.mrb[0].mxu0 %v787
      %v995 = vpop.f32.mrb[0].mxu0
      %v996 = vadd.f32 0.0, %v995
      %v997 = vpop.f32.mrb[0].mxu0
      %998 = vmatprep.mubr.f32.mxu0 0.0
      %999 = vmatmul.mubr.f32.gmra.mrb[0].mxu0 %v790
      %v1000 = vpop.f32.mrb[0].mxu0
      %v1001 = vadd.f32 0.0, %v1000
      %v1002 = vpop.f32.mrb[0].mxu0
      %1003 = vmatprep.mubr.f32.mxu0 0.0
      %1004 = vmatmul.mubr.f32.gmra.mrb[0].mxu0 %v793
      %v1005 = vpop.f32.mrb[0].mxu0
      %v1006 = vadd.f32 0.0, %v1005
      %v1007 = vpop.f32.mrb[0].mxu0
      %1008 = vmatprep.mubr.f32.mxu0 0.0
      %1009 = vmatmul.mubr.f32.gmra.mrb[0].mxu0 %v796
      %v1010 = vpop.f32.mrb[0].mxu0
      %v1011 = vadd.f32 0.0, %v1010
      %v1012 = vpop.f32.mrb[0].mxu0
      %1013 = vmatprep.mubr.f32.mxu0 0.0
      %1014 = vmatmul.mubr.f32.gmra.mrb[0].mxu0 %v799
      %v1015 = vpop.f32.mrb[0].mxu0
      %v1016 = vadd.f32 0.0, %v1015
      %v1017 = vpop.f32.mrb[0].mxu0
      %1018 = vmatprep.mubr.f32.mxu0 0.0
      %1019 = vmatmul.mubr.f32.gmra.mrb[0].mxu0 %v802
      %v1020 = vpop.f32.mrb[0].mxu0
      %v1021 = vadd.f32 0.0, %v1020
      %v1022 = vpop.f32.mrb[0].mxu0
      %1023 = vmatprep.mubr.f32.mxu0 0.0
      %1024 = vmatmul.mubr.f32.gmra.mrb[0].mxu0 %v805
      %v1025 = vpop.f32.mrb[0].mxu0
      %v1026 = vadd.f32 0.0, %v1025
      %v1027 = vpop.f32.mrb[0].mxu0
      %1028 = vmatprep.mubr.f32.mxu0 0.0
      %1029 = vmatmul.mubr.f32.gmra.mrb[0].mxu0 %v808
      %v1030 = vpop.f32.mrb[0].mxu0
      %v1031 = vadd.f32 0.0, %v1030
      %v1032 = vpop.f32.mrb[0].mxu0
      %1033 = vmatprep.mubr.f32.mxu0 0.0
      %1034 = vmatmul.mubr.f32.gmra.mrb[0].mxu0 %v811
      %v1035 = vpop.f32.mrb[0].mxu0
      %v1036 = vadd.f32 0.0, %v1035
      %v1037 = vpop.f32.mrb[0].mxu0
      %1038 = vmatprep.mubr.f32.mxu0 0.0
      %1039 = vmatmul.mubr.f32.gmra.mrb[0].mxu0 %v814
      %v1040 = vpop.f32.mrb[0].mxu0
      %v1041 = vadd.f32 0.0, %v1040
      %v1042 = vpop.f32.mrb[0].mxu0
      %1043 = vmatprep.mubr.f32.mxu0 0.0
      %1044 = vmatmul.mubr.f32.gmra.mrb[0].mxu0 %v817
      %v1045 = vpop.f32.mrb[0].mxu0
      %v1046 = vadd.f32 0.0, %v1045
      %v1047 = vpop.f32.mrb[0].mxu0
      %1048 = vmatprep.mubr.f32.mxu0 0.0
      %1049 = vmatmul.mubr.f32.gmra.mrb[0].mxu0 %v820
      %v1050 = vpop.f32.mrb[0].mxu0
      %v1051 = vadd.f32 0.0, %v1050
      %v1052 = vpop.f32.mrb[0].mxu0
      %1053 = vmatprep.mubr.f32.mxu0 0.0
      %1054 = vmatmul.mubr.f32.gmra.mrb[0].mxu0 %v823
      %v1055 = vpop.f32.mrb[0].mxu0
      %v1056 = vadd.f32 0.0, %v1055
      %v1057 = vpop.f32.mrb[0].mxu0
      %1058 = vmatprep.mubr.f32.mxu0 0.0
      %1059 = vmatmul.mubr.f32.gmra.mrb[0].mxu0 %v826
      %v1060 = vpop.f32.mrb[0].mxu0
      %v1061 = vadd.f32 0.0, %v1060
      %v1062 = vpop.f32.mrb[0].mxu0
      %1063 = vmatprep.mubr.f32.mxu0 0.0
      %1064 = vmatmul.mubr.f32.gmra.mrb[0].mxu0 %v829
      %v1065 = vpop.f32.mrb[0].mxu0
      %v1066 = vadd.f32 0.0, %v1065
      %v1067 = vpop.f32.mrb[0].mxu0
      %1068 = vmatprep.mubr.f32.mxu0 0.0
      %1069 = vmatmul.mubr.f32.gmra.mrb[0].mxu0 %v832
      %v1070 = vpop.f32.mrb[0].mxu0
      %v1071 = vadd.f32 0.0, %v1070
      %v1072 = vpop.f32.mrb[0].mxu0
      %1073 = vmatprep.mubr.f32.mxu0 0.0
      %1074 = vmatmul.mubr.f32.gmra.mrb[0].mxu0 %v835
      %v1075 = vpop.f32.mrb[0].mxu0
      %v1076 = vadd.f32 0.0, %v1075
      %v1077 = vpop.f32.mrb[0].mxu0
      %1078 = vmatprep.mubr.f32.mxu0 0.0
      %1079 = vmatmul.mubr.f32.gmra.mrb[0].mxu0 %v838
      %v1080 = vpop.f32.mrb[0].mxu0
      %v1081 = vadd.f32 0.0, %v1080
      %v1082 = vpop.f32.mrb[0].mxu0
      %1083 = vmatprep.mubr.f32.mxu0 0.0
      %1084 = vmatmul.mubr.f32.gmra.mrb[0].mxu0 %v841
      %v1085 = vpop.f32.mrb[0].mxu0
      %v1086 = vadd.f32 0.0, %v1085
      %v1087 = vpop.f32.mrb[0].mxu0
      %1088 = vmatprep.mubr.f32.mxu0 0.0
      %1089 = vmatmul.mubr.f32.gmra.mrb[0].mxu0 %v844
      %v1090 = vpop.f32.mrb[0].mxu0
      %v1091 = vadd.f32 0.0, %v1090
      %v1092 = vpop.f32.mrb[0].mxu0
      %1093 = vdwg.mxu0
      %v1094 = vld [vmem:[#allocation2] sm:$0xff]
      %v1095 = vld [vmem:[#allocation2 + $0x8] sm:$0xff]
      %v1096 = vld [vmem:[#allocation2 + $0x10] sm:$0xff]
      %v1097 = vld [vmem:[#allocation2 + $0x18] sm:$0xff]
      %v1098 = vld [vmem:[#allocation2 + $0x20] sm:$0xff]
      %v1099 = vld [vmem:[#allocation2 + $0x28] sm:$0xff]
      %v1100 = vld [vmem:[#allocation2 + $0x30] sm:$0xff]
      %v1101 = vld [vmem:[#allocation2 + $0x38] sm:$0xff]
      %v1102 = vld [vmem:[#allocation2 + $0x40] sm:$0xff]
      %v1103 = vld [vmem:[#allocation2 + $0x48] sm:$0xff]
      %v1104 = vld [vmem:[#allocation2 + $0x50] sm:$0xff]
      %v1105 = vld [vmem:[#allocation2 + $0x58] sm:$0xff]
      %v1106 = vld [vmem:[#allocation2 + $0x60] sm:$0xff]
      %v1107 = vld [vmem:[#allocation2 + $0x68] sm:$0xff]
      %v1108 = vld [vmem:[#allocation2 + $0x70] sm:$0xff]
      %v1109 = vld [vmem:[#allocation2 + $0x78] sm:$0xff]
      %v1110 = vld [vmem:[#allocation2 + $0x80] sm:$0xff]
      %v1111 = vld [vmem:[#allocation2 + $0x88] sm:$0xff]
      %v1112 = vld [vmem:[#allocation2 + $0x90] sm:$0xff]
      %v1113 = vld [vmem:[#allocation2 + $0x98] sm:$0xff]
      %v1114 = vld [vmem:[#allocation2 + $0xa0] sm:$0xff]
      %v1115 = vld [vmem:[#allocation2 + $0xa8] sm:$0xff]
      %v1116 = vld [vmem:[#allocation2 + $0xb0] sm:$0xff]
      %v1117 = vld [vmem:[#allocation2 + $0xb8] sm:$0xff]
      %v1118 = vld [vmem:[#allocation2 + $0xc0] sm:$0xff]
      %v1119 = vld [vmem:[#allocation2 + $0xc8] sm:$0xff]
      %v1120 = vld [vmem:[#allocation2 + $0xd0] sm:$0xff]
      %v1121 = vld [vmem:[#allocation2 + $0xd8] sm:$0xff]
      %v1122 = vld [vmem:[#allocation2 + $0xe0] sm:$0xff]
      %v1123 = vld [vmem:[#allocation2 + $0xe8] sm:$0xff]
      %v1124 = vld [vmem:[#allocation2 + $0xf0] sm:$0xff]
      %v1125 = vld [vmem:[#allocation2 + $0xf8] sm:$0xff]
      %v1126 = vld [vmem:[#allocation2 + $0x100] sm:$0xff]
      %v1127 = vld [vmem:[#allocation2 + $0x108] sm:$0xff]
      %v1128 = vld [vmem:[#allocation2 + $0x110] sm:$0xff]
      %v1129 = vld [vmem:[#allocation2 + $0x118] sm:$0xff]
      %v1130 = vadd.f32 %v1094, %v916
      %v1131 = vadd.f32 %v1095, %v921
      %v1132 = vadd.f32 %v1096, %v926
      %v1133 = vadd.f32 %v1097, %v931
      %v1134 = vadd.f32 %v1098, %v936
      %v1135 = vadd.f32 %v1099, %v941
      %v1136 = vadd.f32 %v1100, %v946
      %v1137 = vadd.f32 %v1101, %v951
      %v1138 = vadd.f32 %v1102, %v956
      %v1139 = vadd.f32 %v1103, %v961
      %v1140 = vadd.f32 %v1104, %v966
      %v1141 = vadd.f32 %v1105, %v971
      %v1142 = vadd.f32 %v1106, %v976
      %v1143 = vadd.f32 %v1107, %v981
      %v1144 = vadd.f32 %v1108, %v986
      %v1145 = vadd.f32 %v1109, %v991
      %v1146 = vadd.f32 %v1110, %v996
      %v1147 = vadd.f32 %v1111, %v1001
      %v1148 = vadd.f32 %v1112, %v1006
      %v1149 = vadd.f32 %v1113, %v1011
      %v1150 = vadd.f32 %v1114, %v1016
      %v1151 = vadd.f32 %v1115, %v1021
      %v1152 = vadd.f32 %v1116, %v1026
      %v1153 = vadd.f32 %v1117, %v1031
      %v1154 = vadd.f32 %v1118, %v1036
      %v1155 = vadd.f32 %v1119, %v1041
      %v1156 = vadd.f32 %v1120, %v1046
      %v1157 = vadd.f32 %v1121, %v1051
      %v1158 = vadd.f32 %v1122, %v1056
      %v1159 = vadd.f32 %v1123, %v1061
      %v1160 = vadd.f32 %v1124, %v1066
      %v1161 = vadd.f32 %v1125, %v1071
      %v1162 = vadd.f32 %v1126, %v1076
      %v1163 = vadd.f32 %v1127, %v1081
      %v1164 = vadd.f32 %v1128, %v1086
      %v1165 = vadd.f32 %v1129, %v1091
      %1166 = vst [vmem:[#allocation2] sm:$0xff] %v1130
      %1167 = vst [vmem:[#allocation2 + $0x8] sm:$0xff] %v1131
      %1168 = vst [vmem:[#allocation2 + $0x10] sm:$0xff] %v1132
      %1169 = vst [vmem:[#allocation2 + $0x18] sm:$0xff] %v1133
      %1170 = vst [vmem:[#allocation2 + $0x20] sm:$0xff] %v1134
      %1171 = vst [vmem:[#allocation2 + $0x28] sm:$0xff] %v1135
      %1172 = vst [vmem:[#allocation2 + $0x30] sm:$0xff] %v1136
      %1173 = vst [vmem:[#allocation2 + $0x38] sm:$0xff] %v1137
      %1174 = vst [vmem:[#allocation2 + $0x40] sm:$0xff] %v1138
      %1175 = vst [vmem:[#allocation2 + $0x48] sm:$0xff] %v1139
      %1176 = vst [vmem:[#allocation2 + $0x50] sm:$0xff] %v1140
      %1177 = vst [vmem:[#allocation2 + $0x58] sm:$0xff] %v1141
      %1178 = vst [vmem:[#allocation2 + $0x60] sm:$0xff] %v1142
      %1179 = vst [vmem:[#allocation2 + $0x68] sm:$0xff] %v1143
      %1180 = vst [vmem:[#allocation2 + $0x70] sm:$0xff] %v1144
      %1181 = vst [vmem:[#allocation2 + $0x78] sm:$0xff] %v1145
      %1182 = vst [vmem:[#allocation2 + $0x80] sm:$0xff] %v1146
      %1183 = vst [vmem:[#allocation2 + $0x88] sm:$0xff] %v1147
      %1184 = vst [vmem:[#allocation2 + $0x90] sm:$0xff] %v1148
      %1185 = vst [vmem:[#allocation2 + $0x98] sm:$0xff] %v1149
      %1186 = vst [vmem:[#allocation2 + $0xa0] sm:$0xff] %v1150
      %1187 = vst [vmem:[#allocation2 + $0xa8] sm:$0xff] %v1151
      %1188 = vst [vmem:[#allocation2 + $0xb0] sm:$0xff] %v1152
      %1189 = vst [vmem:[#allocation2 + $0xb8] sm:$0xff] %v1153
      %1190 = vst [vmem:[#allocation2 + $0xc0] sm:$0xff] %v1154
      %1191 = vst [vmem:[#allocation2 + $0xc8] sm:$0xff] %v1155
      %1192 = vst [vmem:[#allocation2 + $0xd0] sm:$0xff] %v1156
      %1193 = vst [vmem:[#allocation2 + $0xd8] sm:$0xff] %v1157
      %1194 = vst [vmem:[#allocation2 + $0xe0] sm:$0xff] %v1158
      %1195 = vst [vmem:[#allocation2 + $0xe8] sm:$0xff] %v1159
      %1196 = vst [vmem:[#allocation2 + $0xf0] sm:$0xff] %v1160
      %1197 = vst [vmem:[#allocation2 + $0xf8] sm:$0xff] %v1161
      %1198 = vst [vmem:[#allocation2 + $0x100] sm:$0xff] %v1162
      %1199 = vst [vmem:[#allocation2 + $0x108] sm:$0xff] %v1163
      %1200 = vst [vmem:[#allocation2 + $0x110] sm:$0xff] %v1164
      %1201 = vst [vmem:[#allocation2 + $0x118] sm:$0xff] %v1165
      %v1202 = vld [vmem:[%s257 + $0x2] sm:$0xff]
      %v1203 = vld [vmem:[%s257 + $0xa] sm:$0xff]
      %v1204 = vld [vmem:[%s257 + $0x12] sm:$0xff]
      %v1205 = vld [vmem:[%s257 + $0x1a] sm:$0xff]
      %v1206 = vld [vmem:[%s257 + $0x22] sm:$0xff]
      %v1207 = vld [vmem:[%s257 + $0x2a] sm:$0xff]
      %v1208 = vld [vmem:[%s257 + $0x32] sm:$0xff]
      %v1209 = vld [vmem:[%s257 + $0x3a] sm:$0xff]
      %v1210 = vld [vmem:[%s257 + $0x42] sm:$0xff]
      %v1211 = vld [vmem:[%s257 + $0x4a] sm:$0xff]
      %v1212 = vld [vmem:[%s257 + $0x52] sm:$0xff]
      %v1213 = vld [vmem:[%s257 + $0x5a] sm:$0xff]
      %v1214 = vld [vmem:[%s257 + $0x62] sm:$0xff]
      %v1215 = vld [vmem:[%s257 + $0x6a] sm:$0xff]
      %v1216 = vld [vmem:[%s257 + $0x72] sm:$0xff]
      %v1217 = vld [vmem:[%s257 + $0x7a] sm:$0xff]
      %v1218 = vld [vmem:[%s257 + $0x82] sm:$0xff]
      %v1219 = vld [vmem:[%s257 + $0x8a] sm:$0xff]
      %v1220 = vld [vmem:[%s257 + $0x92] sm:$0xff]
      %v1221 = vld [vmem:[%s257 + $0x9a] sm:$0xff]
      %v1222 = vld [vmem:[%s257 + $0xa2] sm:$0xff]
      %v1223 = vld [vmem:[%s257 + $0xaa] sm:$0xff]
      %v1224 = vld [vmem:[%s257 + $0xb2] sm:$0xff]
      %v1225 = vld [vmem:[%s257 + $0xba] sm:$0xff]
      %v1226 = vld [vmem:[%s257 + $0xc2] sm:$0xff]
      %v1227 = vld [vmem:[%s257 + $0xca] sm:$0xff]
      %v1228 = vld [vmem:[%s257 + $0xd2] sm:$0xff]
      %v1229 = vld [vmem:[%s257 + $0xda] sm:$0xff]
      %v1230 = vld [vmem:[%s257 + $0xe2] sm:$0xff]
      %v1231 = vld [vmem:[%s257 + $0xea] sm:$0xff]
      %v1232 = vld [vmem:[%s257 + $0xf2] sm:$0xff]
      %v1233 = vld [vmem:[%s257 + $0xfa] sm:$0xff]
      %v1234 = vld [vmem:[%s257 + $0x102] sm:$0xff]
      %v1235 = vld [vmem:[%s257 + $0x10a] sm:$0xff]
      %v1236 = vld [vmem:[%s257 + $0x112] sm:$0xff]
      %v1237 = vld [vmem:[%s257 + $0x11a] sm:$0xff]
      %s1238 = scalar_lea.vmem %s1, 8
      %v1239 = vld [vmem:[%s1238] sm:$0xf]
      %v1241 = vsel %vm306, %v1202, 0
      %v1244 = vsel %vm306, %v1203, 0
      %v1247 = vsel %vm306, %v1204, 0
      %v1250 = vsel %vm306, %v1205, 0
      %v1253 = vsel %vm306, %v1206, 0
      %v1256 = vsel %vm306, %v1207, 0
      %v1259 = vsel %vm306, %v1208, 0
      %v1262 = vsel %vm306, %v1209, 0
      %v1265 = vsel %vm306, %v1210, 0
      %v1268 = vsel %vm306, %v1211, 0
      %v1271 = vsel %vm306, %v1212, 0
      %v1274 = vsel %vm306, %v1213, 0
      %v1277 = vsel %vm306, %v1214, 0
      %v1280 = vsel %vm306, %v1215, 0
      %v1283 = vsel %vm306, %v1216, 0
      %v1286 = vsel %vm306, %v1217, 0
      %v1289 = vsel %vm306, %v1218, 0
      %v1292 = vsel %vm306, %v1219, 0
      %v1295 = vsel %vm306, %v1220, 0
      %v1298 = vsel %vm306, %v1221, 0
      %v1301 = vsel %vm306, %v1222, 0
      %v1304 = vsel %vm306, %v1223, 0
      %v1307 = vsel %vm306, %v1224, 0
      %v1310 = vsel %vm306, %v1225, 0
      %v1313 = vsel %vm306, %v1226, 0
      %v1316 = vsel %vm306, %v1227, 0
      %v1319 = vsel %vm306, %v1228, 0
      %v1322 = vsel %vm306, %v1229, 0
      %v1325 = vsel %vm306, %v1230, 0
      %v1328 = vsel %vm306, %v1231, 0
      %v1331 = vsel %vm306, %v1232, 0
      %v1334 = vsel %vm306, %v1233, 0
      %v1337 = vsel %vm306, %v1234, 0
      %v1340 = vsel %vm306, %v1235, 0
      %v1343 = vsel %vm306, %v1236, 0
      %v1346 = vsel %vm306, %v1237, 0
      %v1349 = vsel %vm415, %v1239, 0
      %1351 = vmatprep.subr.mxu0 0.0
      %1352 = vmatpush1.msra.mxu0 %v1349
      %1353 = vmatprep.subr.mxu0 0.0
      %1354 = vmatpush1.msra.mxu0 0.0
      %1355 = vmatprep.subr.mxu0 0.0
      %1356 = vmatpush1.msra.mxu0 0.0
      %1357 = vmatprep.subr.mxu0 0.0
      %1358 = vmatpush1.msra.mxu0 0.0
      %1359 = vmatprep.subr.mxu0 0.0
      %1360 = vmatpush1.msra.mxu0 0.0
      %1361 = vmatprep.subr.mxu0 0.0
      %1362 = vmatpush1.msra.mxu0 0.0
      %1363 = vmatprep.subr.mxu0 0.0
      %1364 = vmatpush1.msra.mxu0 0.0
      %1365 = vmatprep.subr.mxu0 0.0
      %1366 = vmatpush1.msra.mxu0 0.0
      %1367 = vmatprep.subr.mxu0 0.0
      %1368 = vmatpush1.msra.mxu0 0.0
      %1369 = vmatprep.subr.mxu0 0.0
      %1370 = vmatpush1.msra.mxu0 0.0
      %1371 = vmatprep.subr.mxu0 0.0
      %1372 = vmatpush1.msra.mxu0 0.0
      %1373 = vmatprep.subr.mxu0 0.0
      %1374 = vmatpush1.msra.mxu0 0.0
      %1375 = vmatprep.subr.mxu0 0.0
      %1376 = vmatpush1.msra.mxu0 0.0
      %1377 = vmatprep.subr.mxu0 0.0
      %1378 = vmatpush1.msra.mxu0 0.0
      %1379 = vmatprep.subr.mxu0 0.0
      %1380 = vmatpush1.msra.mxu0 0.0
      %1381 = vmatprep.subr.mxu0 0.0
      %1382 = vmatpush1.msra.mxu0 0.0
      %1383 = vmatprep.subr.mxu0 0.0
      %1384 = vmatpush1.msra.mxu0 0.0
      %1385 = vmatprep.subr.mxu0 0.0
      %1386 = vmatpush1.msra.mxu0 0.0
      %1387 = vmatprep.subr.mxu0 0.0
      %1388 = vmatpush1.msra.mxu0 0.0
      %1389 = vmatprep.subr.mxu0 0.0
      %1390 = vmatpush1.msra.mxu0 0.0
      %1391 = vmatprep.subr.mxu0 0.0
      %1392 = vmatpush1.msra.mxu0 0.0
      %1393 = vmatprep.subr.mxu0 0.0
      %1394 = vmatpush1.msra.mxu0 0.0
      %1395 = vmatprep.subr.mxu0 0.0
      %1396 = vmatpush1.msra.mxu0 0.0
      %1397 = vmatprep.subr.mxu0 0.0
      %1398 = vmatpush1.msra.mxu0 0.0
      %1399 = vmatprep.subr.mxu0 0.0
      %1400 = vmatpush1.msra.mxu0 0.0
      %1401 = vmatprep.subr.mxu0 0.0
      %1402 = vmatpush1.msra.mxu0 0.0
      %1403 = vmatprep.subr.mxu0 0.0
      %1404 = vmatpush1.msra.mxu0 0.0
      %1405 = vmatprep.subr.mxu0 0.0
      %1406 = vmatpush1.msra.mxu0 0.0
      %1407 = vmatprep.subr.mxu0 0.0
      %1408 = vmatpush1.msra.mxu0 0.0
      %1409 = vmatprep.subr.mxu0 0.0
      %1410 = vmatpush1.msra.mxu0 0.0
      %1411 = vmatprep.subr.mxu0 0.0
      %1412 = vmatpush1.msra.mxu0 0.0
      %1413 = vmatprep.subr.mxu0 0.0
      %1414 = vmatpush1.msra.mxu0 0.0
      %1415 = vmatprep.mubr.f32.mxu0 0.0
      %1416 = vmatmul.mubr.f32.gmra.mrb[0].mxu0 %v1241
      %v1417 = vpop.f32.mrb[0].mxu0
      %v1418 = vadd.f32 0.0, %v1417
      %v1419 = vpop.f32.mrb[0].mxu0
      %1420 = vmatprep.mubr.f32.mxu0 0.0
      %1421 = vmatmul.mubr.f32.gmra.mrb[0].mxu0 %v1244
      %v1422 = vpop.f32.mrb[0].mxu0
      %v1423 = vadd.f32 0.0, %v1422
      %v1424 = vpop.f32.mrb[0].mxu0
      %1425 = vmatprep.mubr.f32.mxu0 0.0
      %1426 = vmatmul.mubr.f32.gmra.mrb[0].mxu0 %v1247
      %v1427 = vpop.f32.mrb[0].mxu0
      %v1428 = vadd.f32 0.0, %v1427
      %v1429 = vpop.f32.mrb[0].mxu0
      %1430 = vmatprep.mubr.f32.mxu0 0.0
      %1431 = vmatmul.mubr.f32.gmra.mrb[0].mxu0 %v1250
      %v1432 = vpop.f32.mrb[0].mxu0
      %v1433 = vadd.f32 0.0, %v1432
      %v1434 = vpop.f32.mrb[0].mxu0
      %1435 = vmatprep.mubr.f32.mxu0 0.0
      %1436 = vmatmul.mubr.f32.gmra.mrb[0].mxu0 %v1253
      %v1437 = vpop.f32.mrb[0].mxu0
      %v1438 = vadd.f32 0.0, %v1437
      %v1439 = vpop.f32.mrb[0].mxu0
      %1440 = vmatprep.mubr.f32.mxu0 0.0
      %1441 = vmatmul.mubr.f32.gmra.mrb[0].mxu0 %v1256
      %v1442 = vpop.f32.mrb[0].mxu0
      %v1443 = vadd.f32 0.0, %v1442
      %v1444 = vpop.f32.mrb[0].mxu0
      %1445 = vmatprep.mubr.f32.mxu0 0.0
      %1446 = vmatmul.mubr.f32.gmra.mrb[0].mxu0 %v1259
      %v1447 = vpop.f32.mrb[0].mxu0
      %v1448 = vadd.f32 0.0, %v1447
      %v1449 = vpop.f32.mrb[0].mxu0
      %1450 = vmatprep.mubr.f32.mxu0 0.0
      %1451 = vmatmul.mubr.f32.gmra.mrb[0].mxu0 %v1262
      %v1452 = vpop.f32.mrb[0].mxu0
      %v1453 = vadd.f32 0.0, %v1452
      %v1454 = vpop.f32.mrb[0].mxu0
      %1455 = vmatprep.mubr.f32.mxu0 0.0
      %1456 = vmatmul.mubr.f32.gmra.mrb[0].mxu0 %v1265
      %v1457 = vpop.f32.mrb[0].mxu0
      %v1458 = vadd.f32 0.0, %v1457
      %v1459 = vpop.f32.mrb[0].mxu0
      %1460 = vmatprep.mubr.f32.mxu0 0.0
      %1461 = vmatmul.mubr.f32.gmra.mrb[0].mxu0 %v1268
      %v1462 = vpop.f32.mrb[0].mxu0
      %v1463 = vadd.f32 0.0, %v1462
      %v1464 = vpop.f32.mrb[0].mxu0
      %1465 = vmatprep.mubr.f32.mxu0 0.0
      %1466 = vmatmul.mubr.f32.gmra.mrb[0].mxu0 %v1271
      %v1467 = vpop.f32.mrb[0].mxu0
      %v1468 = vadd.f32 0.0, %v1467
      %v1469 = vpop.f32.mrb[0].mxu0
      %1470 = vmatprep.mubr.f32.mxu0 0.0
      %1471 = vmatmul.mubr.f32.gmra.mrb[0].mxu0 %v1274
      %v1472 = vpop.f32.mrb[0].mxu0
      %v1473 = vadd.f32 0.0, %v1472
      %v1474 = vpop.f32.mrb[0].mxu0
      %1475 = vmatprep.mubr.f32.mxu0 0.0
      %1476 = vmatmul.mubr.f32.gmra.mrb[0].mxu0 %v1277
      %v1477 = vpop.f32.mrb[0].mxu0
      %v1478 = vadd.f32 0.0, %v1477
      %v1479 = vpop.f32.mrb[0].mxu0
      %1480 = vmatprep.mubr.f32.mxu0 0.0
      %1481 = vmatmul.mubr.f32.gmra.mrb[0].mxu0 %v1280
      %v1482 = vpop.f32.mrb[0].mxu0
      %v1483 = vadd.f32 0.0, %v1482
      %v1484 = vpop.f32.mrb[0].mxu0
      %1485 = vmatprep.mubr.f32.mxu0 0.0
      %1486 = vmatmul.mubr.f32.gmra.mrb[0].mxu0 %v1283
      %v1487 = vpop.f32.mrb[0].mxu0
      %v1488 = vadd.f32 0.0, %v1487
      %v1489 = vpop.f32.mrb[0].mxu0
      %1490 = vmatprep.mubr.f32.mxu0 0.0
      %1491 = vmatmul.mubr.f32.gmra.mrb[0].mxu0 %v1286
      %v1492 = vpop.f32.mrb[0].mxu0
      %v1493 = vadd.f32 0.0, %v1492
      %v1494 = vpop.f32.mrb[0].mxu0
      %1495 = vmatprep.mubr.f32.mxu0 0.0
      %1496 = vmatmul.mubr.f32.gmra.mrb[0].mxu0 %v1289
      %v1497 = vpop.f32.mrb[0].mxu0
      %v1498 = vadd.f32 0.0, %v1497
      %v1499 = vpop.f32.mrb[0].mxu0
      %1500 = vmatprep.mubr.f32.mxu0 0.0
      %1501 = vmatmul.mubr.f32.gmra.mrb[0].mxu0 %v1292
      %v1502 = vpop.f32.mrb[0].mxu0
      %v1503 = vadd.f32 0.0, %v1502
      %v1504 = vpop.f32.mrb[0].mxu0
      %1505 = vmatprep.mubr.f32.mxu0 0.0
      %1506 = vmatmul.mubr.f32.gmra.mrb[0].mxu0 %v1295
      %v1507 = vpop.f32.mrb[0].mxu0
      %v1508 = vadd.f32 0.0, %v1507
      %v1509 = vpop.f32.mrb[0].mxu0
      %1510 = vmatprep.mubr.f32.mxu0 0.0
      %1511 = vmatmul.mubr.f32.gmra.mrb[0].mxu0 %v1298
      %v1512 = vpop.f32.mrb[0].mxu0
      %v1513 = vadd.f32 0.0, %v1512
      %v1514 = vpop.f32.mrb[0].mxu0
      %1515 = vmatprep.mubr.f32.mxu0 0.0
      %1516 = vmatmul.mubr.f32.gmra.mrb[0].mxu0 %v1301
      %v1517 = vpop.f32.mrb[0].mxu0
      %v1518 = vadd.f32 0.0, %v1517
      %v1519 = vpop.f32.mrb[0].mxu0
      %1520 = vmatprep.mubr.f32.mxu0 0.0
      %1521 = vmatmul.mubr.f32.gmra.mrb[0].mxu0 %v1304
      %v1522 = vpop.f32.mrb[0].mxu0
      %v1523 = vadd.f32 0.0, %v1522
      %v1524 = vpop.f32.mrb[0].mxu0
      %1525 = vmatprep.mubr.f32.mxu0 0.0
      %1526 = vmatmul.mubr.f32.gmra.mrb[0].mxu0 %v1307
      %v1527 = vpop.f32.mrb[0].mxu0
      %v1528 = vadd.f32 0.0, %v1527
      %v1529 = vpop.f32.mrb[0].mxu0
      %1530 = vmatprep.mubr.f32.mxu0 0.0
      %1531 = vmatmul.mubr.f32.gmra.mrb[0].mxu0 %v1310
      %v1532 = vpop.f32.mrb[0].mxu0
      %v1533 = vadd.f32 0.0, %v1532
      %v1534 = vpop.f32.mrb[0].mxu0
      %1535 = vmatprep.mubr.f32.mxu0 0.0
      %1536 = vmatmul.mubr.f32.gmra.mrb[0].mxu0 %v1313
      %v1537 = vpop.f32.mrb[0].mxu0
      %v1538 = vadd.f32 0.0, %v1537
      %v1539 = vpop.f32.mrb[0].mxu0
      %1540 = vmatprep.mubr.f32.mxu0 0.0
      %1541 = vmatmul.mubr.f32.gmra.mrb[0].mxu0 %v1316
      %v1542 = vpop.f32.mrb[0].mxu0
      %v1543 = vadd.f32 0.0, %v1542
      %v1544 = vpop.f32.mrb[0].mxu0
      %1545 = vmatprep.mubr.f32.mxu0 0.0
      %1546 = vmatmul.mubr.f32.gmra.mrb[0].mxu0 %v1319
      %v1547 = vpop.f32.mrb[0].mxu0
      %v1548 = vadd.f32 0.0, %v1547
      %v1549 = vpop.f32.mrb[0].mxu0
      %1550 = vmatprep.mubr.f32.mxu0 0.0
      %1551 = vmatmul.mubr.f32.gmra.mrb[0].mxu0 %v1322
      %v1552 = vpop.f32.mrb[0].mxu0
      %v1553 = vadd.f32 0.0, %v1552
      %v1554 = vpop.f32.mrb[0].mxu0
      %1555 = vmatprep.mubr.f32.mxu0 0.0
      %1556 = vmatmul.mubr.f32.gmra.mrb[0].mxu0 %v1325
      %v1557 = vpop.f32.mrb[0].mxu0
      %v1558 = vadd.f32 0.0, %v1557
      %v1559 = vpop.f32.mrb[0].mxu0
      %1560 = vmatprep.mubr.f32.mxu0 0.0
      %1561 = vmatmul.mubr.f32.gmra.mrb[0].mxu0 %v1328
      %v1562 = vpop.f32.mrb[0].mxu0
      %v1563 = vadd.f32 0.0, %v1562
      %v1564 = vpop.f32.mrb[0].mxu0
      %1565 = vmatprep.mubr.f32.mxu0 0.0
      %1566 = vmatmul.mubr.f32.gmra.mrb[0].mxu0 %v1331
      %v1567 = vpop.f32.mrb[0].mxu0
      %v1568 = vadd.f32 0.0, %v1567
      %v1569 = vpop.f32.mrb[0].mxu0
      %1570 = vmatprep.mubr.f32.mxu0 0.0
      %1571 = vmatmul.mubr.f32.gmra.mrb[0].mxu0 %v1334
      %v1572 = vpop.f32.mrb[0].mxu0
      %v1573 = vadd.f32 0.0, %v1572
      %v1574 = vpop.f32.mrb[0].mxu0
      %1575 = vmatprep.mubr.f32.mxu0 0.0
      %1576 = vmatmul.mubr.f32.gmra.mrb[0].mxu0 %v1337
      %v1577 = vpop.f32.mrb[0].mxu0
      %v1578 = vadd.f32 0.0, %v1577
      %v1579 = vpop.f32.mrb[0].mxu0
      %1580 = vmatprep.mubr.f32.mxu0 0.0
      %1581 = vmatmul.mubr.f32.gmra.mrb[0].mxu0 %v1340
      %v1582 = vpop.f32.mrb[0].mxu0
      %v1583 = vadd.f32 0.0, %v1582
      %v1584 = vpop.f32.mrb[0].mxu0
      %1585 = vmatprep.mubr.f32.mxu0 0.0
      %1586 = vmatmul.mubr.f32.gmra.mrb[0].mxu0 %v1343
      %v1587 = vpop.f32.mrb[0].mxu0
      %v1588 = vadd.f32 0.0, %v1587
      %v1589 = vpop.f32.mrb[0].mxu0
      %1590 = vmatprep.mubr.f32.mxu0 0.0
      %1591 = vmatmul.mubr.f32.gmra.mrb[0].mxu0 %v1346
      %v1592 = vpop.f32.mrb[0].mxu0
      %v1593 = vadd.f32 0.0, %v1592
      %v1594 = vpop.f32.mrb[0].mxu0
      %1595 = vdwg.mxu0
      %v1596 = vld [vmem:[#allocation2] sm:$0xff]
      %v1597 = vld [vmem:[#allocation2 + $0x8] sm:$0xff]
      %v1598 = vld [vmem:[#allocation2 + $0x10] sm:$0xff]
      %v1599 = vld [vmem:[#allocation2 + $0x18] sm:$0xff]
      %v1600 = vld [vmem:[#allocation2 + $0x20] sm:$0xff]
      %v1601 = vld [vmem:[#allocation2 + $0x28] sm:$0xff]
      %v1602 = vld [vmem:[#allocation2 + $0x30] sm:$0xff]
      %v1603 = vld [vmem:[#allocation2 + $0x38] sm:$0xff]
      %v1604 = vld [vmem:[#allocation2 + $0x40] sm:$0xff]
      %v1605 = vld [vmem:[#allocation2 + $0x48] sm:$0xff]
      %v1606 = vld [vmem:[#allocation2 + $0x50] sm:$0xff]
      %v1607 = vld [vmem:[#allocation2 + $0x58] sm:$0xff]
      %v1608 = vld [vmem:[#allocation2 + $0x60] sm:$0xff]
      %v1609 = vld [vmem:[#allocation2 + $0x68] sm:$0xff]
      %v1610 = vld [vmem:[#allocation2 + $0x70] sm:$0xff]
      %v1611 = vld [vmem:[#allocation2 + $0x78] sm:$0xff]
      %v1612 = vld [vmem:[#allocation2 + $0x80] sm:$0xff]
      %v1613 = vld [vmem:[#allocation2 + $0x88] sm:$0xff]
      %v1614 = vld [vmem:[#allocation2 + $0x90] sm:$0xff]
      %v1615 = vld [vmem:[#allocation2 + $0x98] sm:$0xff]
      %v1616 = vld [vmem:[#allocation2 + $0xa0] sm:$0xff]
      %v1617 = vld [vmem:[#allocation2 + $0xa8] sm:$0xff]
      %v1618 = vld [vmem:[#allocation2 + $0xb0] sm:$0xff]
      %v1619 = vld [vmem:[#allocation2 + $0xb8] sm:$0xff]
      %v1620 = vld [vmem:[#allocation2 + $0xc0] sm:$0xff]
      %v1621 = vld [vmem:[#allocation2 + $0xc8] sm:$0xff]
      %v1622 = vld [vmem:[#allocation2 + $0xd0] sm:$0xff]
      %v1623 = vld [vmem:[#allocation2 + $0xd8] sm:$0xff]
      %v1624 = vld [vmem:[#allocation2 + $0xe0] sm:$0xff]
      %v1625 = vld [vmem:[#allocation2 + $0xe8] sm:$0xff]
      %v1626 = vld [vmem:[#allocation2 + $0xf0] sm:$0xff]
      %v1627 = vld [vmem:[#allocation2 + $0xf8] sm:$0xff]
      %v1628 = vld [vmem:[#allocation2 + $0x100] sm:$0xff]
      %v1629 = vld [vmem:[#allocation2 + $0x108] sm:$0xff]
      %v1630 = vld [vmem:[#allocation2 + $0x110] sm:$0xff]
      %v1631 = vld [vmem:[#allocation2 + $0x118] sm:$0xff]
      %v1632 = vadd.f32 %v1596, %v1418
      %v1633 = vadd.f32 %v1597, %v1423
      %v1634 = vadd.f32 %v1598, %v1428
      %v1635 = vadd.f32 %v1599, %v1433
      %v1636 = vadd.f32 %v1600, %v1438
      %v1637 = vadd.f32 %v1601, %v1443
      %v1638 = vadd.f32 %v1602, %v1448
      %v1639 = vadd.f32 %v1603, %v1453
      %v1640 = vadd.f32 %v1604, %v1458
      %v1641 = vadd.f32 %v1605, %v1463
      %v1642 = vadd.f32 %v1606, %v1468
      %v1643 = vadd.f32 %v1607, %v1473
      %v1644 = vadd.f32 %v1608, %v1478
      %v1645 = vadd.f32 %v1609, %v1483
      %v1646 = vadd.f32 %v1610, %v1488
      %v1647 = vadd.f32 %v1611, %v1493
      %v1648 = vadd.f32 %v1612, %v1498
      %v1649 = vadd.f32 %v1613, %v1503
      %v1650 = vadd.f32 %v1614, %v1508
      %v1651 = vadd.f32 %v1615, %v1513
      %v1652 = vadd.f32 %v1616, %v1518
      %v1653 = vadd.f32 %v1617, %v1523
      %v1654 = vadd.f32 %v1618, %v1528
      %v1655 = vadd.f32 %v1619, %v1533
      %v1656 = vadd.f32 %v1620, %v1538
      %v1657 = vadd.f32 %v1621, %v1543
      %v1658 = vadd.f32 %v1622, %v1548
      %v1659 = vadd.f32 %v1623, %v1553
      %v1660 = vadd.f32 %v1624, %v1558
      %v1661 = vadd.f32 %v1625, %v1563
      %v1662 = vadd.f32 %v1626, %v1568
      %v1663 = vadd.f32 %v1627, %v1573
      %v1664 = vadd.f32 %v1628, %v1578
      %v1665 = vadd.f32 %v1629, %v1583
      %v1666 = vadd.f32 %v1630, %v1588
      %v1667 = vadd.f32 %v1631, %v1593
      %1668 = vst [vmem:[#allocation2] sm:$0xff] %v1632
      %1669 = vst [vmem:[#allocation2 + $0x8] sm:$0xff] %v1633
      %1670 = vst [vmem:[#allocation2 + $0x10] sm:$0xff] %v1634
      %1671 = vst [vmem:[#allocation2 + $0x18] sm:$0xff] %v1635
      %1672 = vst [vmem:[#allocation2 + $0x20] sm:$0xff] %v1636
      %1673 = vst [vmem:[#allocation2 + $0x28] sm:$0xff] %v1637
      %1674 = vst [vmem:[#allocation2 + $0x30] sm:$0xff] %v1638
      %1675 = vst [vmem:[#allocation2 + $0x38] sm:$0xff] %v1639
      %1676 = vst [vmem:[#allocation2 + $0x40] sm:$0xff] %v1640
      %1677 = vst [vmem:[#allocation2 + $0x48] sm:$0xff] %v1641
      %1678 = vst [vmem:[#allocation2 + $0x50] sm:$0xff] %v1642
      %1679 = vst [vmem:[#allocation2 + $0x58] sm:$0xff] %v1643
      %1680 = vst [vmem:[#allocation2 + $0x60] sm:$0xff] %v1644
      %1681 = vst [vmem:[#allocation2 + $0x68] sm:$0xff] %v1645
      %1682 = vst [vmem:[#allocation2 + $0x70] sm:$0xff] %v1646
      %1683 = vst [vmem:[#allocation2 + $0x78] sm:$0xff] %v1647
      %1684 = vst [vmem:[#allocation2 + $0x80] sm:$0xff] %v1648
      %1685 = vst [vmem:[#allocation2 + $0x88] sm:$0xff] %v1649
      %1686 = vst [vmem:[#allocation2 + $0x90] sm:$0xff] %v1650
      %1687 = vst [vmem:[#allocation2 + $0x98] sm:$0xff] %v1651
      %1688 = vst [vmem:[#allocation2 + $0xa0] sm:$0xff] %v1652
      %1689 = vst [vmem:[#allocation2 + $0xa8] sm:$0xff] %v1653
      %1690 = vst [vmem:[#allocation2 + $0xb0] sm:$0xff] %v1654
      %1691 = vst [vmem:[#allocation2 + $0xb8] sm:$0xff] %v1655
      %1692 = vst [vmem:[#allocation2 + $0xc0] sm:$0xff] %v1656
      %1693 = vst [vmem:[#allocation2 + $0xc8] sm:$0xff] %v1657
      %1694 = vst [vmem:[#allocation2 + $0xd0] sm:$0xff] %v1658
      %1695 = vst [vmem:[#allocation2 + $0xd8] sm:$0xff] %v1659
      %1696 = vst [vmem:[#allocation2 + $0xe0] sm:$0xff] %v1660
      %1697 = vst [vmem:[#allocation2 + $0xe8] sm:$0xff] %v1661
      %1698 = vst [vmem:[#allocation2 + $0xf0] sm:$0xff] %v1662
      %1699 = vst [vmem:[#allocation2 + $0xf8] sm:$0xff] %v1663
      %1700 = vst [vmem:[#allocation2 + $0x100] sm:$0xff] %v1664
      %1701 = vst [vmem:[#allocation2 + $0x108] sm:$0xff] %v1665
      %1702 = vst [vmem:[#allocation2 + $0x110] sm:$0xff] %v1666
      %1703 = vst [vmem:[#allocation2 + $0x118] sm:$0xff] %v1667
      %v1704 = vld [vmem:[%s257 + $0x12] sm:$0xff]
      %v1705 = vld [vmem:[%s257 + $0x1a] sm:$0xff]
      %v1706 = vld [vmem:[%s257 + $0x22] sm:$0xff]
      %v1707 = vld [vmem:[%s257 + $0x2a] sm:$0xff]
      %v1708 = vld [vmem:[%s257 + $0x32] sm:$0xff]
      %v1709 = vld [vmem:[%s257 + $0x3a] sm:$0xff]
      %v1710 = vld [vmem:[%s257 + $0x42] sm:$0xff]
      %v1711 = vld [vmem:[%s257 + $0x4a] sm:$0xff]
      %v1712 = vld [vmem:[%s257 + $0x52] sm:$0xff]
      %v1713 = vld [vmem:[%s257 + $0x5a] sm:$0xff]
      %v1714 = vld [vmem:[%s257 + $0x62] sm:$0xff]
      %v1715 = vld [vmem:[%s257 + $0x6a] sm:$0xff]
      %v1716 = vld [vmem:[%s257 + $0x72] sm:$0xff]
      %v1717 = vld [vmem:[%s257 + $0x7a] sm:$0xff]
      %v1718 = vld [vmem:[%s257 + $0x82] sm:$0xff]
      %v1719 = vld [vmem:[%s257 + $0x8a] sm:$0xff]
      %v1720 = vld [vmem:[%s257 + $0x92] sm:$0xff]
      %v1721 = vld [vmem:[%s257 + $0x9a] sm:$0xff]
      %v1722 = vld [vmem:[%s257 + $0xa2] sm:$0xff]
      %v1723 = vld [vmem:[%s257 + $0xaa] sm:$0xff]
      %v1724 = vld [vmem:[%s257 + $0xb2] sm:$0xff]
      %v1725 = vld [vmem:[%s257 + $0xba] sm:$0xff]
      %v1726 = vld [vmem:[%s257 + $0xc2] sm:$0xff]
      %v1727 = vld [vmem:[%s257 + $0xca] sm:$0xff]
      %v1728 = vld [vmem:[%s257 + $0xd2] sm:$0xff]
      %v1729 = vld [vmem:[%s257 + $0xda] sm:$0xff]
      %v1730 = vld [vmem:[%s257 + $0xe2] sm:$0xff]
      %v1731 = vld [vmem:[%s257 + $0xea] sm:$0xff]
      %v1732 = vld [vmem:[%s257 + $0xf2] sm:$0xff]
      %v1733 = vld [vmem:[%s257 + $0xfa] sm:$0xff]
      %v1734 = vld [vmem:[%s257 + $0x102] sm:$0xff]
      %v1735 = vld [vmem:[%s257 + $0x10a] sm:$0xff]
      %v1736 = vld [vmem:[%s257 + $0x112] sm:$0xff]
      %v1737 = vld [vmem:[%s257 + $0x11a] sm:$0xff]
      %v1738 = vld [vmem:[%s257 + $0x122] sm:$0xff]
      %v1739 = vld [vmem:[%s257 + $0x12a] sm:$0xff]
      %s1740 = scalar_lea.vmem %s1, 12
      %v1741 = vld [vmem:[%s1740] sm:$0xf]
      %v1743 = vsel %vm306, %v1704, 0
      %v1746 = vsel %vm306, %v1705, 0
      %v1749 = vsel %vm306, %v1706, 0
      %v1752 = vsel %vm306, %v1707, 0
      %v1755 = vsel %vm306, %v1708, 0
      %v1758 = vsel %vm306, %v1709, 0
      %v1761 = vsel %vm306, %v1710, 0
      %v1764 = vsel %vm306, %v1711, 0
      %v1767 = vsel %vm306, %v1712, 0
      %v1770 = vsel %vm306, %v1713, 0
      %v1773 = vsel %vm306, %v1714, 0
      %v1776 = vsel %vm306, %v1715, 0
      %v1779 = vsel %vm306, %v1716, 0
      %v1782 = vsel %vm306, %v1717, 0
      %v1785 = vsel %vm306, %v1718, 0
      %v1788 = vsel %vm306, %v1719, 0
      %v1791 = vsel %vm306, %v1720, 0
      %v1794 = vsel %vm306, %v1721, 0
      %v1797 = vsel %vm306, %v1722, 0
      %v1800 = vsel %vm306, %v1723, 0
      %v1803 = vsel %vm306, %v1724, 0
      %v1806 = vsel %vm306, %v1725, 0
      %v1809 = vsel %vm306, %v1726, 0
      %v1812 = vsel %vm306, %v1727, 0
      %v1815 = vsel %vm306, %v1728, 0
      %v1818 = vsel %vm306, %v1729, 0
      %v1821 = vsel %vm306, %v1730, 0
      %v1824 = vsel %vm306, %v1731, 0
      %v1827 = vsel %vm306, %v1732, 0
      %v1830 = vsel %vm306, %v1733, 0
      %v1833 = vsel %vm306, %v1734, 0
      %v1836 = vsel %vm306, %v1735, 0
      %v1839 = vsel %vm306, %v1736, 0
      %v1842 = vsel %vm306, %v1737, 0
      %v1845 = vsel %vm306, %v1738, 0
      %v1848 = vsel %vm306, %v1739, 0
      %v1851 = vsel %vm415, %v1741, 0
      %1853 = vmatprep.subr.mxu0 0.0
      %1854 = vmatpush1.msra.mxu0 %v1851
      %1855 = vmatprep.subr.mxu0 0.0
      %1856 = vmatpush1.msra.mxu0 0.0
      %1857 = vmatprep.subr.mxu0 0.0
      %1858 = vmatpush1.msra.mxu0 0.0
      %1859 = vmatprep.subr.mxu0 0.0
      %1860 = vmatpush1.msra.mxu0 0.0
      %1861 = vmatprep.subr.mxu0 0.0
      %1862 = vmatpush1.msra.mxu0 0.0
      %1863 = vmatprep.subr.mxu0 0.0
      %1864 = vmatpush1.msra.mxu0 0.0
      %1865 = vmatprep.subr.mxu0 0.0
      %1866 = vmatpush1.msra.mxu0 0.0
      %1867 = vmatprep.subr.mxu0 0.0
      %1868 = vmatpush1.msra.mxu0 0.0
      %1869 = vmatprep.subr.mxu0 0.0
      %1870 = vmatpush1.msra.mxu0 0.0
      %1871 = vmatprep.subr.mxu0 0.0
      %1872 = vmatpush1.msra.mxu0 0.0
      %1873 = vmatprep.subr.mxu0 0.0
      %1874 = vmatpush1.msra.mxu0 0.0
      %1875 = vmatprep.subr.mxu0 0.0
      %1876 = vmatpush1.msra.mxu0 0.0
      %1877 = vmatprep.subr.mxu0 0.0
      %1878 = vmatpush1.msra.mxu0 0.0
      %1879 = vmatprep.subr.mxu0 0.0
      %1880 = vmatpush1.msra.mxu0 0.0
      %1881 = vmatprep.subr.mxu0 0.0
      %1882 = vmatpush1.msra.mxu0 0.0
      %1883 = vmatprep.subr.mxu0 0.0
      %1884 = vmatpush1.msra.mxu0 0.0
      %1885 = vmatprep.subr.mxu0 0.0
      %1886 = vmatpush1.msra.mxu0 0.0
      %1887 = vmatprep.subr.mxu0 0.0
      %1888 = vmatpush1.msra.mxu0 0.0
      %1889 = vmatprep.subr.mxu0 0.0
      %1890 = vmatpush1.msra.mxu0 0.0
      %1891 = vmatprep.subr.mxu0 0.0
      %1892 = vmatpush1.msra.mxu0 0.0
      %1893 = vmatprep.subr.mxu0 0.0
      %1894 = vmatpush1.msra.mxu0 0.0
      %1895 = vmatprep.subr.mxu0 0.0
      %1896 = vmatpush1.msra.mxu0 0.0
      %1897 = vmatprep.subr.mxu0 0.0
      %1898 = vmatpush1.msra.mxu0 0.0
      %1899 = vmatprep.subr.mxu0 0.0
      %1900 = vmatpush1.msra.mxu0 0.0
      %1901 = vmatprep.subr.mxu0 0.0
      %1902 = vmatpush1.msra.mxu0 0.0
      %1903 = vmatprep.subr.mxu0 0.0
      %1904 = vmatpush1.msra.mxu0 0.0
      %1905 = vmatprep.subr.mxu0 0.0
      %1906 = vmatpush1.msra.mxu0 0.0
      %1907 = vmatprep.subr.mxu0 0.0
      %1908 = vmatpush1.msra.mxu0 0.0
      %1909 = vmatprep.subr.mxu0 0.0
      %1910 = vmatpush1.msra.mxu0 0.0
      %1911 = vmatprep.subr.mxu0 0.0
      %1912 = vmatpush1.msra.mxu0 0.0
      %1913 = vmatprep.subr.mxu0 0.0
      %1914 = vmatpush1.msra.mxu0 0.0
      %1915 = vmatprep.subr.mxu0 0.0
      %1916 = vmatpush1.msra.mxu0 0.0
      %1917 = vmatprep.mubr.f32.mxu0 0.0
      %1918 = vmatmul.mubr.f32.gmra.mrb[0].mxu0 %v1743
      %v1919 = vpop.f32.mrb[0].mxu0
      %v1920 = vadd.f32 0.0, %v1919
      %v1921 = vpop.f32.mrb[0].mxu0
      %1922 = vmatprep.mubr.f32.mxu0 0.0
      %1923 = vmatmul.mubr.f32.gmra.mrb[0].mxu0 %v1746
      %v1924 = vpop.f32.mrb[0].mxu0
      %v1925 = vadd.f32 0.0, %v1924
      %v1926 = vpop.f32.mrb[0].mxu0
      %1927 = vmatprep.mubr.f32.mxu0 0.0
      %1928 = vmatmul.mubr.f32.gmra.mrb[0].mxu0 %v1749
      %v1929 = vpop.f32.mrb[0].mxu0
      %v1930 = vadd.f32 0.0, %v1929
      %v1931 = vpop.f32.mrb[0].mxu0
      %1932 = vmatprep.mubr.f32.mxu0 0.0
      %1933 = vmatmul.mubr.f32.gmra.mrb[0].mxu0 %v1752
      %v1934 = vpop.f32.mrb[0].mxu0
      %v1935 = vadd.f32 0.0, %v1934
      %v1936 = vpop.f32.mrb[0].mxu0
      %1937 = vmatprep.mubr.f32.mxu0 0.0
      %1938 = vmatmul.mubr.f32.gmra.mrb[0].mxu0 %v1755
      %v1939 = vpop.f32.mrb[0].mxu0
      %v1940 = vadd.f32 0.0, %v1939
      %v1941 = vpop.f32.mrb[0].mxu0
      %1942 = vmatprep.mubr.f32.mxu0 0.0
      %1943 = vmatmul.mubr.f32.gmra.mrb[0].mxu0 %v1758
      %v1944 = vpop.f32.mrb[0].mxu0
      %v1945 = vadd.f32 0.0, %v1944
      %v1946 = vpop.f32.mrb[0].mxu0
      %1947 = vmatprep.mubr.f32.mxu0 0.0
      %1948 = vmatmul.mubr.f32.gmra.mrb[0].mxu0 %v1761
      %v1949 = vpop.f32.mrb[0].mxu0
      %v1950 = vadd.f32 0.0, %v1949
      %v1951 = vpop.f32.mrb[0].mxu0
      %1952 = vmatprep.mubr.f32.mxu0 0.0
      %1953 = vmatmul.mubr.f32.gmra.mrb[0].mxu0 %v1764
      %v1954 = vpop.f32.mrb[0].mxu0
      %v1955 = vadd.f32 0.0, %v1954
      %v1956 = vpop.f32.mrb[0].mxu0
      %1957 = vmatprep.mubr.f32.mxu0 0.0
      %1958 = vmatmul.mubr.f32.gmra.mrb[0].mxu0 %v1767
      %v1959 = vpop.f32.mrb[0].mxu0
      %v1960 = vadd.f32 0.0, %v1959
      %v1961 = vpop.f32.mrb[0].mxu0
      %1962 = vmatprep.mubr.f32.mxu0 0.0
      %1963 = vmatmul.mubr.f32.gmra.mrb[0].mxu0 %v1770
      %v1964 = vpop.f32.mrb[0].mxu0
      %v1965 = vadd.f32 0.0, %v1964
      %v1966 = vpop.f32.mrb[0].mxu0
      %1967 = vmatprep.mubr.f32.mxu0 0.0
      %1968 = vmatmul.mubr.f32.gmra.mrb[0].mxu0 %v1773
      %v1969 = vpop.f32.mrb[0].mxu0
      %v1970 = vadd.f32 0.0, %v1969
      %v1971 = vpop.f32.mrb[0].mxu0
      %1972 = vmatprep.mubr.f32.mxu0 0.0
      %1973 = vmatmul.mubr.f32.gmra.mrb[0].mxu0 %v1776
      %v1974 = vpop.f32.mrb[0].mxu0
      %v1975 = vadd.f32 0.0, %v1974
      %v1976 = vpop.f32.mrb[0].mxu0
      %1977 = vmatprep.mubr.f32.mxu0 0.0
      %1978 = vmatmul.mubr.f32.gmra.mrb[0].mxu0 %v1779
      %v1979 = vpop.f32.mrb[0].mxu0
      %v1980 = vadd.f32 0.0, %v1979
      %v1981 = vpop.f32.mrb[0].mxu0
      %1982 = vmatprep.mubr.f32.mxu0 0.0
      %1983 = vmatmul.mubr.f32.gmra.mrb[0].mxu0 %v1782
      %v1984 = vpop.f32.mrb[0].mxu0
      %v1985 = vadd.f32 0.0, %v1984
      %v1986 = vpop.f32.mrb[0].mxu0
      %1987 = vmatprep.mubr.f32.mxu0 0.0
      %1988 = vmatmul.mubr.f32.gmra.mrb[0].mxu0 %v1785
      %v1989 = vpop.f32.mrb[0].mxu0
      %v1990 = vadd.f32 0.0, %v1989
      %v1991 = vpop.f32.mrb[0].mxu0
      %1992 = vmatprep.mubr.f32.mxu0 0.0
      %1993 = vmatmul.mubr.f32.gmra.mrb[0].mxu0 %v1788
      %v1994 = vpop.f32.mrb[0].mxu0
      %v1995 = vadd.f32 0.0, %v1994
      %v1996 = vpop.f32.mrb[0].mxu0
      %1997 = vmatprep.mubr.f32.mxu0 0.0
      %1998 = vmatmul.mubr.f32.gmra.mrb[0].mxu0 %v1791
      %v1999 = vpop.f32.mrb[0].mxu0
      %v2000 = vadd.f32 0.0, %v1999
      %v2001 = vpop.f32.mrb[0].mxu0
      %2002 = vmatprep.mubr.f32.mxu0 0.0
      %2003 = vmatmul.mubr.f32.gmra.mrb[0].mxu0 %v1794
      %v2004 = vpop.f32.mrb[0].mxu0
      %v2005 = vadd.f32 0.0, %v2004
      %v2006 = vpop.f32.mrb[0].mxu0
      %2007 = vmatprep.mubr.f32.mxu0 0.0
      %2008 = vmatmul.mubr.f32.gmra.mrb[0].mxu0 %v1797
      %v2009 = vpop.f32.mrb[0].mxu0
      %v2010 = vadd.f32 0.0, %v2009
      %v2011 = vpop.f32.mrb[0].mxu0
      %2012 = vmatprep.mubr.f32.mxu0 0.0
      %2013 = vmatmul.mubr.f32.gmra.mrb[0].mxu0 %v1800
      %v2014 = vpop.f32.mrb[0].mxu0
      %v2015 = vadd.f32 0.0, %v2014
      %v2016 = vpop.f32.mrb[0].mxu0
      %2017 = vmatprep.mubr.f32.mxu0 0.0
      %2018 = vmatmul.mubr.f32.gmra.mrb[0].mxu0 %v1803
      %v2019 = vpop.f32.mrb[0].mxu0
      %v2020 = vadd.f32 0.0, %v2019
      %v2021 = vpop.f32.mrb[0].mxu0
      %2022 = vmatprep.mubr.f32.mxu0 0.0
      %2023 = vmatmul.mubr.f32.gmra.mrb[0].mxu0 %v1806
      %v2024 = vpop.f32.mrb[0].mxu0
      %v2025 = vadd.f32 0.0, %v2024
      %v2026 = vpop.f32.mrb[0].mxu0
      %2027 = vmatprep.mubr.f32.mxu0 0.0
      %2028 = vmatmul.mubr.f32.gmra.mrb[0].mxu0 %v1809
      %v2029 = vpop.f32.mrb[0].mxu0
      %v2030 = vadd.f32 0.0, %v2029
      %v2031 = vpop.f32.mrb[0].mxu0
      %2032 = vmatprep.mubr.f32.mxu0 0.0
      %2033 = vmatmul.mubr.f32.gmra.mrb[0].mxu0 %v1812
      %v2034 = vpop.f32.mrb[0].mxu0
      %v2035 = vadd.f32 0.0, %v2034
      %v2036 = vpop.f32.mrb[0].mxu0
      %2037 = vmatprep.mubr.f32.mxu0 0.0
      %2038 = vmatmul.mubr.f32.gmra.mrb[0].mxu0 %v1815
      %v2039 = vpop.f32.mrb[0].mxu0
      %v2040 = vadd.f32 0.0, %v2039
      %v2041 = vpop.f32.mrb[0].mxu0
      %2042 = vmatprep.mubr.f32.mxu0 0.0
      %2043 = vmatmul.mubr.f32.gmra.mrb[0].mxu0 %v1818
      %v2044 = vpop.f32.mrb[0].mxu0
      %v2045 = vadd.f32 0.0, %v2044
      %v2046 = vpop.f32.mrb[0].mxu0
      %2047 = vmatprep.mubr.f32.mxu0 0.0
      %2048 = vmatmul.mubr.f32.gmra.mrb[0].mxu0 %v1821
      %v2049 = vpop.f32.mrb[0].mxu0
      %v2050 = vadd.f32 0.0, %v2049
      %v2051 = vpop.f32.mrb[0].mxu0
      %2052 = vmatprep.mubr.f32.mxu0 0.0
      %2053 = vmatmul.mubr.f32.gmra.mrb[0].mxu0 %v1824
      %v2054 = vpop.f32.mrb[0].mxu0
      %v2055 = vadd.f32 0.0, %v2054
      %v2056 = vpop.f32.mrb[0].mxu0
      %2057 = vmatprep.mubr.f32.mxu0 0.0
      %2058 = vmatmul.mubr.f32.gmra.mrb[0].mxu0 %v1827
      %v2059 = vpop.f32.mrb[0].mxu0
      %v2060 = vadd.f32 0.0, %v2059
      %v2061 = vpop.f32.mrb[0].mxu0
      %2062 = vmatprep.mubr.f32.mxu0 0.0
      %2063 = vmatmul.mubr.f32.gmra.mrb[0].mxu0 %v1830
      %v2064 = vpop.f32.mrb[0].mxu0
      %v2065 = vadd.f32 0.0, %v2064
      %v2066 = vpop.f32.mrb[0].mxu0
      %2067 = vmatprep.mubr.f32.mxu0 0.0
      %2068 = vmatmul.mubr.f32.gmra.mrb[0].mxu0 %v1833
      %v2069 = vpop.f32.mrb[0].mxu0
      %v2070 = vadd.f32 0.0, %v2069
      %v2071 = vpop.f32.mrb[0].mxu0
      %2072 = vmatprep.mubr.f32.mxu0 0.0
      %2073 = vmatmul.mubr.f32.gmra.mrb[0].mxu0 %v1836
      %v2074 = vpop.f32.mrb[0].mxu0
      %v2075 = vadd.f32 0.0, %v2074
      %v2076 = vpop.f32.mrb[0].mxu0
      %2077 = vmatprep.mubr.f32.mxu0 0.0
      %2078 = vmatmul.mubr.f32.gmra.mrb[0].mxu0 %v1839
      %v2079 = vpop.f32.mrb[0].mxu0
      %v2080 = vadd.f32 0.0, %v2079
      %v2081 = vpop.f32.mrb[0].mxu0
      %2082 = vmatprep.mubr.f32.mxu0 0.0
      %2083 = vmatmul.mubr.f32.gmra.mrb[0].mxu0 %v1842
      %v2084 = vpop.f32.mrb[0].mxu0
      %v2085 = vadd.f32 0.0, %v2084
      %v2086 = vpop.f32.mrb[0].mxu0
      %2087 = vmatprep.mubr.f32.mxu0 0.0
      %2088 = vmatmul.mubr.f32.gmra.mrb[0].mxu0 %v1845
      %v2089 = vpop.f32.mrb[0].mxu0
      %v2090 = vadd.f32 0.0, %v2089
      %v2091 = vpop.f32.mrb[0].mxu0
      %2092 = vmatprep.mubr.f32.mxu0 0.0
      %2093 = vmatmul.mubr.f32.gmra.mrb[0].mxu0 %v1848
      %v2094 = vpop.f32.mrb[0].mxu0
      %v2095 = vadd.f32 0.0, %v2094
      %v2096 = vpop.f32.mrb[0].mxu0
      %2097 = vdwg.mxu0
      %v2098 = vld [vmem:[#allocation2] sm:$0xff]
      %v2099 = vld [vmem:[#allocation2 + $0x8] sm:$0xff]
      %v2100 = vld [vmem:[#allocation2 + $0x10] sm:$0xff]
      %v2101 = vld [vmem:[#allocation2 + $0x18] sm:$0xff]
      %v2102 = vld [vmem:[#allocation2 + $0x20] sm:$0xff]
      %v2103 = vld [vmem:[#allocation2 + $0x28] sm:$0xff]
      %v2104 = vld [vmem:[#allocation2 + $0x30] sm:$0xff]
      %v2105 = vld [vmem:[#allocation2 + $0x38] sm:$0xff]
      %v2106 = vld [vmem:[#allocation2 + $0x40] sm:$0xff]
      %v2107 = vld [vmem:[#allocation2 + $0x48] sm:$0xff]
      %v2108 = vld [vmem:[#allocation2 + $0x50] sm:$0xff]
      %v2109 = vld [vmem:[#allocation2 + $0x58] sm:$0xff]
      %v2110 = vld [vmem:[#allocation2 + $0x60] sm:$0xff]
      %v2111 = vld [vmem:[#allocation2 + $0x68] sm:$0xff]
      %v2112 = vld [vmem:[#allocation2 + $0x70] sm:$0xff]
      %v2113 = vld [vmem:[#allocation2 + $0x78] sm:$0xff]
      %v2114 = vld [vmem:[#allocation2 + $0x80] sm:$0xff]
      %v2115 = vld [vmem:[#allocation2 + $0x88] sm:$0xff]
      %v2116 = vld [vmem:[#allocation2 + $0x90] sm:$0xff]
      %v2117 = vld [vmem:[#allocation2 + $0x98] sm:$0xff]
      %v2118 = vld [vmem:[#allocation2 + $0xa0] sm:$0xff]
      %v2119 = vld [vmem:[#allocation2 + $0xa8] sm:$0xff]
      %v2120 = vld [vmem:[#allocation2 + $0xb0] sm:$0xff]
      %v2121 = vld [vmem:[#allocation2 + $0xb8] sm:$0xff]
      %v2122 = vld [vmem:[#allocation2 + $0xc0] sm:$0xff]
      %v2123 = vld [vmem:[#allocation2 + $0xc8] sm:$0xff]
      %v2124 = vld [vmem:[#allocation2 + $0xd0] sm:$0xff]
      %v2125 = vld [vmem:[#allocation2 + $0xd8] sm:$0xff]
      %v2126 = vld [vmem:[#allocation2 + $0xe0] sm:$0xff]
      %v2127 = vld [vmem:[#allocation2 + $0xe8] sm:$0xff]
      %v2128 = vld [vmem:[#allocation2 + $0xf0] sm:$0xff]
      %v2129 = vld [vmem:[#allocation2 + $0xf8] sm:$0xff]
      %v2130 = vld [vmem:[#allocation2 + $0x100] sm:$0xff]
      %v2131 = vld [vmem:[#allocation2 + $0x108] sm:$0xff]
      %v2132 = vld [vmem:[#allocation2 + $0x110] sm:$0xff]
      %v2133 = vld [vmem:[#allocation2 + $0x118] sm:$0xff]
      %v2134 = vadd.f32 %v2098, %v1920
      %v2135 = vadd.f32 %v2099, %v1925
      %v2136 = vadd.f32 %v2100, %v1930
      %v2137 = vadd.f32 %v2101, %v1935
      %v2138 = vadd.f32 %v2102, %v1940
      %v2139 = vadd.f32 %v2103, %v1945
      %v2140 = vadd.f32 %v2104, %v1950
      %v2141 = vadd.f32 %v2105, %v1955
      %v2142 = vadd.f32 %v2106, %v1960
      %v2143 = vadd.f32 %v2107, %v1965
      %v2144 = vadd.f32 %v2108, %v1970
      %v2145 = vadd.f32 %v2109, %v1975
      %v2146 = vadd.f32 %v2110, %v1980
      %v2147 = vadd.f32 %v2111, %v1985
      %v2148 = vadd.f32 %v2112, %v1990
      %v2149 = vadd.f32 %v2113, %v1995
      %v2150 = vadd.f32 %v2114, %v2000
      %v2151 = vadd.f32 %v2115, %v2005
      %v2152 = vadd.f32 %v2116, %v2010
      %v2153 = vadd.f32 %v2117, %v2015
      %v2154 = vadd.f32 %v2118, %v2020
      %v2155 = vadd.f32 %v2119, %v2025
      %v2156 = vadd.f32 %v2120, %v2030
      %v2157 = vadd.f32 %v2121, %v2035
      %v2158 = vadd.f32 %v2122, %v2040
      %v2159 = vadd.f32 %v2123, %v2045
      %v2160 = vadd.f32 %v2124, %v2050
      %v2161 = vadd.f32 %v2125, %v2055
      %v2162 = vadd.f32 %v2126, %v2060
      %v2163 = vadd.f32 %v2127, %v2065
      %v2164 = vadd.f32 %v2128, %v2070
      %v2165 = vadd.f32 %v2129, %v2075
      %v2166 = vadd.f32 %v2130, %v2080
      %v2167 = vadd.f32 %v2131, %v2085
      %v2168 = vadd.f32 %v2132, %v2090
      %v2169 = vadd.f32 %v2133, %v2095
      %2170 = vst [vmem:[#allocation2] sm:$0xff] %v2134
      %2171 = vst [vmem:[#allocation2 + $0x8] sm:$0xff] %v2135
      %2172 = vst [vmem:[#allocation2 + $0x10] sm:$0xff] %v2136
      %2173 = vst [vmem:[#allocation2 + $0x18] sm:$0xff] %v2137
      %2174 = vst [vmem:[#allocation2 + $0x20] sm:$0xff] %v2138
      %2175 = vst [vmem:[#allocation2 + $0x28] sm:$0xff] %v2139
      %2176 = vst [vmem:[#allocation2 + $0x30] sm:$0xff] %v2140
      %2177 = vst [vmem:[#allocation2 + $0x38] sm:$0xff] %v2141
      %2178 = vst [vmem:[#allocation2 + $0x40] sm:$0xff] %v2142
      %2179 = vst [vmem:[#allocation2 + $0x48] sm:$0xff] %v2143
      %2180 = vst [vmem:[#allocation2 + $0x50] sm:$0xff] %v2144
      %2181 = vst [vmem:[#allocation2 + $0x58] sm:$0xff] %v2145
      %2182 = vst [vmem:[#allocation2 + $0x60] sm:$0xff] %v2146
      %2183 = vst [vmem:[#allocation2 + $0x68] sm:$0xff] %v2147
      %2184 = vst [vmem:[#allocation2 + $0x70] sm:$0xff] %v2148
      %2185 = vst [vmem:[#allocation2 + $0x78] sm:$0xff] %v2149
      %2186 = vst [vmem:[#allocation2 + $0x80] sm:$0xff] %v2150
      %2187 = vst [vmem:[#allocation2 + $0x88] sm:$0xff] %v2151
      %2188 = vst [vmem:[#allocation2 + $0x90] sm:$0xff] %v2152
      %2189 = vst [vmem:[#allocation2 + $0x98] sm:$0xff] %v2153
      %2190 = vst [vmem:[#allocation2 + $0xa0] sm:$0xff] %v2154
      %2191 = vst [vmem:[#allocation2 + $0xa8] sm:$0xff] %v2155
      %2192 = vst [vmem:[#allocation2 + $0xb0] sm:$0xff] %v2156
      %2193 = vst [vmem:[#allocation2 + $0xb8] sm:$0xff] %v2157
      %2194 = vst [vmem:[#allocation2 + $0xc0] sm:$0xff] %v2158
      %2195 = vst [vmem:[#allocation2 + $0xc8] sm:$0xff] %v2159
      %2196 = vst [vmem:[#allocation2 + $0xd0] sm:$0xff] %v2160
      %2197 = vst [vmem:[#allocation2 + $0xd8] sm:$0xff] %v2161
      %2198 = vst [vmem:[#allocation2 + $0xe0] sm:$0xff] %v2162
      %2199 = vst [vmem:[#allocation2 + $0xe8] sm:$0xff] %v2163
      %2200 = vst [vmem:[#allocation2 + $0xf0] sm:$0xff] %v2164
      %2201 = vst [vmem:[#allocation2 + $0xf8] sm:$0xff] %v2165
      %2202 = vst [vmem:[#allocation2 + $0x100] sm:$0xff] %v2166
      %2203 = vst [vmem:[#allocation2 + $0x108] sm:$0xff] %v2167
      %2204 = vst [vmem:[#allocation2 + $0x110] sm:$0xff] %v2168
      %2205 = vst [vmem:[#allocation2 + $0x118] sm:$0xff] %v2169
      %v2206 = vld [vmem:[%s257 + $0x13] sm:$0xff]
      %v2207 = vld [vmem:[%s257 + $0x1b] sm:$0xff]
      %v2208 = vld [vmem:[%s257 + $0x23] sm:$0xff]
      %v2209 = vld [vmem:[%s257 + $0x2b] sm:$0xff]
      %v2210 = vld [vmem:[%s257 + $0x33] sm:$0xff]
      %v2211 = vld [vmem:[%s257 + $0x3b] sm:$0xff]
      %v2212 = vld [vmem:[%s257 + $0x43] sm:$0xff]
      %v2213 = vld [vmem:[%s257 + $0x4b] sm:$0xff]
      %v2214 = vld [vmem:[%s257 + $0x53] sm:$0xff]
      %v2215 = vld [vmem:[%s257 + $0x5b] sm:$0xff]
      %v2216 = vld [vmem:[%s257 + $0x63] sm:$0xff]
      %v2217 = vld [vmem:[%s257 + $0x6b] sm:$0xff]
      %v2218 = vld [vmem:[%s257 + $0x73] sm:$0xff]
      %v2219 = vld [vmem:[%s257 + $0x7b] sm:$0xff]
      %v2220 = vld [vmem:[%s257 + $0x83] sm:$0xff]
      %v2221 = vld [vmem:[%s257 + $0x8b] sm:$0xff]
      %v2222 = vld [vmem:[%s257 + $0x93] sm:$0xff]
      %v2223 = vld [vmem:[%s257 + $0x9b] sm:$0xff]
      %v2224 = vld [vmem:[%s257 + $0xa3] sm:$0xff]
      %v2225 = vld [vmem:[%s257 + $0xab] sm:$0xff]
      %v2226 = vld [vmem:[%s257 + $0xb3] sm:$0xff]
      %v2227 = vld [vmem:[%s257 + $0xbb] sm:$0xff]
      %v2228 = vld [vmem:[%s257 + $0xc3] sm:$0xff]
      %v2229 = vld [vmem:[%s257 + $0xcb] sm:$0xff]
      %v2230 = vld [vmem:[%s257 + $0xd3] sm:$0xff]
      %v2231 = vld [vmem:[%s257 + $0xdb] sm:$0xff]
      %v2232 = vld [vmem:[%s257 + $0xe3] sm:$0xff]
      %v2233 = vld [vmem:[%s257 + $0xeb] sm:$0xff]
      %v2234 = vld [vmem:[%s257 + $0xf3] sm:$0xff]
      %v2235 = vld [vmem:[%s257 + $0xfb] sm:$0xff]
      %v2236 = vld [vmem:[%s257 + $0x103] sm:$0xff]
      %v2237 = vld [vmem:[%s257 + $0x10b] sm:$0xff]
      %v2238 = vld [vmem:[%s257 + $0x113] sm:$0xff]
      %v2239 = vld [vmem:[%s257 + $0x11b] sm:$0xff]
      %v2240 = vld [vmem:[%s257 + $0x123] sm:$0xff]
      %v2241 = vld [vmem:[%s257 + $0x12b] sm:$0xff]
      %s2242 = scalar_lea.vmem %s1, 16
      %v2243 = vld [vmem:[%s2242] sm:$0xf]
      %v2245 = vsel %vm306, %v2206, 0
      %v2248 = vsel %vm306, %v2207, 0
      %v2251 = vsel %vm306, %v2208, 0
      %v2254 = vsel %vm306, %v2209, 0
      %v2257 = vsel %vm306, %v2210, 0
      %v2260 = vsel %vm306, %v2211, 0
      %v2263 = vsel %vm306, %v2212, 0
      %v2266 = vsel %vm306, %v2213, 0
      %v2269 = vsel %vm306, %v2214, 0
      %v2272 = vsel %vm306, %v2215, 0
      %v2275 = vsel %vm306, %v2216, 0
      %v2278 = vsel %vm306, %v2217, 0
      %v2281 = vsel %vm306, %v2218, 0
      %v2284 = vsel %vm306, %v2219, 0
      %v2287 = vsel %vm306, %v2220, 0
      %v2290 = vsel %vm306, %v2221, 0
      %v2293 = vsel %vm306, %v2222, 0
      %v2296 = vsel %vm306, %v2223, 0
      %v2299 = vsel %vm306, %v2224, 0
      %v2302 = vsel %vm306, %v2225, 0
      %v2305 = vsel %vm306, %v2226, 0
      %v2308 = vsel %vm306, %v2227, 0
      %v2311 = vsel %vm306, %v2228, 0
      %v2314 = vsel %vm306, %v2229, 0
      %v2317 = vsel %vm306, %v2230, 0
      %v2320 = vsel %vm306, %v2231, 0
      %v2323 = vsel %vm306, %v2232, 0
      %v2326 = vsel %vm306, %v2233, 0
      %v2329 = vsel %vm306, %v2234, 0
      %v2332 = vsel %vm306, %v2235, 0
      %v2335 = vsel %vm306, %v2236, 0
      %v2338 = vsel %vm306, %v2237, 0
      %v2341 = vsel %vm306, %v2238, 0
      %v2344 = vsel %vm306, %v2239, 0
      %v2347 = vsel %vm306, %v2240, 0
      %v2350 = vsel %vm306, %v2241, 0
      %v2353 = vsel %vm415, %v2243, 0
      %2355 = vmatprep.subr.mxu0 0.0
      %2356 = vmatpush1.msra.mxu0 %v2353
      %2357 = vmatprep.subr.mxu0 0.0
      %2358 = vmatpush1.msra.mxu0 0.0
      %2359 = vmatprep.subr.mxu0 0.0
      %2360 = vmatpush1.msra.mxu0 0.0
      %2361 = vmatprep.subr.mxu0 0.0
      %2362 = vmatpush1.msra.mxu0 0.0
      %2363 = vmatprep.subr.mxu0 0.0
      %2364 = vmatpush1.msra.mxu0 0.0
      %2365 = vmatprep.subr.mxu0 0.0
      %2366 = vmatpush1.msra.mxu0 0.0
      %2367 = vmatprep.subr.mxu0 0.0
      %2368 = vmatpush1.msra.mxu0 0.0
      %2369 = vmatprep.subr.mxu0 0.0
      %2370 = vmatpush1.msra.mxu0 0.0
      %2371 = vmatprep.subr.mxu0 0.0
      %2372 = vmatpush1.msra.mxu0 0.0
      %2373 = vmatprep.subr.mxu0 0.0
      %2374 = vmatpush1.msra.mxu0 0.0
      %2375 = vmatprep.subr.mxu0 0.0
      %2376 = vmatpush1.msra.mxu0 0.0
      %2377 = vmatprep.subr.mxu0 0.0
      %2378 = vmatpush1.msra.mxu0 0.0
      %2379 = vmatprep.subr.mxu0 0.0
      %2380 = vmatpush1.msra.mxu0 0.0
      %2381 = vmatprep.subr.mxu0 0.0
      %2382 = vmatpush1.msra.mxu0 0.0
      %2383 = vmatprep.subr.mxu0 0.0
      %2384 = vmatpush1.msra.mxu0 0.0
      %2385 = vmatprep.subr.mxu0 0.0
      %2386 = vmatpush1.msra.mxu0 0.0
      %2387 = vmatprep.subr.mxu0 0.0
      %2388 = vmatpush1.msra.mxu0 0.0
      %2389 = vmatprep.subr.mxu0 0.0
      %2390 = vmatpush1.msra.mxu0 0.0
      %2391 = vmatprep.subr.mxu0 0.0
      %2392 = vmatpush1.msra.mxu0 0.0
      %2393 = vmatprep.subr.mxu0 0.0
      %2394 = vmatpush1.msra.mxu0 0.0
      %2395 = vmatprep.subr.mxu0 0.0
      %2396 = vmatpush1.msra.mxu0 0.0
      %2397 = vmatprep.subr.mxu0 0.0
      %2398 = vmatpush1.msra.mxu0 0.0
      %2399 = vmatprep.subr.mxu0 0.0
      %2400 = vmatpush1.msra.mxu0 0.0
      %2401 = vmatprep.subr.mxu0 0.0
      %2402 = vmatpush1.msra.mxu0 0.0
      %2403 = vmatprep.subr.mxu0 0.0
      %2404 = vmatpush1.msra.mxu0 0.0
      %2405 = vmatprep.subr.mxu0 0.0
      %2406 = vmatpush1.msra.mxu0 0.0
      %2407 = vmatprep.subr.mxu0 0.0
      %2408 = vmatpush1.msra.mxu0 0.0
      %2409 = vmatprep.subr.mxu0 0.0
      %2410 = vmatpush1.msra.mxu0 0.0
      %2411 = vmatprep.subr.mxu0 0.0
      %2412 = vmatpush1.msra.mxu0 0.0
      %2413 = vmatprep.subr.mxu0 0.0
      %2414 = vmatpush1.msra.mxu0 0.0
      %2415 = vmatprep.subr.mxu0 0.0
      %2416 = vmatpush1.msra.mxu0 0.0
      %2417 = vmatprep.subr.mxu0 0.0
      %2418 = vmatpush1.msra.mxu0 0.0
      %2419 = vmatprep.mubr.f32.mxu0 0.0
      %2420 = vmatmul.mubr.f32.gmra.mrb[0].mxu0 %v2245
      %v2421 = vpop.f32.mrb[0].mxu0
      %v2422 = vadd.f32 0.0, %v2421
      %v2423 = vpop.f32.mrb[0].mxu0
      %2424 = vmatprep.mubr.f32.mxu0 0.0
      %2425 = vmatmul.mubr.f32.gmra.mrb[0].mxu0 %v2248
      %v2426 = vpop.f32.mrb[0].mxu0
      %v2427 = vadd.f32 0.0, %v2426
      %v2428 = vpop.f32.mrb[0].mxu0
      %2429 = vmatprep.mubr.f32.mxu0 0.0
      %2430 = vmatmul.mubr.f32.gmra.mrb[0].mxu0 %v2251
      %v2431 = vpop.f32.mrb[0].mxu0
      %v2432 = vadd.f32 0.0, %v2431
      %v2433 = vpop.f32.mrb[0].mxu0
      %2434 = vmatprep.mubr.f32.mxu0 0.0
      %2435 = vmatmul.mubr.f32.gmra.mrb[0].mxu0 %v2254
      %v2436 = vpop.f32.mrb[0].mxu0
      %v2437 = vadd.f32 0.0, %v2436
      %v2438 = vpop.f32.mrb[0].mxu0
      %2439 = vmatprep.mubr.f32.mxu0 0.0
      %2440 = vmatmul.mubr.f32.gmra.mrb[0].mxu0 %v2257
      %v2441 = vpop.f32.mrb[0].mxu0
      %v2442 = vadd.f32 0.0, %v2441
      %v2443 = vpop.f32.mrb[0].mxu0
      %2444 = vmatprep.mubr.f32.mxu0 0.0
      %2445 = vmatmul.mubr.f32.gmra.mrb[0].mxu0 %v2260
      %v2446 = vpop.f32.mrb[0].mxu0
      %v2447 = vadd.f32 0.0, %v2446
      %v2448 = vpop.f32.mrb[0].mxu0
      %2449 = vmatprep.mubr.f32.mxu0 0.0
      %2450 = vmatmul.mubr.f32.gmra.mrb[0].mxu0 %v2263
      %v2451 = vpop.f32.mrb[0].mxu0
      %v2452 = vadd.f32 0.0, %v2451
      %v2453 = vpop.f32.mrb[0].mxu0
      %2454 = vmatprep.mubr.f32.mxu0 0.0
      %2455 = vmatmul.mubr.f32.gmra.mrb[0].mxu0 %v2266
      %v2456 = vpop.f32.mrb[0].mxu0
      %v2457 = vadd.f32 0.0, %v2456
      %v2458 = vpop.f32.mrb[0].mxu0
      %2459 = vmatprep.mubr.f32.mxu0 0.0
      %2460 = vmatmul.mubr.f32.gmra.mrb[0].mxu0 %v2269
      %v2461 = vpop.f32.mrb[0].mxu0
      %v2462 = vadd.f32 0.0, %v2461
      %v2463 = vpop.f32.mrb[0].mxu0
      %2464 = vmatprep.mubr.f32.mxu0 0.0
      %2465 = vmatmul.mubr.f32.gmra.mrb[0].mxu0 %v2272
      %v2466 = vpop.f32.mrb[0].mxu0
      %v2467 = vadd.f32 0.0, %v2466
      %v2468 = vpop.f32.mrb[0].mxu0
      %2469 = vmatprep.mubr.f32.mxu0 0.0
      %2470 = vmatmul.mubr.f32.gmra.mrb[0].mxu0 %v2275
      %v2471 = vpop.f32.mrb[0].mxu0
      %v2472 = vadd.f32 0.0, %v2471
      %v2473 = vpop.f32.mrb[0].mxu0
      %2474 = vmatprep.mubr.f32.mxu0 0.0
      %2475 = vmatmul.mubr.f32.gmra.mrb[0].mxu0 %v2278
      %v2476 = vpop.f32.mrb[0].mxu0
      %v2477 = vadd.f32 0.0, %v2476
      %v2478 = vpop.f32.mrb[0].mxu0
      %2479 = vmatprep.mubr.f32.mxu0 0.0
      %2480 = vmatmul.mubr.f32.gmra.mrb[0].mxu0 %v2281
      %v2481 = vpop.f32.mrb[0].mxu0
      %v2482 = vadd.f32 0.0, %v2481
      %v2483 = vpop.f32.mrb[0].mxu0
      %2484 = vmatprep.mubr.f32.mxu0 0.0
      %2485 = vmatmul.mubr.f32.gmra.mrb[0].mxu0 %v2284
      %v2486 = vpop.f32.mrb[0].mxu0
      %v2487 = vadd.f32 0.0, %v2486
      %v2488 = vpop.f32.mrb[0].mxu0
      %2489 = vmatprep.mubr.f32.mxu0 0.0
      %2490 = vmatmul.mubr.f32.gmra.mrb[0].mxu0 %v2287
      %v2491 = vpop.f32.mrb[0].mxu0
      %v2492 = vadd.f32 0.0, %v2491
      %v2493 = vpop.f32.mrb[0].mxu0
      %2494 = vmatprep.mubr.f32.mxu0 0.0
      %2495 = vmatmul.mubr.f32.gmra.mrb[0].mxu0 %v2290
      %v2496 = vpop.f32.mrb[0].mxu0
      %v2497 = vadd.f32 0.0, %v2496
      %v2498 = vpop.f32.mrb[0].mxu0
      %2499 = vmatprep.mubr.f32.mxu0 0.0
      %2500 = vmatmul.mubr.f32.gmra.mrb[0].mxu0 %v2293
      %v2501 = vpop.f32.mrb[0].mxu0
      %v2502 = vadd.f32 0.0, %v2501
      %v2503 = vpop.f32.mrb[0].mxu0
      %2504 = vmatprep.mubr.f32.mxu0 0.0
      %2505 = vmatmul.mubr.f32.gmra.mrb[0].mxu0 %v2296
      %v2506 = vpop.f32.mrb[0].mxu0
      %v2507 = vadd.f32 0.0, %v2506
      %v2508 = vpop.f32.mrb[0].mxu0
      %2509 = vmatprep.mubr.f32.mxu0 0.0
      %2510 = vmatmul.mubr.f32.gmra.mrb[0].mxu0 %v2299
      %v2511 = vpop.f32.mrb[0].mxu0
      %v2512 = vadd.f32 0.0, %v2511
      %v2513 = vpop.f32.mrb[0].mxu0
      %2514 = vmatprep.mubr.f32.mxu0 0.0
      %2515 = vmatmul.mubr.f32.gmra.mrb[0].mxu0 %v2302
      %v2516 = vpop.f32.mrb[0].mxu0
      %v2517 = vadd.f32 0.0, %v2516
      %v2518 = vpop.f32.mrb[0].mxu0
      %2519 = vmatprep.mubr.f32.mxu0 0.0
      %2520 = vmatmul.mubr.f32.gmra.mrb[0].mxu0 %v2305
      %v2521 = vpop.f32.mrb[0].mxu0
      %v2522 = vadd.f32 0.0, %v2521
      %v2523 = vpop.f32.mrb[0].mxu0
      %2524 = vmatprep.mubr.f32.mxu0 0.0
      %2525 = vmatmul.mubr.f32.gmra.mrb[0].mxu0 %v2308
      %v2526 = vpop.f32.mrb[0].mxu0
      %v2527 = vadd.f32 0.0, %v2526
      %v2528 = vpop.f32.mrb[0].mxu0
      %2529 = vmatprep.mubr.f32.mxu0 0.0
      %2530 = vmatmul.mubr.f32.gmra.mrb[0].mxu0 %v2311
      %v2531 = vpop.f32.mrb[0].mxu0
      %v2532 = vadd.f32 0.0, %v2531
      %v2533 = vpop.f32.mrb[0].mxu0
      %2534 = vmatprep.mubr.f32.mxu0 0.0
      %2535 = vmatmul.mubr.f32.gmra.mrb[0].mxu0 %v2314
      %v2536 = vpop.f32.mrb[0].mxu0
      %v2537 = vadd.f32 0.0, %v2536
      %v2538 = vpop.f32.mrb[0].mxu0
      %2539 = vmatprep.mubr.f32.mxu0 0.0
      %2540 = vmatmul.mubr.f32.gmra.mrb[0].mxu0 %v2317
      %v2541 = vpop.f32.mrb[0].mxu0
      %v2542 = vadd.f32 0.0, %v2541
      %v2543 = vpop.f32.mrb[0].mxu0
      %2544 = vmatprep.mubr.f32.mxu0 0.0
      %2545 = vmatmul.mubr.f32.gmra.mrb[0].mxu0 %v2320
      %v2546 = vpop.f32.mrb[0].mxu0
      %v2547 = vadd.f32 0.0, %v2546
      %v2548 = vpop.f32.mrb[0].mxu0
      %2549 = vmatprep.mubr.f32.mxu0 0.0
      %2550 = vmatmul.mubr.f32.gmra.mrb[0].mxu0 %v2323
      %v2551 = vpop.f32.mrb[0].mxu0
      %v2552 = vadd.f32 0.0, %v2551
      %v2553 = vpop.f32.mrb[0].mxu0
      %2554 = vmatprep.mubr.f32.mxu0 0.0
      %2555 = vmatmul.mubr.f32.gmra.mrb[0].mxu0 %v2326
      %v2556 = vpop.f32.mrb[0].mxu0
      %v2557 = vadd.f32 0.0, %v2556
      %v2558 = vpop.f32.mrb[0].mxu0
      %2559 = vmatprep.mubr.f32.mxu0 0.0
      %2560 = vmatmul.mubr.f32.gmra.mrb[0].mxu0 %v2329
      %v2561 = vpop.f32.mrb[0].mxu0
      %v2562 = vadd.f32 0.0, %v2561
      %v2563 = vpop.f32.mrb[0].mxu0
      %2564 = vmatprep.mubr.f32.mxu0 0.0
      %2565 = vmatmul.mubr.f32.gmra.mrb[0].mxu0 %v2332
      %v2566 = vpop.f32.mrb[0].mxu0
      %v2567 = vadd.f32 0.0, %v2566
      %v2568 = vpop.f32.mrb[0].mxu0
      %2569 = vmatprep.mubr.f32.mxu0 0.0
      %2570 = vmatmul.mubr.f32.gmra.mrb[0].mxu0 %v2335
      %v2571 = vpop.f32.mrb[0].mxu0
      %v2572 = vadd.f32 0.0, %v2571
      %v2573 = vpop.f32.mrb[0].mxu0
      %2574 = vmatprep.mubr.f32.mxu0 0.0
      %2575 = vmatmul.mubr.f32.gmra.mrb[0].mxu0 %v2338
      %v2576 = vpop.f32.mrb[0].mxu0
      %v2577 = vadd.f32 0.0, %v2576
      %v2578 = vpop.f32.mrb[0].mxu0
      %2579 = vmatprep.mubr.f32.mxu0 0.0
      %2580 = vmatmul.mubr.f32.gmra.mrb[0].mxu0 %v2341
      %v2581 = vpop.f32.mrb[0].mxu0
      %v2582 = vadd.f32 0.0, %v2581
      %v2583 = vpop.f32.mrb[0].mxu0
      %2584 = vmatprep.mubr.f32.mxu0 0.0
      %2585 = vmatmul.mubr.f32.gmra.mrb[0].mxu0 %v2344
      %v2586 = vpop.f32.mrb[0].mxu0
      %v2587 = vadd.f32 0.0, %v2586
      %v2588 = vpop.f32.mrb[0].mxu0
      %2589 = vmatprep.mubr.f32.mxu0 0.0
      %2590 = vmatmul.mubr.f32.gmra.mrb[0].mxu0 %v2347
      %v2591 = vpop.f32.mrb[0].mxu0
      %v2592 = vadd.f32 0.0, %v2591
      %v2593 = vpop.f32.mrb[0].mxu0
      %2594 = vmatprep.mubr.f32.mxu0 0.0
      %2595 = vmatmul.mubr.f32.gmra.mrb[0].mxu0 %v2350
      %v2596 = vpop.f32.mrb[0].mxu0
      %v2597 = vadd.f32 0.0, %v2596
      %v2598 = vpop.f32.mrb[0].mxu0
      %2599 = vdwg.mxu0
      %v2600 = vld [vmem:[#allocation2] sm:$0xff]
      %v2601 = vld [vmem:[#allocation2 + $0x8] sm:$0xff]
      %v2602 = vld [vmem:[#allocation2 + $0x10] sm:$0xff]
      %v2603 = vld [vmem:[#allocation2 + $0x18] sm:$0xff]
      %v2604 = vld [vmem:[#allocation2 + $0x20] sm:$0xff]
      %v2605 = vld [vmem:[#allocation2 + $0x28] sm:$0xff]
      %v2606 = vld [vmem:[#allocation2 + $0x30] sm:$0xff]
      %v2607 = vld [vmem:[#allocation2 + $0x38] sm:$0xff]
      %v2608 = vld [vmem:[#allocation2 + $0x40] sm:$0xff]
      %v2609 = vld [vmem:[#allocation2 + $0x48] sm:$0xff]
      %v2610 = vld [vmem:[#allocation2 + $0x50] sm:$0xff]
      %v2611 = vld [vmem:[#allocation2 + $0x58] sm:$0xff]
      %v2612 = vld [vmem:[#allocation2 + $0x60] sm:$0xff]
      %v2613 = vld [vmem:[#allocation2 + $0x68] sm:$0xff]
      %v2614 = vld [vmem:[#allocation2 + $0x70] sm:$0xff]
      %v2615 = vld [vmem:[#allocation2 + $0x78] sm:$0xff]
      %v2616 = vld [vmem:[#allocation2 + $0x80] sm:$0xff]
      %v2617 = vld [vmem:[#allocation2 + $0x88] sm:$0xff]
      %v2618 = vld [vmem:[#allocation2 + $0x90] sm:$0xff]
      %v2619 = vld [vmem:[#allocation2 + $0x98] sm:$0xff]
      %v2620 = vld [vmem:[#allocation2 + $0xa0] sm:$0xff]
      %v2621 = vld [vmem:[#allocation2 + $0xa8] sm:$0xff]
      %v2622 = vld [vmem:[#allocation2 + $0xb0] sm:$0xff]
      %v2623 = vld [vmem:[#allocation2 + $0xb8] sm:$0xff]
      %v2624 = vld [vmem:[#allocation2 + $0xc0] sm:$0xff]
      %v2625 = vld [vmem:[#allocation2 + $0xc8] sm:$0xff]
      %v2626 = vld [vmem:[#allocation2 + $0xd0] sm:$0xff]
      %v2627 = vld [vmem:[#allocation2 + $0xd8] sm:$0xff]
      %v2628 = vld [vmem:[#allocation2 + $0xe0] sm:$0xff]
      %v2629 = vld [vmem:[#allocation2 + $0xe8] sm:$0xff]
      %v2630 = vld [vmem:[#allocation2 + $0xf0] sm:$0xff]
      %v2631 = vld [vmem:[#allocation2 + $0xf8] sm:$0xff]
      %v2632 = vld [vmem:[#allocation2 + $0x100] sm:$0xff]
      %v2633 = vld [vmem:[#allocation2 + $0x108] sm:$0xff]
      %v2634 = vld [vmem:[#allocation2 + $0x110] sm:$0xff]
      %v2635 = vld [vmem:[#allocation2 + $0x118] sm:$0xff]
      %v2636 = vadd.f32 %v2600, %v2422
      %v2637 = vadd.f32 %v2601, %v2427
      %v2638 = vadd.f32 %v2602, %v2432
      %v2639 = vadd.f32 %v2603, %v2437
      %v2640 = vadd.f32 %v2604, %v2442
      %v2641 = vadd.f32 %v2605, %v2447
      %v2642 = vadd.f32 %v2606, %v2452
      %v2643 = vadd.f32 %v2607, %v2457
      %v2644 = vadd.f32 %v2608, %v2462
      %v2645 = vadd.f32 %v2609, %v2467
      %v2646 = vadd.f32 %v2610, %v2472
      %v2647 = vadd.f32 %v2611, %v2477
      %v2648 = vadd.f32 %v2612, %v2482
      %v2649 = vadd.f32 %v2613, %v2487
      %v2650 = vadd.f32 %v2614, %v2492
      %v2651 = vadd.f32 %v2615, %v2497
      %v2652 = vadd.f32 %v2616, %v2502
      %v2653 = vadd.f32 %v2617, %v2507
      %v2654 = vadd.f32 %v2618, %v2512
      %v2655 = vadd.f32 %v2619, %v2517
      %v2656 = vadd.f32 %v2620, %v2522
      %v2657 = vadd.f32 %v2621, %v2527
      %v2658 = vadd.f32 %v2622, %v2532
      %v2659 = vadd.f32 %v2623, %v2537
      %v2660 = vadd.f32 %v2624, %v2542
      %v2661 = vadd.f32 %v2625, %v2547
      %v2662 = vadd.f32 %v2626, %v2552
      %v2663 = vadd.f32 %v2627, %v2557
      %v2664 = vadd.f32 %v2628, %v2562
      %v2665 = vadd.f32 %v2629, %v2567
      %v2666 = vadd.f32 %v2630, %v2572
      %v2667 = vadd.f32 %v2631, %v2577
      %v2668 = vadd.f32 %v2632, %v2582
      %v2669 = vadd.f32 %v2633, %v2587
      %v2670 = vadd.f32 %v2634, %v2592
      %v2671 = vadd.f32 %v2635, %v2597
      %2672 = vst [vmem:[#allocation2] sm:$0xff] %v2636
      %2673 = vst [vmem:[#allocation2 + $0x8] sm:$0xff] %v2637
      %2674 = vst [vmem:[#allocation2 + $0x10] sm:$0xff] %v2638
      %2675 = vst [vmem:[#allocation2 + $0x18] sm:$0xff] %v2639
      %2676 = vst [vmem:[#allocation2 + $0x20] sm:$0xff] %v2640
      %2677 = vst [vmem:[#allocation2 + $0x28] sm:$0xff] %v2641
      %2678 = vst [vmem:[#allocation2 + $0x30] sm:$0xff] %v2642
      %2679 = vst [vmem:[#allocation2 + $0x38] sm:$0xff] %v2643
      %2680 = vst [vmem:[#allocation2 + $0x40] sm:$0xff] %v2644
      %2681 = vst [vmem:[#allocation2 + $0x48] sm:$0xff] %v2645
      %2682 = vst [vmem:[#allocation2 + $0x50] sm:$0xff] %v2646
      %2683 = vst [vmem:[#allocation2 + $0x58] sm:$0xff] %v2647
      %2684 = vst [vmem:[#allocation2 + $0x60] sm:$0xff] %v2648
      %2685 = vst [vmem:[#allocation2 + $0x68] sm:$0xff] %v2649
      %2686 = vst [vmem:[#allocation2 + $0x70] sm:$0xff] %v2650
      %2687 = vst [vmem:[#allocation2 + $0x78] sm:$0xff] %v2651
      %2688 = vst [vmem:[#allocation2 + $0x80] sm:$0xff] %v2652
      %2689 = vst [vmem:[#allocation2 + $0x88] sm:$0xff] %v2653
      %2690 = vst [vmem:[#allocation2 + $0x90] sm:$0xff] %v2654
      %2691 = vst [vmem:[#allocation2 + $0x98] sm:$0xff] %v2655
      %2692 = vst [vmem:[#allocation2 + $0xa0] sm:$0xff] %v2656
      %2693 = vst [vmem:[#allocation2 + $0xa8] sm:$0xff] %v2657
      %2694 = vst [vmem:[#allocation2 + $0xb0] sm:$0xff] %v2658
      %2695 = vst [vmem:[#allocation2 + $0xb8] sm:$0xff] %v2659
      %2696 = vst [vmem:[#allocation2 + $0xc0] sm:$0xff] %v2660
      %2697 = vst [vmem:[#allocation2 + $0xc8] sm:$0xff] %v2661
      %2698 = vst [vmem:[#allocation2 + $0xd0] sm:$0xff] %v2662
      %2699 = vst [vmem:[#allocation2 + $0xd8] sm:$0xff] %v2663
      %2700 = vst [vmem:[#allocation2 + $0xe0] sm:$0xff] %v2664
      %2701 = vst [vmem:[#allocation2 + $0xe8] sm:$0xff] %v2665
      %2702 = vst [vmem:[#allocation2 + $0xf0] sm:$0xff] %v2666
      %2703 = vst [vmem:[#allocation2 + $0xf8] sm:$0xff] %v2667
      %2704 = vst [vmem:[#allocation2 + $0x100] sm:$0xff] %v2668
      %2705 = vst [vmem:[#allocation2 + $0x108] sm:$0xff] %v2669
      %2706 = vst [vmem:[#allocation2 + $0x110] sm:$0xff] %v2670
      %2707 = vst [vmem:[#allocation2 + $0x118] sm:$0xff] %v2671
      %v2708 = vld [vmem:[%s257 + $0x14] sm:$0xff]
      %v2709 = vld [vmem:[%s257 + $0x1c] sm:$0xff]
      %v2710 = vld [vmem:[%s257 + $0x24] sm:$0xff]
      %v2711 = vld [vmem:[%s257 + $0x2c] sm:$0xff]
      %v2712 = vld [vmem:[%s257 + $0x34] sm:$0xff]
      %v2713 = vld [vmem:[%s257 + $0x3c] sm:$0xff]
      %v2714 = vld [vmem:[%s257 + $0x44] sm:$0xff]
      %v2715 = vld [vmem:[%s257 + $0x4c] sm:$0xff]
      %v2716 = vld [vmem:[%s257 + $0x54] sm:$0xff]
      %v2717 = vld [vmem:[%s257 + $0x5c] sm:$0xff]
      %v2718 = vld [vmem:[%s257 + $0x64] sm:$0xff]
      %v2719 = vld [vmem:[%s257 + $0x6c] sm:$0xff]
      %v2720 = vld [vmem:[%s257 + $0x74] sm:$0xff]
      %v2721 = vld [vmem:[%s257 + $0x7c] sm:$0xff]
      %v2722 = vld [vmem:[%s257 + $0x84] sm:$0xff]
      %v2723 = vld [vmem:[%s257 + $0x8c] sm:$0xff]
      %v2724 = vld [vmem:[%s257 + $0x94] sm:$0xff]
      %v2725 = vld [vmem:[%s257 + $0x9c] sm:$0xff]
      %v2726 = vld [vmem:[%s257 + $0xa4] sm:$0xff]
      %v2727 = vld [vmem:[%s257 + $0xac] sm:$0xff]
      %v2728 = vld [vmem:[%s257 + $0xb4] sm:$0xff]
      %v2729 = vld [vmem:[%s257 + $0xbc] sm:$0xff]
      %v2730 = vld [vmem:[%s257 + $0xc4] sm:$0xff]
      %v2731 = vld [vmem:[%s257 + $0xcc] sm:$0xff]
      %v2732 = vld [vmem:[%s257 + $0xd4] sm:$0xff]
      %v2733 = vld [vmem:[%s257 + $0xdc] sm:$0xff]
      %v2734 = vld [vmem:[%s257 + $0xe4] sm:$0xff]
      %v2735 = vld [vmem:[%s257 + $0xec] sm:$0xff]
      %v2736 = vld [vmem:[%s257 + $0xf4] sm:$0xff]
      %v2737 = vld [vmem:[%s257 + $0xfc] sm:$0xff]
      %v2738 = vld [vmem:[%s257 + $0x104] sm:$0xff]
      %v2739 = vld [vmem:[%s257 + $0x10c] sm:$0xff]
      %v2740 = vld [vmem:[%s257 + $0x114] sm:$0xff]
      %v2741 = vld [vmem:[%s257 + $0x11c] sm:$0xff]
      %v2742 = vld [vmem:[%s257 + $0x124] sm:$0xff]
      %v2743 = vld [vmem:[%s257 + $0x12c] sm:$0xff]
      %s2744 = scalar_lea.vmem %s1, 20
      %v2745 = vld [vmem:[%s2744] sm:$0xf]
      %v2747 = vsel %vm306, %v2708, 0
      %v2750 = vsel %vm306, %v2709, 0
      %v2753 = vsel %vm306, %v2710, 0
      %v2756 = vsel %vm306, %v2711, 0
      %v2759 = vsel %vm306, %v2712, 0
      %v2762 = vsel %vm306, %v2713, 0
      %v2765 = vsel %vm306, %v2714, 0
      %v2768 = vsel %vm306, %v2715, 0
      %v2771 = vsel %vm306, %v2716, 0
      %v2774 = vsel %vm306, %v2717, 0
      %v2777 = vsel %vm306, %v2718, 0
      %v2780 = vsel %vm306, %v2719, 0
      %v2783 = vsel %vm306, %v2720, 0
      %v2786 = vsel %vm306, %v2721, 0
      %v2789 = vsel %vm306, %v2722, 0
      %v2792 = vsel %vm306, %v2723, 0
      %v2795 = vsel %vm306, %v2724, 0
      %v2798 = vsel %vm306, %v2725, 0
      %v2801 = vsel %vm306, %v2726, 0
      %v2804 = vsel %vm306, %v2727, 0
      %v2807 = vsel %vm306, %v2728, 0
      %v2810 = vsel %vm306, %v2729, 0
      %v2813 = vsel %vm306, %v2730, 0
      %v2816 = vsel %vm306, %v2731, 0
      %v2819 = vsel %vm306, %v2732, 0
      %v2822 = vsel %vm306, %v2733, 0
      %v2825 = vsel %vm306, %v2734, 0
      %v2828 = vsel %vm306, %v2735, 0
      %v2831 = vsel %vm306, %v2736, 0
      %v2834 = vsel %vm306, %v2737, 0
      %v2837 = vsel %vm306, %v2738, 0
      %v2840 = vsel %vm306, %v2739, 0
      %v2843 = vsel %vm306, %v2740, 0
      %v2846 = vsel %vm306, %v2741, 0
      %v2849 = vsel %vm306, %v2742, 0
      %v2852 = vsel %vm306, %v2743, 0
      %v2855 = vsel %vm415, %v2745, 0
      %2857 = vmatprep.subr.mxu0 0.0
      %2858 = vmatpush1.msra.mxu0 %v2855
      %2859 = vmatprep.subr.mxu0 0.0
      %2860 = vmatpush1.msra.mxu0 0.0
      %2861 = vmatprep.subr.mxu0 0.0
      %2862 = vmatpush1.msra.mxu0 0.0
      %2863 = vmatprep.subr.mxu0 0.0
      %2864 = vmatpush1.msra.mxu0 0.0
      %2865 = vmatprep.subr.mxu0 0.0
      %2866 = vmatpush1.msra.mxu0 0.0
      %2867 = vmatprep.subr.mxu0 0.0
      %2868 = vmatpush1.msra.mxu0 0.0
      %2869 = vmatprep.subr.mxu0 0.0
      %2870 = vmatpush1.msra.mxu0 0.0
      %2871 = vmatprep.subr.mxu0 0.0
      %2872 = vmatpush1.msra.mxu0 0.0
      %2873 = vmatprep.subr.mxu0 0.0
      %2874 = vmatpush1.msra.mxu0 0.0
      %2875 = vmatprep.subr.mxu0 0.0
      %2876 = vmatpush1.msra.mxu0 0.0
      %2877 = vmatprep.subr.mxu0 0.0
      %2878 = vmatpush1.msra.mxu0 0.0
      %2879 = vmatprep.subr.mxu0 0.0
      %2880 = vmatpush1.msra.mxu0 0.0
      %2881 = vmatprep.subr.mxu0 0.0
      %2882 = vmatpush1.msra.mxu0 0.0
      %2883 = vmatprep.subr.mxu0 0.0
      %2884 = vmatpush1.msra.mxu0 0.0
      %2885 = vmatprep.subr.mxu0 0.0
      %2886 = vmatpush1.msra.mxu0 0.0
      %2887 = vmatprep.subr.mxu0 0.0
      %2888 = vmatpush1.msra.mxu0 0.0
      %2889 = vmatprep.subr.mxu0 0.0
      %2890 = vmatpush1.msra.mxu0 0.0
      %2891 = vmatprep.subr.mxu0 0.0
      %2892 = vmatpush1.msra.mxu0 0.0
      %2893 = vmatprep.subr.mxu0 0.0
      %2894 = vmatpush1.msra.mxu0 0.0
      %2895 = vmatprep.subr.mxu0 0.0
      %2896 = vmatpush1.msra.mxu0 0.0
      %2897 = vmatprep.subr.mxu0 0.0
      %2898 = vmatpush1.msra.mxu0 0.0
      %2899 = vmatprep.subr.mxu0 0.0
      %2900 = vmatpush1.msra.mxu0 0.0
      %2901 = vmatprep.subr.mxu0 0.0
      %2902 = vmatpush1.msra.mxu0 0.0
      %2903 = vmatprep.subr.mxu0 0.0
      %2904 = vmatpush1.msra.mxu0 0.0
      %2905 = vmatprep.subr.mxu0 0.0
      %2906 = vmatpush1.msra.mxu0 0.0
      %2907 = vmatprep.subr.mxu0 0.0
      %2908 = vmatpush1.msra.mxu0 0.0
      %2909 = vmatprep.subr.mxu0 0.0
      %2910 = vmatpush1.msra.mxu0 0.0
      %2911 = vmatprep.subr.mxu0 0.0
      %2912 = vmatpush1.msra.mxu0 0.0
      %2913 = vmatprep.subr.mxu0 0.0
      %2914 = vmatpush1.msra.mxu0 0.0
      %2915 = vmatprep.subr.mxu0 0.0
      %2916 = vmatpush1.msra.mxu0 0.0
      %2917 = vmatprep.subr.mxu0 0.0
      %2918 = vmatpush1.msra.mxu0 0.0
      %2919 = vmatprep.subr.mxu0 0.0
      %2920 = vmatpush1.msra.mxu0 0.0
      %2921 = vmatprep.mubr.f32.mxu0 0.0
      %2922 = vmatmul.mubr.f32.gmra.mrb[0].mxu0 %v2747
      %v2923 = vpop.f32.mrb[0].mxu0
      %v2924 = vadd.f32 0.0, %v2923
      %v2925 = vpop.f32.mrb[0].mxu0
      %2926 = vmatprep.mubr.f32.mxu0 0.0
      %2927 = vmatmul.mubr.f32.gmra.mrb[0].mxu0 %v2750
      %v2928 = vpop.f32.mrb[0].mxu0
      %v2929 = vadd.f32 0.0, %v2928
      %v2930 = vpop.f32.mrb[0].mxu0
      %2931 = vmatprep.mubr.f32.mxu0 0.0
      %2932 = vmatmul.mubr.f32.gmra.mrb[0].mxu0 %v2753
      %v2933 = vpop.f32.mrb[0].mxu0
      %v2934 = vadd.f32 0.0, %v2933
      %v2935 = vpop.f32.mrb[0].mxu0
      %2936 = vmatprep.mubr.f32.mxu0 0.0
      %2937 = vmatmul.mubr.f32.gmra.mrb[0].mxu0 %v2756
      %v2938 = vpop.f32.mrb[0].mxu0
      %v2939 = vadd.f32 0.0, %v2938
      %v2940 = vpop.f32.mrb[0].mxu0
      %2941 = vmatprep.mubr.f32.mxu0 0.0
      %2942 = vmatmul.mubr.f32.gmra.mrb[0].mxu0 %v2759
      %v2943 = vpop.f32.mrb[0].mxu0
      %v2944 = vadd.f32 0.0, %v2943
      %v2945 = vpop.f32.mrb[0].mxu0
      %2946 = vmatprep.mubr.f32.mxu0 0.0
      %2947 = vmatmul.mubr.f32.gmra.mrb[0].mxu0 %v2762
      %v2948 = vpop.f32.mrb[0].mxu0
      %v2949 = vadd.f32 0.0, %v2948
      %v2950 = vpop.f32.mrb[0].mxu0
      %2951 = vmatprep.mubr.f32.mxu0 0.0
      %2952 = vmatmul.mubr.f32.gmra.mrb[0].mxu0 %v2765
      %v2953 = vpop.f32.mrb[0].mxu0
      %v2954 = vadd.f32 0.0, %v2953
      %v2955 = vpop.f32.mrb[0].mxu0
      %2956 = vmatprep.mubr.f32.mxu0 0.0
      %2957 = vmatmul.mubr.f32.gmra.mrb[0].mxu0 %v2768
      %v2958 = vpop.f32.mrb[0].mxu0
      %v2959 = vadd.f32 0.0, %v2958
      %v2960 = vpop.f32.mrb[0].mxu0
      %2961 = vmatprep.mubr.f32.mxu0 0.0
      %2962 = vmatmul.mubr.f32.gmra.mrb[0].mxu0 %v2771
      %v2963 = vpop.f32.mrb[0].mxu0
      %v2964 = vadd.f32 0.0, %v2963
      %v2965 = vpop.f32.mrb[0].mxu0
      %2966 = vmatprep.mubr.f32.mxu0 0.0
      %2967 = vmatmul.mubr.f32.gmra.mrb[0].mxu0 %v2774
      %v2968 = vpop.f32.mrb[0].mxu0
      %v2969 = vadd.f32 0.0, %v2968
      %v2970 = vpop.f32.mrb[0].mxu0
      %2971 = vmatprep.mubr.f32.mxu0 0.0
      %2972 = vmatmul.mubr.f32.gmra.mrb[0].mxu0 %v2777
      %v2973 = vpop.f32.mrb[0].mxu0
      %v2974 = vadd.f32 0.0, %v2973
      %v2975 = vpop.f32.mrb[0].mxu0
      %2976 = vmatprep.mubr.f32.mxu0 0.0
      %2977 = vmatmul.mubr.f32.gmra.mrb[0].mxu0 %v2780
      %v2978 = vpop.f32.mrb[0].mxu0
      %v2979 = vadd.f32 0.0, %v2978
      %v2980 = vpop.f32.mrb[0].mxu0
      %2981 = vmatprep.mubr.f32.mxu0 0.0
      %2982 = vmatmul.mubr.f32.gmra.mrb[0].mxu0 %v2783
      %v2983 = vpop.f32.mrb[0].mxu0
      %v2984 = vadd.f32 0.0, %v2983
      %v2985 = vpop.f32.mrb[0].mxu0
      %2986 = vmatprep.mubr.f32.mxu0 0.0
      %2987 = vmatmul.mubr.f32.gmra.mrb[0].mxu0 %v2786
      %v2988 = vpop.f32.mrb[0].mxu0
      %v2989 = vadd.f32 0.0, %v2988
      %v2990 = vpop.f32.mrb[0].mxu0
      %2991 = vmatprep.mubr.f32.mxu0 0.0
      %2992 = vmatmul.mubr.f32.gmra.mrb[0].mxu0 %v2789
      %v2993 = vpop.f32.mrb[0].mxu0
      %v2994 = vadd.f32 0.0, %v2993
      %v2995 = vpop.f32.mrb[0].mxu0
      %2996 = vmatprep.mubr.f32.mxu0 0.0
      %2997 = vmatmul.mubr.f32.gmra.mrb[0].mxu0 %v2792
      %v2998 = vpop.f32.mrb[0].mxu0
      %v2999 = vadd.f32 0.0, %v2998
      %v3000 = vpop.f32.mrb[0].mxu0
      %3001 = vmatprep.mubr.f32.mxu0 0.0
      %3002 = vmatmul.mubr.f32.gmra.mrb[0].mxu0 %v2795
      %v3003 = vpop.f32.mrb[0].mxu0
      %v3004 = vadd.f32 0.0, %v3003
      %v3005 = vpop.f32.mrb[0].mxu0
      %3006 = vmatprep.mubr.f32.mxu0 0.0
      %3007 = vmatmul.mubr.f32.gmra.mrb[0].mxu0 %v2798
      %v3008 = vpop.f32.mrb[0].mxu0
      %v3009 = vadd.f32 0.0, %v3008
      %v3010 = vpop.f32.mrb[0].mxu0
      %3011 = vmatprep.mubr.f32.mxu0 0.0
      %3012 = vmatmul.mubr.f32.gmra.mrb[0].mxu0 %v2801
      %v3013 = vpop.f32.mrb[0].mxu0
      %v3014 = vadd.f32 0.0, %v3013
      %v3015 = vpop.f32.mrb[0].mxu0
      %3016 = vmatprep.mubr.f32.mxu0 0.0
      %3017 = vmatmul.mubr.f32.gmra.mrb[0].mxu0 %v2804
      %v3018 = vpop.f32.mrb[0].mxu0
      %v3019 = vadd.f32 0.0, %v3018
      %v3020 = vpop.f32.mrb[0].mxu0
      %3021 = vmatprep.mubr.f32.mxu0 0.0
      %3022 = vmatmul.mubr.f32.gmra.mrb[0].mxu0 %v2807
      %v3023 = vpop.f32.mrb[0].mxu0
      %v3024 = vadd.f32 0.0, %v3023
      %v3025 = vpop.f32.mrb[0].mxu0
      %3026 = vmatprep.mubr.f32.mxu0 0.0
      %3027 = vmatmul.mubr.f32.gmra.mrb[0].mxu0 %v2810
      %v3028 = vpop.f32.mrb[0].mxu0
      %v3029 = vadd.f32 0.0, %v3028
      %v3030 = vpop.f32.mrb[0].mxu0
      %3031 = vmatprep.mubr.f32.mxu0 0.0
      %3032 = vmatmul.mubr.f32.gmra.mrb[0].mxu0 %v2813
      %v3033 = vpop.f32.mrb[0].mxu0
      %v3034 = vadd.f32 0.0, %v3033
      %v3035 = vpop.f32.mrb[0].mxu0
      %3036 = vmatprep.mubr.f32.mxu0 0.0
      %3037 = vmatmul.mubr.f32.gmra.mrb[0].mxu0 %v2816
      %v3038 = vpop.f32.mrb[0].mxu0
      %v3039 = vadd.f32 0.0, %v3038
      %v3040 = vpop.f32.mrb[0].mxu0
      %3041 = vmatprep.mubr.f32.mxu0 0.0
      %3042 = vmatmul.mubr.f32.gmra.mrb[0].mxu0 %v2819
      %v3043 = vpop.f32.mrb[0].mxu0
      %v3044 = vadd.f32 0.0, %v3043
      %v3045 = vpop.f32.mrb[0].mxu0
      %3046 = vmatprep.mubr.f32.mxu0 0.0
      %3047 = vmatmul.mubr.f32.gmra.mrb[0].mxu0 %v2822
      %v3048 = vpop.f32.mrb[0].mxu0
      %v3049 = vadd.f32 0.0, %v3048
      %v3050 = vpop.f32.mrb[0].mxu0
      %3051 = vmatprep.mubr.f32.mxu0 0.0
      %3052 = vmatmul.mubr.f32.gmra.mrb[0].mxu0 %v2825
      %v3053 = vpop.f32.mrb[0].mxu0
      %v3054 = vadd.f32 0.0, %v3053
      %v3055 = vpop.f32.mrb[0].mxu0
      %3056 = vmatprep.mubr.f32.mxu0 0.0
      %3057 = vmatmul.mubr.f32.gmra.mrb[0].mxu0 %v2828
      %v3058 = vpop.f32.mrb[0].mxu0
      %v3059 = vadd.f32 0.0, %v3058
      %v3060 = vpop.f32.mrb[0].mxu0
      %3061 = vmatprep.mubr.f32.mxu0 0.0
      %3062 = vmatmul.mubr.f32.gmra.mrb[0].mxu0 %v2831
      %v3063 = vpop.f32.mrb[0].mxu0
      %v3064 = vadd.f32 0.0, %v3063
      %v3065 = vpop.f32.mrb[0].mxu0
      %3066 = vmatprep.mubr.f32.mxu0 0.0
      %3067 = vmatmul.mubr.f32.gmra.mrb[0].mxu0 %v2834
      %v3068 = vpop.f32.mrb[0].mxu0
      %v3069 = vadd.f32 0.0, %v3068
      %v3070 = vpop.f32.mrb[0].mxu0
      %3071 = vmatprep.mubr.f32.mxu0 0.0
      %3072 = vmatmul.mubr.f32.gmra.mrb[0].mxu0 %v2837
      %v3073 = vpop.f32.mrb[0].mxu0
      %v3074 = vadd.f32 0.0, %v3073
      %v3075 = vpop.f32.mrb[0].mxu0
      %3076 = vmatprep.mubr.f32.mxu0 0.0
      %3077 = vmatmul.mubr.f32.gmra.mrb[0].mxu0 %v2840
      %v3078 = vpop.f32.mrb[0].mxu0
      %v3079 = vadd.f32 0.0, %v3078
      %v3080 = vpop.f32.mrb[0].mxu0
      %3081 = vmatprep.mubr.f32.mxu0 0.0
      %3082 = vmatmul.mubr.f32.gmra.mrb[0].mxu0 %v2843
      %v3083 = vpop.f32.mrb[0].mxu0
      %v3084 = vadd.f32 0.0, %v3083
      %v3085 = vpop.f32.mrb[0].mxu0
      %3086 = vmatprep.mubr.f32.mxu0 0.0
      %3087 = vmatmul.mubr.f32.gmra.mrb[0].mxu0 %v2846
      %v3088 = vpop.f32.mrb[0].mxu0
      %v3089 = vadd.f32 0.0, %v3088
      %v3090 = vpop.f32.mrb[0].mxu0
      %3091 = vmatprep.mubr.f32.mxu0 0.0
      %3092 = vmatmul.mubr.f32.gmra.mrb[0].mxu0 %v2849
      %v3093 = vpop.f32.mrb[0].mxu0
      %v3094 = vadd.f32 0.0, %v3093
      %v3095 = vpop.f32.mrb[0].mxu0
      %3096 = vmatprep.mubr.f32.mxu0 0.0
      %3097 = vmatmul.mubr.f32.gmra.mrb[0].mxu0 %v2852
      %v3098 = vpop.f32.mrb[0].mxu0
      %v3099 = vadd.f32 0.0, %v3098
      %v3100 = vpop.f32.mrb[0].mxu0
      %3101 = vdwg.mxu0
      %v3102 = vld [vmem:[#allocation2] sm:$0xff]
      %v3103 = vld [vmem:[#allocation2 + $0x8] sm:$0xff]
      %v3104 = vld [vmem:[#allocation2 + $0x10] sm:$0xff]
      %v3105 = vld [vmem:[#allocation2 + $0x18] sm:$0xff]
      %v3106 = vld [vmem:[#allocation2 + $0x20] sm:$0xff]
      %v3107 = vld [vmem:[#allocation2 + $0x28] sm:$0xff]
      %v3108 = vld [vmem:[#allocation2 + $0x30] sm:$0xff]
      %v3109 = vld [vmem:[#allocation2 + $0x38] sm:$0xff]
      %v3110 = vld [vmem:[#allocation2 + $0x40] sm:$0xff]
      %v3111 = vld [vmem:[#allocation2 + $0x48] sm:$0xff]
      %v3112 = vld [vmem:[#allocation2 + $0x50] sm:$0xff]
      %v3113 = vld [vmem:[#allocation2 + $0x58] sm:$0xff]
      %v3114 = vld [vmem:[#allocation2 + $0x60] sm:$0xff]
      %v3115 = vld [vmem:[#allocation2 + $0x68] sm:$0xff]
      %v3116 = vld [vmem:[#allocation2 + $0x70] sm:$0xff]
      %v3117 = vld [vmem:[#allocation2 + $0x78] sm:$0xff]
      %v3118 = vld [vmem:[#allocation2 + $0x80] sm:$0xff]
      %v3119 = vld [vmem:[#allocation2 + $0x88] sm:$0xff]
      %v3120 = vld [vmem:[#allocation2 + $0x90] sm:$0xff]
      %v3121 = vld [vmem:[#allocation2 + $0x98] sm:$0xff]
      %v3122 = vld [vmem:[#allocation2 + $0xa0] sm:$0xff]
      %v3123 = vld [vmem:[#allocation2 + $0xa8] sm:$0xff]
      %v3124 = vld [vmem:[#allocation2 + $0xb0] sm:$0xff]
      %v3125 = vld [vmem:[#allocation2 + $0xb8] sm:$0xff]
      %v3126 = vld [vmem:[#allocation2 + $0xc0] sm:$0xff]
      %v3127 = vld [vmem:[#allocation2 + $0xc8] sm:$0xff]
      %v3128 = vld [vmem:[#allocation2 + $0xd0] sm:$0xff]
      %v3129 = vld [vmem:[#allocation2 + $0xd8] sm:$0xff]
      %v3130 = vld [vmem:[#allocation2 + $0xe0] sm:$0xff]
      %v3131 = vld [vmem:[#allocation2 + $0xe8] sm:$0xff]
      %v3132 = vld [vmem:[#allocation2 + $0xf0] sm:$0xff]
      %v3133 = vld [vmem:[#allocation2 + $0xf8] sm:$0xff]
      %v3134 = vld [vmem:[#allocation2 + $0x100] sm:$0xff]
      %v3135 = vld [vmem:[#allocation2 + $0x108] sm:$0xff]
      %v3136 = vld [vmem:[#allocation2 + $0x110] sm:$0xff]
      %v3137 = vld [vmem:[#allocation2 + $0x118] sm:$0xff]
      %v3138 = vadd.f32 %v3102, %v2924
      %v3139 = vadd.f32 %v3103, %v2929
      %v3140 = vadd.f32 %v3104, %v2934
      %v3141 = vadd.f32 %v3105, %v2939
      %v3142 = vadd.f32 %v3106, %v2944
      %v3143 = vadd.f32 %v3107, %v2949
      %v3144 = vadd.f32 %v3108, %v2954
      %v3145 = vadd.f32 %v3109, %v2959
      %v3146 = vadd.f32 %v3110, %v2964
      %v3147 = vadd.f32 %v3111, %v2969
      %v3148 = vadd.f32 %v3112, %v2974
      %v3149 = vadd.f32 %v3113, %v2979
      %v3150 = vadd.f32 %v3114, %v2984
      %v3151 = vadd.f32 %v3115, %v2989
      %v3152 = vadd.f32 %v3116, %v2994
      %v3153 = vadd.f32 %v3117, %v2999
      %v3154 = vadd.f32 %v3118, %v3004
      %v3155 = vadd.f32 %v3119, %v3009
      %v3156 = vadd.f32 %v3120, %v3014
      %v3157 = vadd.f32 %v3121, %v3019
      %v3158 = vadd.f32 %v3122, %v3024
      %v3159 = vadd.f32 %v3123, %v3029
      %v3160 = vadd.f32 %v3124, %v3034
      %v3161 = vadd.f32 %v3125, %v3039
      %v3162 = vadd.f32 %v3126, %v3044
      %v3163 = vadd.f32 %v3127, %v3049
      %v3164 = vadd.f32 %v3128, %v3054
      %v3165 = vadd.f32 %v3129, %v3059
      %v3166 = vadd.f32 %v3130, %v3064
      %v3167 = vadd.f32 %v3131, %v3069
      %v3168 = vadd.f32 %v3132, %v3074
      %v3169 = vadd.f32 %v3133, %v3079
      %v3170 = vadd.f32 %v3134, %v3084
      %v3171 = vadd.f32 %v3135, %v3089
      %v3172 = vadd.f32 %v3136, %v3094
      %v3173 = vadd.f32 %v3137, %v3099
      %3174 = vst [vmem:[#allocation2] sm:$0xff] %v3138
      %3175 = vst [vmem:[#allocation2 + $0x8] sm:$0xff] %v3139
      %3176 = vst [vmem:[#allocation2 + $0x10] sm:$0xff] %v3140
      %3177 = vst [vmem:[#allocation2 + $0x18] sm:$0xff] %v3141
      %3178 = vst [vmem:[#allocation2 + $0x20] sm:$0xff] %v3142
      %3179 = vst [vmem:[#allocation2 + $0x28] sm:$0xff] %v3143
      %3180 = vst [vmem:[#allocation2 + $0x30] sm:$0xff] %v3144
      %3181 = vst [vmem:[#allocation2 + $0x38] sm:$0xff] %v3145
      %3182 = vst [vmem:[#allocation2 + $0x40] sm:$0xff] %v3146
      %3183 = vst [vmem:[#allocation2 + $0x48] sm:$0xff] %v3147
      %3184 = vst [vmem:[#allocation2 + $0x50] sm:$0xff] %v3148
      %3185 = vst [vmem:[#allocation2 + $0x58] sm:$0xff] %v3149
      %3186 = vst [vmem:[#allocation2 + $0x60] sm:$0xff] %v3150
      %3187 = vst [vmem:[#allocation2 + $0x68] sm:$0xff] %v3151
      %3188 = vst [vmem:[#allocation2 + $0x70] sm:$0xff] %v3152
      %3189 = vst [vmem:[#allocation2 + $0x78] sm:$0xff] %v3153
      %3190 = vst [vmem:[#allocation2 + $0x80] sm:$0xff] %v3154
      %3191 = vst [vmem:[#allocation2 + $0x88] sm:$0xff] %v3155
      %3192 = vst [vmem:[#allocation2 + $0x90] sm:$0xff] %v3156
      %3193 = vst [vmem:[#allocation2 + $0x98] sm:$0xff] %v3157
      %3194 = vst [vmem:[#allocation2 + $0xa0] sm:$0xff] %v3158
      %3195 = vst [vmem:[#allocation2 + $0xa8] sm:$0xff] %v3159
      %3196 = vst [vmem:[#allocation2 + $0xb0] sm:$0xff] %v3160
      %3197 = vst [vmem:[#allocation2 + $0xb8] sm:$0xff] %v3161
      %3198 = vst [vmem:[#allocation2 + $0xc0] sm:$0xff] %v3162
      %3199 = vst [vmem:[#allocation2 + $0xc8] sm:$0xff] %v3163
      %3200 = vst [vmem:[#allocation2 + $0xd0] sm:$0xff] %v3164
      %3201 = vst [vmem:[#allocation2 + $0xd8] sm:$0xff] %v3165
      %3202 = vst [vmem:[#allocation2 + $0xe0] sm:$0xff] %v3166
      %3203 = vst [vmem:[#allocation2 + $0xe8] sm:$0xff] %v3167
      %3204 = vst [vmem:[#allocation2 + $0xf0] sm:$0xff] %v3168
      %3205 = vst [vmem:[#allocation2 + $0xf8] sm:$0xff] %v3169
      %3206 = vst [vmem:[#allocation2 + $0x100] sm:$0xff] %v3170
      %3207 = vst [vmem:[#allocation2 + $0x108] sm:$0xff] %v3171
      %3208 = vst [vmem:[#allocation2 + $0x110] sm:$0xff] %v3172
      %3209 = vst [vmem:[#allocation2 + $0x118] sm:$0xff] %v3173
      %v3210 = vld [vmem:[%s257 + $0x24] sm:$0xff]
      %v3211 = vld [vmem:[%s257 + $0x2c] sm:$0xff]
      %v3212 = vld [vmem:[%s257 + $0x34] sm:$0xff]
      %v3213 = vld [vmem:[%s257 + $0x3c] sm:$0xff]
      %v3214 = vld [vmem:[%s257 + $0x44] sm:$0xff]
      %v3215 = vld [vmem:[%s257 + $0x4c] sm:$0xff]
      %v3216 = vld [vmem:[%s257 + $0x54] sm:$0xff]
      %v3217 = vld [vmem:[%s257 + $0x5c] sm:$0xff]
      %v3218 = vld [vmem:[%s257 + $0x64] sm:$0xff]
      %v3219 = vld [vmem:[%s257 + $0x6c] sm:$0xff]
      %v3220 = vld [vmem:[%s257 + $0x74] sm:$0xff]
      %v3221 = vld [vmem:[%s257 + $0x7c] sm:$0xff]
      %v3222 = vld [vmem:[%s257 + $0x84] sm:$0xff]
      %v3223 = vld [vmem:[%s257 + $0x8c] sm:$0xff]
      %v3224 = vld [vmem:[%s257 + $0x94] sm:$0xff]
      %v3225 = vld [vmem:[%s257 + $0x9c] sm:$0xff]
      %v3226 = vld [vmem:[%s257 + $0xa4] sm:$0xff]
      %v3227 = vld [vmem:[%s257 + $0xac] sm:$0xff]
      %v3228 = vld [vmem:[%s257 + $0xb4] sm:$0xff]
      %v3229 = vld [vmem:[%s257 + $0xbc] sm:$0xff]
      %v3230 = vld [vmem:[%s257 + $0xc4] sm:$0xff]
      %v3231 = vld [vmem:[%s257 + $0xcc] sm:$0xff]
      %v3232 = vld [vmem:[%s257 + $0xd4] sm:$0xff]
      %v3233 = vld [vmem:[%s257 + $0xdc] sm:$0xff]
      %v3234 = vld [vmem:[%s257 + $0xe4] sm:$0xff]
      %v3235 = vld [vmem:[%s257 + $0xec] sm:$0xff]
      %v3236 = vld [vmem:[%s257 + $0xf4] sm:$0xff]
      %v3237 = vld [vmem:[%s257 + $0xfc] sm:$0xff]
      %v3238 = vld [vmem:[%s257 + $0x104] sm:$0xff]
      %v3239 = vld [vmem:[%s257 + $0x10c] sm:$0xff]
      %v3240 = vld [vmem:[%s257 + $0x114] sm:$0xff]
      %v3241 = vld [vmem:[%s257 + $0x11c] sm:$0xff]
      %v3242 = vld [vmem:[%s257 + $0x124] sm:$0xff]
      %v3243 = vld [vmem:[%s257 + $0x12c] sm:$0xff]
      %v3244 = vld [vmem:[%s257 + $0x134] sm:$0xff]
      %v3245 = vld [vmem:[%s257 + $0x13c] sm:$0xff]
      %s3246 = scalar_lea.vmem %s1, 24
      %v3247 = vld [vmem:[%s3246] sm:$0xf]
      %v3249 = vsel %vm306, %v3210, 0
      %v3252 = vsel %vm306, %v3211, 0
      %v3255 = vsel %vm306, %v3212, 0
      %v3258 = vsel %vm306, %v3213, 0
      %v3261 = vsel %vm306, %v3214, 0
      %v3264 = vsel %vm306, %v3215, 0
      %v3267 = vsel %vm306, %v3216, 0
      %v3270 = vsel %vm306, %v3217, 0
      %v3273 = vsel %vm306, %v3218, 0
      %v3276 = vsel %vm306, %v3219, 0
      %v3279 = vsel %vm306, %v3220, 0
      %v3282 = vsel %vm306, %v3221, 0
      %v3285 = vsel %vm306, %v3222, 0
      %v3288 = vsel %vm306, %v3223, 0
      %v3291 = vsel %vm306, %v3224, 0
      %v3294 = vsel %vm306, %v3225, 0
      %v3297 = vsel %vm306, %v3226, 0
      %v3300 = vsel %vm306, %v3227, 0
      %v3303 = vsel %vm306, %v3228, 0
      %v3306 = vsel %vm306, %v3229, 0
      %v3309 = vsel %vm306, %v3230, 0
      %v3312 = vsel %vm306, %v3231, 0
      %v3315 = vsel %vm306, %v3232, 0
      %v3318 = vsel %vm306, %v3233, 0
      %v3321 = vsel %vm306, %v3234, 0
      %v3324 = vsel %vm306, %v3235, 0
      %v3327 = vsel %vm306, %v3236, 0
      %v3330 = vsel %vm306, %v3237, 0
      %v3333 = vsel %vm306, %v3238, 0
      %v3336 = vsel %vm306, %v3239, 0
      %v3339 = vsel %vm306, %v3240, 0
      %v3342 = vsel %vm306, %v3241, 0
      %v3345 = vsel %vm306, %v3242, 0
      %v3348 = vsel %vm306, %v3243, 0
      %v3351 = vsel %vm306, %v3244, 0
      %v3354 = vsel %vm306, %v3245, 0
      %v3357 = vsel %vm415, %v3247, 0
      %3359 = vmatprep.subr.mxu0 0.0
      %3360 = vmatpush1.msra.mxu0 %v3357
      %3361 = vmatprep.subr.mxu0 0.0
      %3362 = vmatpush1.msra.mxu0 0.0
      %3363 = vmatprep.subr.mxu0 0.0
      %3364 = vmatpush1.msra.mxu0 0.0
      %3365 = vmatprep.subr.mxu0 0.0
      %3366 = vmatpush1.msra.mxu0 0.0
      %3367 = vmatprep.subr.mxu0 0.0
      %3368 = vmatpush1.msra.mxu0 0.0
      %3369 = vmatprep.subr.mxu0 0.0
      %3370 = vmatpush1.msra.mxu0 0.0
      %3371 = vmatprep.subr.mxu0 0.0
      %3372 = vmatpush1.msra.mxu0 0.0
      %3373 = vmatprep.subr.mxu0 0.0
      %3374 = vmatpush1.msra.mxu0 0.0
      %3375 = vmatprep.subr.mxu0 0.0
      %3376 = vmatpush1.msra.mxu0 0.0
      %3377 = vmatprep.subr.mxu0 0.0
      %3378 = vmatpush1.msra.mxu0 0.0
      %3379 = vmatprep.subr.mxu0 0.0
      %3380 = vmatpush1.msra.mxu0 0.0
      %3381 = vmatprep.subr.mxu0 0.0
      %3382 = vmatpush1.msra.mxu0 0.0
      %3383 = vmatprep.subr.mxu0 0.0
      %3384 = vmatpush1.msra.mxu0 0.0
      %3385 = vmatprep.subr.mxu0 0.0
      %3386 = vmatpush1.msra.mxu0 0.0
      %3387 = vmatprep.subr.mxu0 0.0
      %3388 = vmatpush1.msra.mxu0 0.0
      %3389 = vmatprep.subr.mxu0 0.0
      %3390 = vmatpush1.msra.mxu0 0.0
      %3391 = vmatprep.subr.mxu0 0.0
      %3392 = vmatpush1.msra.mxu0 0.0
      %3393 = vmatprep.subr.mxu0 0.0
      %3394 = vmatpush1.msra.mxu0 0.0
      %3395 = vmatprep.subr.mxu0 0.0
      %3396 = vmatpush1.msra.mxu0 0.0
      %3397 = vmatprep.subr.mxu0 0.0
      %3398 = vmatpush1.msra.mxu0 0.0
      %3399 = vmatprep.subr.mxu0 0.0
      %3400 = vmatpush1.msra.mxu0 0.0
      %3401 = vmatprep.subr.mxu0 0.0
      %3402 = vmatpush1.msra.mxu0 0.0
      %3403 = vmatprep.subr.mxu0 0.0
      %3404 = vmatpush1.msra.mxu0 0.0
      %3405 = vmatprep.subr.mxu0 0.0
      %3406 = vmatpush1.msra.mxu0 0.0
      %3407 = vmatprep.subr.mxu0 0.0
      %3408 = vmatpush1.msra.mxu0 0.0
      %3409 = vmatprep.subr.mxu0 0.0
      %3410 = vmatpush1.msra.mxu0 0.0
      %3411 = vmatprep.subr.mxu0 0.0
      %3412 = vmatpush1.msra.mxu0 0.0
      %3413 = vmatprep.subr.mxu0 0.0
      %3414 = vmatpush1.msra.mxu0 0.0
      %3415 = vmatprep.subr.mxu0 0.0
      %3416 = vmatpush1.msra.mxu0 0.0
      %3417 = vmatprep.subr.mxu0 0.0
      %3418 = vmatpush1.msra.mxu0 0.0
      %3419 = vmatprep.subr.mxu0 0.0
      %3420 = vmatpush1.msra.mxu0 0.0
      %3421 = vmatprep.subr.mxu0 0.0
      %3422 = vmatpush1.msra.mxu0 0.0
      %3423 = vmatprep.mubr.f32.mxu0 0.0
      %3424 = vmatmul.mubr.f32.gmra.mrb[0].mxu0 %v3249
      %v3425 = vpop.f32.mrb[0].mxu0
      %v3426 = vadd.f32 0.0, %v3425
      %v3427 = vpop.f32.mrb[0].mxu0
      %3428 = vmatprep.mubr.f32.mxu0 0.0
      %3429 = vmatmul.mubr.f32.gmra.mrb[0].mxu0 %v3252
      %v3430 = vpop.f32.mrb[0].mxu0
      %v3431 = vadd.f32 0.0, %v3430
      %v3432 = vpop.f32.mrb[0].mxu0
      %3433 = vmatprep.mubr.f32.mxu0 0.0
      %3434 = vmatmul.mubr.f32.gmra.mrb[0].mxu0 %v3255
      %v3435 = vpop.f32.mrb[0].mxu0
      %v3436 = vadd.f32 0.0, %v3435
      %v3437 = vpop.f32.mrb[0].mxu0
      %3438 = vmatprep.mubr.f32.mxu0 0.0
      %3439 = vmatmul.mubr.f32.gmra.mrb[0].mxu0 %v3258
      %v3440 = vpop.f32.mrb[0].mxu0
      %v3441 = vadd.f32 0.0, %v3440
      %v3442 = vpop.f32.mrb[0].mxu0
      %3443 = vmatprep.mubr.f32.mxu0 0.0
      %3444 = vmatmul.mubr.f32.gmra.mrb[0].mxu0 %v3261
      %v3445 = vpop.f32.mrb[0].mxu0
      %v3446 = vadd.f32 0.0, %v3445
      %v3447 = vpop.f32.mrb[0].mxu0
      %3448 = vmatprep.mubr.f32.mxu0 0.0
      %3449 = vmatmul.mubr.f32.gmra.mrb[0].mxu0 %v3264
      %v3450 = vpop.f32.mrb[0].mxu0
      %v3451 = vadd.f32 0.0, %v3450
      %v3452 = vpop.f32.mrb[0].mxu0
      %3453 = vmatprep.mubr.f32.mxu0 0.0
      %3454 = vmatmul.mubr.f32.gmra.mrb[0].mxu0 %v3267
      %v3455 = vpop.f32.mrb[0].mxu0
      %v3456 = vadd.f32 0.0, %v3455
      %v3457 = vpop.f32.mrb[0].mxu0
      %3458 = vmatprep.mubr.f32.mxu0 0.0
      %3459 = vmatmul.mubr.f32.gmra.mrb[0].mxu0 %v3270
      %v3460 = vpop.f32.mrb[0].mxu0
      %v3461 = vadd.f32 0.0, %v3460
      %v3462 = vpop.f32.mrb[0].mxu0
      %3463 = vmatprep.mubr.f32.mxu0 0.0
      %3464 = vmatmul.mubr.f32.gmra.mrb[0].mxu0 %v3273
      %v3465 = vpop.f32.mrb[0].mxu0
      %v3466 = vadd.f32 0.0, %v3465
      %v3467 = vpop.f32.mrb[0].mxu0
      %3468 = vmatprep.mubr.f32.mxu0 0.0
      %3469 = vmatmul.mubr.f32.gmra.mrb[0].mxu0 %v3276
      %v3470 = vpop.f32.mrb[0].mxu0
      %v3471 = vadd.f32 0.0, %v3470
      %v3472 = vpop.f32.mrb[0].mxu0
      %3473 = vmatprep.mubr.f32.mxu0 0.0
      %3474 = vmatmul.mubr.f32.gmra.mrb[0].mxu0 %v3279
      %v3475 = vpop.f32.mrb[0].mxu0
      %v3476 = vadd.f32 0.0, %v3475
      %v3477 = vpop.f32.mrb[0].mxu0
      %3478 = vmatprep.mubr.f32.mxu0 0.0
      %3479 = vmatmul.mubr.f32.gmra.mrb[0].mxu0 %v3282
      %v3480 = vpop.f32.mrb[0].mxu0
      %v3481 = vadd.f32 0.0, %v3480
      %v3482 = vpop.f32.mrb[0].mxu0
      %3483 = vmatprep.mubr.f32.mxu0 0.0
      %3484 = vmatmul.mubr.f32.gmra.mrb[0].mxu0 %v3285
      %v3485 = vpop.f32.mrb[0].mxu0
      %v3486 = vadd.f32 0.0, %v3485
      %v3487 = vpop.f32.mrb[0].mxu0
      %3488 = vmatprep.mubr.f32.mxu0 0.0
      %3489 = vmatmul.mubr.f32.gmra.mrb[0].mxu0 %v3288
      %v3490 = vpop.f32.mrb[0].mxu0
      %v3491 = vadd.f32 0.0, %v3490
      %v3492 = vpop.f32.mrb[0].mxu0
      %3493 = vmatprep.mubr.f32.mxu0 0.0
      %3494 = vmatmul.mubr.f32.gmra.mrb[0].mxu0 %v3291
      %v3495 = vpop.f32.mrb[0].mxu0
      %v3496 = vadd.f32 0.0, %v3495
      %v3497 = vpop.f32.mrb[0].mxu0
      %3498 = vmatprep.mubr.f32.mxu0 0.0
      %3499 = vmatmul.mubr.f32.gmra.mrb[0].mxu0 %v3294
      %v3500 = vpop.f32.mrb[0].mxu0
      %v3501 = vadd.f32 0.0, %v3500
      %v3502 = vpop.f32.mrb[0].mxu0
      %3503 = vmatprep.mubr.f32.mxu0 0.0
      %3504 = vmatmul.mubr.f32.gmra.mrb[0].mxu0 %v3297
      %v3505 = vpop.f32.mrb[0].mxu0
      %v3506 = vadd.f32 0.0, %v3505
      %v3507 = vpop.f32.mrb[0].mxu0
      %3508 = vmatprep.mubr.f32.mxu0 0.0
      %3509 = vmatmul.mubr.f32.gmra.mrb[0].mxu0 %v3300
      %v3510 = vpop.f32.mrb[0].mxu0
      %v3511 = vadd.f32 0.0, %v3510
      %v3512 = vpop.f32.mrb[0].mxu0
      %3513 = vmatprep.mubr.f32.mxu0 0.0
      %3514 = vmatmul.mubr.f32.gmra.mrb[0].mxu0 %v3303
      %v3515 = vpop.f32.mrb[0].mxu0
      %v3516 = vadd.f32 0.0, %v3515
      %v3517 = vpop.f32.mrb[0].mxu0
      %3518 = vmatprep.mubr.f32.mxu0 0.0
      %3519 = vmatmul.mubr.f32.gmra.mrb[0].mxu0 %v3306
      %v3520 = vpop.f32.mrb[0].mxu0
      %v3521 = vadd.f32 0.0, %v3520
      %v3522 = vpop.f32.mrb[0].mxu0
      %3523 = vmatprep.mubr.f32.mxu0 0.0
      %3524 = vmatmul.mubr.f32.gmra.mrb[0].mxu0 %v3309
      %v3525 = vpop.f32.mrb[0].mxu0
      %v3526 = vadd.f32 0.0, %v3525
      %v3527 = vpop.f32.mrb[0].mxu0
      %3528 = vmatprep.mubr.f32.mxu0 0.0
      %3529 = vmatmul.mubr.f32.gmra.mrb[0].mxu0 %v3312
      %v3530 = vpop.f32.mrb[0].mxu0
      %v3531 = vadd.f32 0.0, %v3530
      %v3532 = vpop.f32.mrb[0].mxu0
      %3533 = vmatprep.mubr.f32.mxu0 0.0
      %3534 = vmatmul.mubr.f32.gmra.mrb[0].mxu0 %v3315
      %v3535 = vpop.f32.mrb[0].mxu0
      %v3536 = vadd.f32 0.0, %v3535
      %v3537 = vpop.f32.mrb[0].mxu0
      %3538 = vmatprep.mubr.f32.mxu0 0.0
      %3539 = vmatmul.mubr.f32.gmra.mrb[0].mxu0 %v3318
      %v3540 = vpop.f32.mrb[0].mxu0
      %v3541 = vadd.f32 0.0, %v3540
      %v3542 = vpop.f32.mrb[0].mxu0
      %3543 = vmatprep.mubr.f32.mxu0 0.0
      %3544 = vmatmul.mubr.f32.gmra.mrb[0].mxu0 %v3321
      %v3545 = vpop.f32.mrb[0].mxu0
      %v3546 = vadd.f32 0.0, %v3545
      %v3547 = vpop.f32.mrb[0].mxu0
      %3548 = vmatprep.mubr.f32.mxu0 0.0
      %3549 = vmatmul.mubr.f32.gmra.mrb[0].mxu0 %v3324
      %v3550 = vpop.f32.mrb[0].mxu0
      %v3551 = vadd.f32 0.0, %v3550
      %v3552 = vpop.f32.mrb[0].mxu0
      %3553 = vmatprep.mubr.f32.mxu0 0.0
      %3554 = vmatmul.mubr.f32.gmra.mrb[0].mxu0 %v3327
      %v3555 = vpop.f32.mrb[0].mxu0
      %v3556 = vadd.f32 0.0, %v3555
      %v3557 = vpop.f32.mrb[0].mxu0
      %3558 = vmatprep.mubr.f32.mxu0 0.0
      %3559 = vmatmul.mubr.f32.gmra.mrb[0].mxu0 %v3330
      %v3560 = vpop.f32.mrb[0].mxu0
      %v3561 = vadd.f32 0.0, %v3560
      %v3562 = vpop.f32.mrb[0].mxu0
      %3563 = vmatprep.mubr.f32.mxu0 0.0
      %3564 = vmatmul.mubr.f32.gmra.mrb[0].mxu0 %v3333
      %v3565 = vpop.f32.mrb[0].mxu0
      %v3566 = vadd.f32 0.0, %v3565
      %v3567 = vpop.f32.mrb[0].mxu0
      %3568 = vmatprep.mubr.f32.mxu0 0.0
      %3569 = vmatmul.mubr.f32.gmra.mrb[0].mxu0 %v3336
      %v3570 = vpop.f32.mrb[0].mxu0
      %v3571 = vadd.f32 0.0, %v3570
      %v3572 = vpop.f32.mrb[0].mxu0
      %3573 = vmatprep.mubr.f32.mxu0 0.0
      %3574 = vmatmul.mubr.f32.gmra.mrb[0].mxu0 %v3339
      %v3575 = vpop.f32.mrb[0].mxu0
      %v3576 = vadd.f32 0.0, %v3575
      %v3577 = vpop.f32.mrb[0].mxu0
      %3578 = vmatprep.mubr.f32.mxu0 0.0
      %3579 = vmatmul.mubr.f32.gmra.mrb[0].mxu0 %v3342
      %v3580 = vpop.f32.mrb[0].mxu0
      %v3581 = vadd.f32 0.0, %v3580
      %v3582 = vpop.f32.mrb[0].mxu0
      %3583 = vmatprep.mubr.f32.mxu0 0.0
      %3584 = vmatmul.mubr.f32.gmra.mrb[0].mxu0 %v3345
      %v3585 = vpop.f32.mrb[0].mxu0
      %v3586 = vadd.f32 0.0, %v3585
      %v3587 = vpop.f32.mrb[0].mxu0
      %3588 = vmatprep.mubr.f32.mxu0 0.0
      %3589 = vmatmul.mubr.f32.gmra.mrb[0].mxu0 %v3348
      %v3590 = vpop.f32.mrb[0].mxu0
      %v3591 = vadd.f32 0.0, %v3590
      %v3592 = vpop.f32.mrb[0].mxu0
      %3593 = vmatprep.mubr.f32.mxu0 0.0
      %3594 = vmatmul.mubr.f32.gmra.mrb[0].mxu0 %v3351
      %v3595 = vpop.f32.mrb[0].mxu0
      %v3596 = vadd.f32 0.0, %v3595
      %v3597 = vpop.f32.mrb[0].mxu0
      %3598 = vmatprep.mubr.f32.mxu0 0.0
      %3599 = vmatmul.mubr.f32.gmra.mrb[0].mxu0 %v3354
      %v3600 = vpop.f32.mrb[0].mxu0
      %v3601 = vadd.f32 0.0, %v3600
      %v3602 = vpop.f32.mrb[0].mxu0
      %3603 = vdwg.mxu0
      %v3604 = vld [vmem:[#allocation2] sm:$0xff]
      %v3605 = vld [vmem:[#allocation2 + $0x8] sm:$0xff]
      %v3606 = vld [vmem:[#allocation2 + $0x10] sm:$0xff]
      %v3607 = vld [vmem:[#allocation2 + $0x18] sm:$0xff]
      %v3608 = vld [vmem:[#allocation2 + $0x20] sm:$0xff]
      %v3609 = vld [vmem:[#allocation2 + $0x28] sm:$0xff]
      %v3610 = vld [vmem:[#allocation2 + $0x30] sm:$0xff]
      %v3611 = vld [vmem:[#allocation2 + $0x38] sm:$0xff]
      %v3612 = vld [vmem:[#allocation2 + $0x40] sm:$0xff]
      %v3613 = vld [vmem:[#allocation2 + $0x48] sm:$0xff]
      %v3614 = vld [vmem:[#allocation2 + $0x50] sm:$0xff]
      %v3615 = vld [vmem:[#allocation2 + $0x58] sm:$0xff]
      %v3616 = vld [vmem:[#allocation2 + $0x60] sm:$0xff]
      %v3617 = vld [vmem:[#allocation2 + $0x68] sm:$0xff]
      %v3618 = vld [vmem:[#allocation2 + $0x70] sm:$0xff]
      %v3619 = vld [vmem:[#allocation2 + $0x78] sm:$0xff]
      %v3620 = vld [vmem:[#allocation2 + $0x80] sm:$0xff]
      %v3621 = vld [vmem:[#allocation2 + $0x88] sm:$0xff]
      %v3622 = vld [vmem:[#allocation2 + $0x90] sm:$0xff]
      %v3623 = vld [vmem:[#allocation2 + $0x98] sm:$0xff]
      %v3624 = vld [vmem:[#allocation2 + $0xa0] sm:$0xff]
      %v3625 = vld [vmem:[#allocation2 + $0xa8] sm:$0xff]
      %v3626 = vld [vmem:[#allocation2 + $0xb0] sm:$0xff]
      %v3627 = vld [vmem:[#allocation2 + $0xb8] sm:$0xff]
      %v3628 = vld [vmem:[#allocation2 + $0xc0] sm:$0xff]
      %v3629 = vld [vmem:[#allocation2 + $0xc8] sm:$0xff]
      %v3630 = vld [vmem:[#allocation2 + $0xd0] sm:$0xff]
      %v3631 = vld [vmem:[#allocation2 + $0xd8] sm:$0xff]
      %v3632 = vld [vmem:[#allocation2 + $0xe0] sm:$0xff]
      %v3633 = vld [vmem:[#allocation2 + $0xe8] sm:$0xff]
      %v3634 = vld [vmem:[#allocation2 + $0xf0] sm:$0xff]
      %v3635 = vld [vmem:[#allocation2 + $0xf8] sm:$0xff]
      %v3636 = vld [vmem:[#allocation2 + $0x100] sm:$0xff]
      %v3637 = vld [vmem:[#allocation2 + $0x108] sm:$0xff]
      %v3638 = vld [vmem:[#allocation2 + $0x110] sm:$0xff]
      %v3639 = vld [vmem:[#allocation2 + $0x118] sm:$0xff]
      %v3640 = vadd.f32 %v3604, %v3426
      %v3641 = vadd.f32 %v3605, %v3431
      %v3642 = vadd.f32 %v3606, %v3436
      %v3643 = vadd.f32 %v3607, %v3441
      %v3644 = vadd.f32 %v3608, %v3446
      %v3645 = vadd.f32 %v3609, %v3451
      %v3646 = vadd.f32 %v3610, %v3456
      %v3647 = vadd.f32 %v3611, %v3461
      %v3648 = vadd.f32 %v3612, %v3466
      %v3649 = vadd.f32 %v3613, %v3471
      %v3650 = vadd.f32 %v3614, %v3476
      %v3651 = vadd.f32 %v3615, %v3481
      %v3652 = vadd.f32 %v3616, %v3486
      %v3653 = vadd.f32 %v3617, %v3491
      %v3654 = vadd.f32 %v3618, %v3496
      %v3655 = vadd.f32 %v3619, %v3501
      %v3656 = vadd.f32 %v3620, %v3506
      %v3657 = vadd.f32 %v3621, %v3511
      %v3658 = vadd.f32 %v3622, %v3516
      %v3659 = vadd.f32 %v3623, %v3521
      %v3660 = vadd.f32 %v3624, %v3526
      %v3661 = vadd.f32 %v3625, %v3531
      %v3662 = vadd.f32 %v3626, %v3536
      %v3663 = vadd.f32 %v3627, %v3541
      %v3664 = vadd.f32 %v3628, %v3546
      %v3665 = vadd.f32 %v3629, %v3551
      %v3666 = vadd.f32 %v3630, %v3556
      %v3667 = vadd.f32 %v3631, %v3561
      %v3668 = vadd.f32 %v3632, %v3566
      %v3669 = vadd.f32 %v3633, %v3571
      %v3670 = vadd.f32 %v3634, %v3576
      %v3671 = vadd.f32 %v3635, %v3581
      %v3672 = vadd.f32 %v3636, %v3586
      %v3673 = vadd.f32 %v3637, %v3591
      %v3674 = vadd.f32 %v3638, %v3596
      %v3675 = vadd.f32 %v3639, %v3601
      %3676 = vst [vmem:[#allocation2] sm:$0xff] %v3640
      %3677 = vst [vmem:[#allocation2 + $0x8] sm:$0xff] %v3641
      %3678 = vst [vmem:[#allocation2 + $0x10] sm:$0xff] %v3642
      %3679 = vst [vmem:[#allocation2 + $0x18] sm:$0xff] %v3643
      %3680 = vst [vmem:[#allocation2 + $0x20] sm:$0xff] %v3644
      %3681 = vst [vmem:[#allocation2 + $0x28] sm:$0xff] %v3645
      %3682 = vst [vmem:[#allocation2 + $0x30] sm:$0xff] %v3646
      %3683 = vst [vmem:[#allocation2 + $0x38] sm:$0xff] %v3647
      %3684 = vst [vmem:[#allocation2 + $0x40] sm:$0xff] %v3648
      %3685 = vst [vmem:[#allocation2 + $0x48] sm:$0xff] %v3649
      %3686 = vst [vmem:[#allocation2 + $0x50] sm:$0xff] %v3650
      %3687 = vst [vmem:[#allocation2 + $0x58] sm:$0xff] %v3651
      %3688 = vst [vmem:[#allocation2 + $0x60] sm:$0xff] %v3652
      %3689 = vst [vmem:[#allocation2 + $0x68] sm:$0xff] %v3653
      %3690 = vst [vmem:[#allocation2 + $0x70] sm:$0xff] %v3654
      %3691 = vst [vmem:[#allocation2 + $0x78] sm:$0xff] %v3655
      %3692 = vst [vmem:[#allocation2 + $0x80] sm:$0xff] %v3656
      %3693 = vst [vmem:[#allocation2 + $0x88] sm:$0xff] %v3657
      %3694 = vst [vmem:[#allocation2 + $0x90] sm:$0xff] %v3658
      %3695 = vst [vmem:[#allocation2 + $0x98] sm:$0xff] %v3659
      %3696 = vst [vmem:[#allocation2 + $0xa0] sm:$0xff] %v3660
      %3697 = vst [vmem:[#allocation2 + $0xa8] sm:$0xff] %v3661
      %3698 = vst [vmem:[#allocation2 + $0xb0] sm:$0xff] %v3662
      %3699 = vst [vmem:[#allocation2 + $0xb8] sm:$0xff] %v3663
      %3700 = vst [vmem:[#allocation2 + $0xc0] sm:$0xff] %v3664
      %3701 = vst [vmem:[#allocation2 + $0xc8] sm:$0xff] %v3665
      %3702 = vst [vmem:[#allocation2 + $0xd0] sm:$0xff] %v3666
      %3703 = vst [vmem:[#allocation2 + $0xd8] sm:$0xff] %v3667
      %3704 = vst [vmem:[#allocation2 + $0xe0] sm:$0xff] %v3668
      %3705 = vst [vmem:[#allocation2 + $0xe8] sm:$0xff] %v3669
      %3706 = vst [vmem:[#allocation2 + $0xf0] sm:$0xff] %v3670
      %3707 = vst [vmem:[#allocation2 + $0xf8] sm:$0xff] %v3671
      %3708 = vst [vmem:[#allocation2 + $0x100] sm:$0xff] %v3672
      %3709 = vst [vmem:[#allocation2 + $0x108] sm:$0xff] %v3673
      %3710 = vst [vmem:[#allocation2 + $0x110] sm:$0xff] %v3674
      %3711 = vst [vmem:[#allocation2 + $0x118] sm:$0xff] %v3675
      %v3712 = vld [vmem:[%s257 + $0x25] sm:$0xff]
      %v3713 = vld [vmem:[%s257 + $0x2d] sm:$0xff]
      %v3714 = vld [vmem:[%s257 + $0x35] sm:$0xff]
      %v3715 = vld [vmem:[%s257 + $0x3d] sm:$0xff]
      %v3716 = vld [vmem:[%s257 + $0x45] sm:$0xff]
      %v3717 = vld [vmem:[%s257 + $0x4d] sm:$0xff]
      %v3718 = vld [vmem:[%s257 + $0x55] sm:$0xff]
      %v3719 = vld [vmem:[%s257 + $0x5d] sm:$0xff]
      %v3720 = vld [vmem:[%s257 + $0x65] sm:$0xff]
      %v3721 = vld [vmem:[%s257 + $0x6d] sm:$0xff]
      %v3722 = vld [vmem:[%s257 + $0x75] sm:$0xff]
      %v3723 = vld [vmem:[%s257 + $0x7d] sm:$0xff]
      %v3724 = vld [vmem:[%s257 + $0x85] sm:$0xff]
      %v3725 = vld [vmem:[%s257 + $0x8d] sm:$0xff]
      %v3726 = vld [vmem:[%s257 + $0x95] sm:$0xff]
      %v3727 = vld [vmem:[%s257 + $0x9d] sm:$0xff]
      %v3728 = vld [vmem:[%s257 + $0xa5] sm:$0xff]
      %v3729 = vld [vmem:[%s257 + $0xad] sm:$0xff]
      %v3730 = vld [vmem:[%s257 + $0xb5] sm:$0xff]
      %v3731 = vld [vmem:[%s257 + $0xbd] sm:$0xff]
      %v3732 = vld [vmem:[%s257 + $0xc5] sm:$0xff]
      %v3733 = vld [vmem:[%s257 + $0xcd] sm:$0xff]
      %v3734 = vld [vmem:[%s257 + $0xd5] sm:$0xff]
      %v3735 = vld [vmem:[%s257 + $0xdd] sm:$0xff]
      %v3736 = vld [vmem:[%s257 + $0xe5] sm:$0xff]
      %v3737 = vld [vmem:[%s257 + $0xed] sm:$0xff]
      %v3738 = vld [vmem:[%s257 + $0xf5] sm:$0xff]
      %v3739 = vld [vmem:[%s257 + $0xfd] sm:$0xff]
      %v3740 = vld [vmem:[%s257 + $0x105] sm:$0xff]
      %v3741 = vld [vmem:[%s257 + $0x10d] sm:$0xff]
      %v3742 = vld [vmem:[%s257 + $0x115] sm:$0xff]
      %v3743 = vld [vmem:[%s257 + $0x11d] sm:$0xff]
      %v3744 = vld [vmem:[%s257 + $0x125] sm:$0xff]
      %v3745 = vld [vmem:[%s257 + $0x12d] sm:$0xff]
      %v3746 = vld [vmem:[%s257 + $0x135] sm:$0xff]
      %v3747 = vld [vmem:[%s257 + $0x13d] sm:$0xff]
      %s3748 = scalar_lea.vmem %s1, 28
      %v3749 = vld [vmem:[%s3748] sm:$0xf]
      %v3751 = vsel %vm306, %v3712, 0
      %v3754 = vsel %vm306, %v3713, 0
      %v3757 = vsel %vm306, %v3714, 0
      %v3760 = vsel %vm306, %v3715, 0
      %v3763 = vsel %vm306, %v3716, 0
      %v3766 = vsel %vm306, %v3717, 0
      %v3769 = vsel %vm306, %v3718, 0
      %v3772 = vsel %vm306, %v3719, 0
      %v3775 = vsel %vm306, %v3720, 0
      %v3778 = vsel %vm306, %v3721, 0
      %v3781 = vsel %vm306, %v3722, 0
      %v3784 = vsel %vm306, %v3723, 0
      %v3787 = vsel %vm306, %v3724, 0
      %v3790 = vsel %vm306, %v3725, 0
      %v3793 = vsel %vm306, %v3726, 0
      %v3796 = vsel %vm306, %v3727, 0
      %v3799 = vsel %vm306, %v3728, 0
      %v3802 = vsel %vm306, %v3729, 0
      %v3805 = vsel %vm306, %v3730, 0
      %v3808 = vsel %vm306, %v3731, 0
      %v3811 = vsel %vm306, %v3732, 0
      %v3814 = vsel %vm306, %v3733, 0
      %v3817 = vsel %vm306, %v3734, 0
      %v3820 = vsel %vm306, %v3735, 0
      %v3823 = vsel %vm306, %v3736, 0
      %v3826 = vsel %vm306, %v3737, 0
      %v3829 = vsel %vm306, %v3738, 0
      %v3832 = vsel %vm306, %v3739, 0
      %v3835 = vsel %vm306, %v3740, 0
      %v3838 = vsel %vm306, %v3741, 0
      %v3841 = vsel %vm306, %v3742, 0
      %v3844 = vsel %vm306, %v3743, 0
      %v3847 = vsel %vm306, %v3744, 0
      %v3850 = vsel %vm306, %v3745, 0
      %v3853 = vsel %vm306, %v3746, 0
      %v3856 = vsel %vm306, %v3747, 0
      %v3859 = vsel %vm415, %v3749, 0
      %3861 = vmatprep.subr.mxu0 0.0
      %3862 = vmatpush1.msra.mxu0 %v3859
      %3863 = vmatprep.subr.mxu0 0.0
      %3864 = vmatpush1.msra.mxu0 0.0
      %3865 = vmatprep.subr.mxu0 0.0
      %3866 = vmatpush1.msra.mxu0 0.0
      %3867 = vmatprep.subr.mxu0 0.0
      %3868 = vmatpush1.msra.mxu0 0.0
      %3869 = vmatprep.subr.mxu0 0.0
      %3870 = vmatpush1.msra.mxu0 0.0
      %3871 = vmatprep.subr.mxu0 0.0
      %3872 = vmatpush1.msra.mxu0 0.0
      %3873 = vmatprep.subr.mxu0 0.0
      %3874 = vmatpush1.msra.mxu0 0.0
      %3875 = vmatprep.subr.mxu0 0.0
      %3876 = vmatpush1.msra.mxu0 0.0
      %3877 = vmatprep.subr.mxu0 0.0
      %3878 = vmatpush1.msra.mxu0 0.0
      %3879 = vmatprep.subr.mxu0 0.0
      %3880 = vmatpush1.msra.mxu0 0.0
      %3881 = vmatprep.subr.mxu0 0.0
      %3882 = vmatpush1.msra.mxu0 0.0
      %3883 = vmatprep.subr.mxu0 0.0
      %3884 = vmatpush1.msra.mxu0 0.0
      %3885 = vmatprep.subr.mxu0 0.0
      %3886 = vmatpush1.msra.mxu0 0.0
      %3887 = vmatprep.subr.mxu0 0.0
      %3888 = vmatpush1.msra.mxu0 0.0
      %3889 = vmatprep.subr.mxu0 0.0
      %3890 = vmatpush1.msra.mxu0 0.0
      %3891 = vmatprep.subr.mxu0 0.0
      %3892 = vmatpush1.msra.mxu0 0.0
      %3893 = vmatprep.subr.mxu0 0.0
      %3894 = vmatpush1.msra.mxu0 0.0
      %3895 = vmatprep.subr.mxu0 0.0
      %3896 = vmatpush1.msra.mxu0 0.0
      %3897 = vmatprep.subr.mxu0 0.0
      %3898 = vmatpush1.msra.mxu0 0.0
      %3899 = vmatprep.subr.mxu0 0.0
      %3900 = vmatpush1.msra.mxu0 0.0
      %3901 = vmatprep.subr.mxu0 0.0
      %3902 = vmatpush1.msra.mxu0 0.0
      %3903 = vmatprep.subr.mxu0 0.0
      %3904 = vmatpush1.msra.mxu0 0.0
      %3905 = vmatprep.subr.mxu0 0.0
      %3906 = vmatpush1.msra.mxu0 0.0
      %3907 = vmatprep.subr.mxu0 0.0
      %3908 = vmatpush1.msra.mxu0 0.0
      %3909 = vmatprep.subr.mxu0 0.0
      %3910 = vmatpush1.msra.mxu0 0.0
      %3911 = vmatprep.subr.mxu0 0.0
      %3912 = vmatpush1.msra.mxu0 0.0
      %3913 = vmatprep.subr.mxu0 0.0
      %3914 = vmatpush1.msra.mxu0 0.0
      %3915 = vmatprep.subr.mxu0 0.0
      %3916 = vmatpush1.msra.mxu0 0.0
      %3917 = vmatprep.subr.mxu0 0.0
      %3918 = vmatpush1.msra.mxu0 0.0
      %3919 = vmatprep.subr.mxu0 0.0
      %3920 = vmatpush1.msra.mxu0 0.0
      %3921 = vmatprep.subr.mxu0 0.0
      %3922 = vmatpush1.msra.mxu0 0.0
      %3923 = vmatprep.subr.mxu0 0.0
      %3924 = vmatpush1.msra.mxu0 0.0
      %3925 = vmatprep.mubr.f32.mxu0 0.0
      %3926 = vmatmul.mubr.f32.gmra.mrb[0].mxu0 %v3751
      %v3927 = vpop.f32.mrb[0].mxu0
      %v3928 = vadd.f32 0.0, %v3927
      %v3929 = vpop.f32.mrb[0].mxu0
      %3930 = vmatprep.mubr.f32.mxu0 0.0
      %3931 = vmatmul.mubr.f32.gmra.mrb[0].mxu0 %v3754
      %v3932 = vpop.f32.mrb[0].mxu0
      %v3933 = vadd.f32 0.0, %v3932
      %v3934 = vpop.f32.mrb[0].mxu0
      %3935 = vmatprep.mubr.f32.mxu0 0.0
      %3936 = vmatmul.mubr.f32.gmra.mrb[0].mxu0 %v3757
      %v3937 = vpop.f32.mrb[0].mxu0
      %v3938 = vadd.f32 0.0, %v3937
      %v3939 = vpop.f32.mrb[0].mxu0
      %3940 = vmatprep.mubr.f32.mxu0 0.0
      %3941 = vmatmul.mubr.f32.gmra.mrb[0].mxu0 %v3760
      %v3942 = vpop.f32.mrb[0].mxu0
      %v3943 = vadd.f32 0.0, %v3942
      %v3944 = vpop.f32.mrb[0].mxu0
      %3945 = vmatprep.mubr.f32.mxu0 0.0
      %3946 = vmatmul.mubr.f32.gmra.mrb[0].mxu0 %v3763
      %v3947 = vpop.f32.mrb[0].mxu0
      %v3948 = vadd.f32 0.0, %v3947
      %v3949 = vpop.f32.mrb[0].mxu0
      %3950 = vmatprep.mubr.f32.mxu0 0.0
      %3951 = vmatmul.mubr.f32.gmra.mrb[0].mxu0 %v3766
      %v3952 = vpop.f32.mrb[0].mxu0
      %v3953 = vadd.f32 0.0, %v3952
      %v3954 = vpop.f32.mrb[0].mxu0
      %3955 = vmatprep.mubr.f32.mxu0 0.0
      %3956 = vmatmul.mubr.f32.gmra.mrb[0].mxu0 %v3769
      %v3957 = vpop.f32.mrb[0].mxu0
      %v3958 = vadd.f32 0.0, %v3957
      %v3959 = vpop.f32.mrb[0].mxu0
      %3960 = vmatprep.mubr.f32.mxu0 0.0
      %3961 = vmatmul.mubr.f32.gmra.mrb[0].mxu0 %v3772
      %v3962 = vpop.f32.mrb[0].mxu0
      %v3963 = vadd.f32 0.0, %v3962
      %v3964 = vpop.f32.mrb[0].mxu0
      %3965 = vmatprep.mubr.f32.mxu0 0.0
      %3966 = vmatmul.mubr.f32.gmra.mrb[0].mxu0 %v3775
      %v3967 = vpop.f32.mrb[0].mxu0
      %v3968 = vadd.f32 0.0, %v3967
      %v3969 = vpop.f32.mrb[0].mxu0
      %3970 = vmatprep.mubr.f32.mxu0 0.0
      %3971 = vmatmul.mubr.f32.gmra.mrb[0].mxu0 %v3778
      %v3972 = vpop.f32.mrb[0].mxu0
      %v3973 = vadd.f32 0.0, %v3972
      %v3974 = vpop.f32.mrb[0].mxu0
      %3975 = vmatprep.mubr.f32.mxu0 0.0
      %3976 = vmatmul.mubr.f32.gmra.mrb[0].mxu0 %v3781
      %v3977 = vpop.f32.mrb[0].mxu0
      %v3978 = vadd.f32 0.0, %v3977
      %v3979 = vpop.f32.mrb[0].mxu0
      %3980 = vmatprep.mubr.f32.mxu0 0.0
      %3981 = vmatmul.mubr.f32.gmra.mrb[0].mxu0 %v3784
      %v3982 = vpop.f32.mrb[0].mxu0
      %v3983 = vadd.f32 0.0, %v3982
      %v3984 = vpop.f32.mrb[0].mxu0
      %3985 = vmatprep.mubr.f32.mxu0 0.0
      %3986 = vmatmul.mubr.f32.gmra.mrb[0].mxu0 %v3787
      %v3987 = vpop.f32.mrb[0].mxu0
      %v3988 = vadd.f32 0.0, %v3987
      %v3989 = vpop.f32.mrb[0].mxu0
      %3990 = vmatprep.mubr.f32.mxu0 0.0
      %3991 = vmatmul.mubr.f32.gmra.mrb[0].mxu0 %v3790
      %v3992 = vpop.f32.mrb[0].mxu0
      %v3993 = vadd.f32 0.0, %v3992
      %v3994 = vpop.f32.mrb[0].mxu0
      %3995 = vmatprep.mubr.f32.mxu0 0.0
      %3996 = vmatmul.mubr.f32.gmra.mrb[0].mxu0 %v3793
      %v3997 = vpop.f32.mrb[0].mxu0
      %v3998 = vadd.f32 0.0, %v3997
      %v3999 = vpop.f32.mrb[0].mxu0
      %4000 = vmatprep.mubr.f32.mxu0 0.0
      %4001 = vmatmul.mubr.f32.gmra.mrb[0].mxu0 %v3796
      %v4002 = vpop.f32.mrb[0].mxu0
      %v4003 = vadd.f32 0.0, %v4002
      %v4004 = vpop.f32.mrb[0].mxu0
      %4005 = vmatprep.mubr.f32.mxu0 0.0
      %4006 = vmatmul.mubr.f32.gmra.mrb[0].mxu0 %v3799
      %v4007 = vpop.f32.mrb[0].mxu0
      %v4008 = vadd.f32 0.0, %v4007
      %v4009 = vpop.f32.mrb[0].mxu0
      %4010 = vmatprep.mubr.f32.mxu0 0.0
      %4011 = vmatmul.mubr.f32.gmra.mrb[0].mxu0 %v3802
      %v4012 = vpop.f32.mrb[0].mxu0
      %v4013 = vadd.f32 0.0, %v4012
      %v4014 = vpop.f32.mrb[0].mxu0
      %4015 = vmatprep.mubr.f32.mxu0 0.0
      %4016 = vmatmul.mubr.f32.gmra.mrb[0].mxu0 %v3805
      %v4017 = vpop.f32.mrb[0].mxu0
      %v4018 = vadd.f32 0.0, %v4017
      %v4019 = vpop.f32.mrb[0].mxu0
      %4020 = vmatprep.mubr.f32.mxu0 0.0
      %4021 = vmatmul.mubr.f32.gmra.mrb[0].mxu0 %v3808
      %v4022 = vpop.f32.mrb[0].mxu0
      %v4023 = vadd.f32 0.0, %v4022
      %v4024 = vpop.f32.mrb[0].mxu0
      %4025 = vmatprep.mubr.f32.mxu0 0.0
      %4026 = vmatmul.mubr.f32.gmra.mrb[0].mxu0 %v3811
      %v4027 = vpop.f32.mrb[0].mxu0
      %v4028 = vadd.f32 0.0, %v4027
      %v4029 = vpop.f32.mrb[0].mxu0
      %4030 = vmatprep.mubr.f32.mxu0 0.0
      %4031 = vmatmul.mubr.f32.gmra.mrb[0].mxu0 %v3814
      %v4032 = vpop.f32.mrb[0].mxu0
      %v4033 = vadd.f32 0.0, %v4032
      %v4034 = vpop.f32.mrb[0].mxu0
      %4035 = vmatprep.mubr.f32.mxu0 0.0
      %4036 = vmatmul.mubr.f32.gmra.mrb[0].mxu0 %v3817
      %v4037 = vpop.f32.mrb[0].mxu0
      %v4038 = vadd.f32 0.0, %v4037
      %v4039 = vpop.f32.mrb[0].mxu0
      %4040 = vmatprep.mubr.f32.mxu0 0.0
      %4041 = vmatmul.mubr.f32.gmra.mrb[0].mxu0 %v3820
      %v4042 = vpop.f32.mrb[0].mxu0
      %v4043 = vadd.f32 0.0, %v4042
      %v4044 = vpop.f32.mrb[0].mxu0
      %4045 = vmatprep.mubr.f32.mxu0 0.0
      %4046 = vmatmul.mubr.f32.gmra.mrb[0].mxu0 %v3823
      %v4047 = vpop.f32.mrb[0].mxu0
      %v4048 = vadd.f32 0.0, %v4047
      %v4049 = vpop.f32.mrb[0].mxu0
      %4050 = vmatprep.mubr.f32.mxu0 0.0
      %4051 = vmatmul.mubr.f32.gmra.mrb[0].mxu0 %v3826
      %v4052 = vpop.f32.mrb[0].mxu0
      %v4053 = vadd.f32 0.0, %v4052
      %v4054 = vpop.f32.mrb[0].mxu0
      %4055 = vmatprep.mubr.f32.mxu0 0.0
      %4056 = vmatmul.mubr.f32.gmra.mrb[0].mxu0 %v3829
      %v4057 = vpop.f32.mrb[0].mxu0
      %v4058 = vadd.f32 0.0, %v4057
      %v4059 = vpop.f32.mrb[0].mxu0
      %4060 = vmatprep.mubr.f32.mxu0 0.0
      %4061 = vmatmul.mubr.f32.gmra.mrb[0].mxu0 %v3832
      %v4062 = vpop.f32.mrb[0].mxu0
      %v4063 = vadd.f32 0.0, %v4062
      %v4064 = vpop.f32.mrb[0].mxu0
      %4065 = vmatprep.mubr.f32.mxu0 0.0
      %4066 = vmatmul.mubr.f32.gmra.mrb[0].mxu0 %v3835
      %v4067 = vpop.f32.mrb[0].mxu0
      %v4068 = vadd.f32 0.0, %v4067
      %v4069 = vpop.f32.mrb[0].mxu0
      %4070 = vmatprep.mubr.f32.mxu0 0.0
      %4071 = vmatmul.mubr.f32.gmra.mrb[0].mxu0 %v3838
      %v4072 = vpop.f32.mrb[0].mxu0
      %v4073 = vadd.f32 0.0, %v4072
      %v4074 = vpop.f32.mrb[0].mxu0
      %4075 = vmatprep.mubr.f32.mxu0 0.0
      %4076 = vmatmul.mubr.f32.gmra.mrb[0].mxu0 %v3841
      %v4077 = vpop.f32.mrb[0].mxu0
      %v4078 = vadd.f32 0.0, %v4077
      %v4079 = vpop.f32.mrb[0].mxu0
      %4080 = vmatprep.mubr.f32.mxu0 0.0
      %4081 = vmatmul.mubr.f32.gmra.mrb[0].mxu0 %v3844
      %v4082 = vpop.f32.mrb[0].mxu0
      %v4083 = vadd.f32 0.0, %v4082
      %v4084 = vpop.f32.mrb[0].mxu0
      %4085 = vmatprep.mubr.f32.mxu0 0.0
      %4086 = vmatmul.mubr.f32.gmra.mrb[0].mxu0 %v3847
      %v4087 = vpop.f32.mrb[0].mxu0
      %v4088 = vadd.f32 0.0, %v4087
      %v4089 = vpop.f32.mrb[0].mxu0
      %4090 = vmatprep.mubr.f32.mxu0 0.0
      %4091 = vmatmul.mubr.f32.gmra.mrb[0].mxu0 %v3850
      %v4092 = vpop.f32.mrb[0].mxu0
      %v4093 = vadd.f32 0.0, %v4092
      %v4094 = vpop.f32.mrb[0].mxu0
      %4095 = vmatprep.mubr.f32.mxu0 0.0
      %4096 = vmatmul.mubr.f32.gmra.mrb[0].mxu0 %v3853
      %v4097 = vpop.f32.mrb[0].mxu0
      %v4098 = vadd.f32 0.0, %v4097
      %v4099 = vpop.f32.mrb[0].mxu0
      %4100 = vmatprep.mubr.f32.mxu0 0.0
      %4101 = vmatmul.mubr.f32.gmra.mrb[0].mxu0 %v3856
      %v4102 = vpop.f32.mrb[0].mxu0
      %v4103 = vadd.f32 0.0, %v4102
      %v4104 = vpop.f32.mrb[0].mxu0
      %4105 = vdwg.mxu0
      %v4106 = vld [vmem:[#allocation2] sm:$0xff]
      %v4107 = vld [vmem:[#allocation2 + $0x8] sm:$0xff]
      %v4108 = vld [vmem:[#allocation2 + $0x10] sm:$0xff]
      %v4109 = vld [vmem:[#allocation2 + $0x18] sm:$0xff]
      %v4110 = vld [vmem:[#allocation2 + $0x20] sm:$0xff]
      %v4111 = vld [vmem:[#allocation2 + $0x28] sm:$0xff]
      %v4112 = vld [vmem:[#allocation2 + $0x30] sm:$0xff]
      %v4113 = vld [vmem:[#allocation2 + $0x38] sm:$0xff]
      %v4114 = vld [vmem:[#allocation2 + $0x40] sm:$0xff]
      %v4115 = vld [vmem:[#allocation2 + $0x48] sm:$0xff]
      %v4116 = vld [vmem:[#allocation2 + $0x50] sm:$0xff]
      %v4117 = vld [vmem:[#allocation2 + $0x58] sm:$0xff]
      %v4118 = vld [vmem:[#allocation2 + $0x60] sm:$0xff]
      %v4119 = vld [vmem:[#allocation2 + $0x68] sm:$0xff]
      %v4120 = vld [vmem:[#allocation2 + $0x70] sm:$0xff]
      %v4121 = vld [vmem:[#allocation2 + $0x78] sm:$0xff]
      %v4122 = vld [vmem:[#allocation2 + $0x80] sm:$0xff]
      %v4123 = vld [vmem:[#allocation2 + $0x88] sm:$0xff]
      %v4124 = vld [vmem:[#allocation2 + $0x90] sm:$0xff]
      %v4125 = vld [vmem:[#allocation2 + $0x98] sm:$0xff]
      %v4126 = vld [vmem:[#allocation2 + $0xa0] sm:$0xff]
      %v4127 = vld [vmem:[#allocation2 + $0xa8] sm:$0xff]
      %v4128 = vld [vmem:[#allocation2 + $0xb0] sm:$0xff]
      %v4129 = vld [vmem:[#allocation2 + $0xb8] sm:$0xff]
      %v4130 = vld [vmem:[#allocation2 + $0xc0] sm:$0xff]
      %v4131 = vld [vmem:[#allocation2 + $0xc8] sm:$0xff]
      %v4132 = vld [vmem:[#allocation2 + $0xd0] sm:$0xff]
      %v4133 = vld [vmem:[#allocation2 + $0xd8] sm:$0xff]
      %v4134 = vld [vmem:[#allocation2 + $0xe0] sm:$0xff]
      %v4135 = vld [vmem:[#allocation2 + $0xe8] sm:$0xff]
      %v4136 = vld [vmem:[#allocation2 + $0xf0] sm:$0xff]
      %v4137 = vld [vmem:[#allocation2 + $0xf8] sm:$0xff]
      %v4138 = vld [vmem:[#allocation2 + $0x100] sm:$0xff]
      %v4139 = vld [vmem:[#allocation2 + $0x108] sm:$0xff]
      %v4140 = vld [vmem:[#allocation2 + $0x110] sm:$0xff]
      %v4141 = vld [vmem:[#allocation2 + $0x118] sm:$0xff]
      %v4142 = vadd.f32 %v4106, %v3928
      %v4143 = vadd.f32 %v4107, %v3933
      %v4144 = vadd.f32 %v4108, %v3938
      %v4145 = vadd.f32 %v4109, %v3943
      %v4146 = vadd.f32 %v4110, %v3948
      %v4147 = vadd.f32 %v4111, %v3953
      %v4148 = vadd.f32 %v4112, %v3958
      %v4149 = vadd.f32 %v4113, %v3963
      %v4150 = vadd.f32 %v4114, %v3968
      %v4151 = vadd.f32 %v4115, %v3973
      %v4152 = vadd.f32 %v4116, %v3978
      %v4153 = vadd.f32 %v4117, %v3983
      %v4154 = vadd.f32 %v4118, %v3988
      %v4155 = vadd.f32 %v4119, %v3993
      %v4156 = vadd.f32 %v4120, %v3998
      %v4157 = vadd.f32 %v4121, %v4003
      %v4158 = vadd.f32 %v4122, %v4008
      %v4159 = vadd.f32 %v4123, %v4013
      %v4160 = vadd.f32 %v4124, %v4018
      %v4161 = vadd.f32 %v4125, %v4023
      %v4162 = vadd.f32 %v4126, %v4028
      %v4163 = vadd.f32 %v4127, %v4033
      %v4164 = vadd.f32 %v4128, %v4038
      %v4165 = vadd.f32 %v4129, %v4043
      %v4166 = vadd.f32 %v4130, %v4048
      %v4167 = vadd.f32 %v4131, %v4053
      %v4168 = vadd.f32 %v4132, %v4058
      %v4169 = vadd.f32 %v4133, %v4063
      %v4170 = vadd.f32 %v4134, %v4068
      %v4171 = vadd.f32 %v4135, %v4073
      %v4172 = vadd.f32 %v4136, %v4078
      %v4173 = vadd.f32 %v4137, %v4083
      %v4174 = vadd.f32 %v4138, %v4088
      %v4175 = vadd.f32 %v4139, %v4093
      %v4176 = vadd.f32 %v4140, %v4098
      %v4177 = vadd.f32 %v4141, %v4103
      %4178 = vst [vmem:[#allocation2] sm:$0xff] %v4142
      %4179 = vst [vmem:[#allocation2 + $0x8] sm:$0xff] %v4143
      %4180 = vst [vmem:[#allocation2 + $0x10] sm:$0xff] %v4144
      %4181 = vst [vmem:[#allocation2 + $0x18] sm:$0xff] %v4145
      %4182 = vst [vmem:[#allocation2 + $0x20] sm:$0xff] %v4146
      %4183 = vst [vmem:[#allocation2 + $0x28] sm:$0xff] %v4147
      %4184 = vst [vmem:[#allocation2 + $0x30] sm:$0xff] %v4148
      %4185 = vst [vmem:[#allocation2 + $0x38] sm:$0xff] %v4149
      %4186 = vst [vmem:[#allocation2 + $0x40] sm:$0xff] %v4150
      %4187 = vst [vmem:[#allocation2 + $0x48] sm:$0xff] %v4151
      %4188 = vst [vmem:[#allocation2 + $0x50] sm:$0xff] %v4152
      %4189 = vst [vmem:[#allocation2 + $0x58] sm:$0xff] %v4153
      %4190 = vst [vmem:[#allocation2 + $0x60] sm:$0xff] %v4154
      %4191 = vst [vmem:[#allocation2 + $0x68] sm:$0xff] %v4155
      %4192 = vst [vmem:[#allocation2 + $0x70] sm:$0xff] %v4156
      %4193 = vst [vmem:[#allocation2 + $0x78] sm:$0xff] %v4157
      %4194 = vst [vmem:[#allocation2 + $0x80] sm:$0xff] %v4158
      %4195 = vst [vmem:[#allocation2 + $0x88] sm:$0xff] %v4159
      %4196 = vst [vmem:[#allocation2 + $0x90] sm:$0xff] %v4160
      %4197 = vst [vmem:[#allocation2 + $0x98] sm:$0xff] %v4161
      %4198 = vst [vmem:[#allocation2 + $0xa0] sm:$0xff] %v4162
      %4199 = vst [vmem:[#allocation2 + $0xa8] sm:$0xff] %v4163
      %4200 = vst [vmem:[#allocation2 + $0xb0] sm:$0xff] %v4164
      %4201 = vst [vmem:[#allocation2 + $0xb8] sm:$0xff] %v4165
      %4202 = vst [vmem:[#allocation2 + $0xc0] sm:$0xff] %v4166
      %4203 = vst [vmem:[#allocation2 + $0xc8] sm:$0xff] %v4167
      %4204 = vst [vmem:[#allocation2 + $0xd0] sm:$0xff] %v4168
      %4205 = vst [vmem:[#allocation2 + $0xd8] sm:$0xff] %v4169
      %4206 = vst [vmem:[#allocation2 + $0xe0] sm:$0xff] %v4170
      %4207 = vst [vmem:[#allocation2 + $0xe8] sm:$0xff] %v4171
      %4208 = vst [vmem:[#allocation2 + $0xf0] sm:$0xff] %v4172
      %4209 = vst [vmem:[#allocation2 + $0xf8] sm:$0xff] %v4173
      %4210 = vst [vmem:[#allocation2 + $0x100] sm:$0xff] %v4174
      %4211 = vst [vmem:[#allocation2 + $0x108] sm:$0xff] %v4175
      %4212 = vst [vmem:[#allocation2 + $0x110] sm:$0xff] %v4176
      %4213 = vst [vmem:[#allocation2 + $0x118] sm:$0xff] %v4177
      %v4214 = vld [vmem:[%s257 + $0x26] sm:$0xff]
      %v4215 = vld [vmem:[%s257 + $0x2e] sm:$0xff]
      %v4216 = vld [vmem:[%s257 + $0x36] sm:$0xff]
      %v4217 = vld [vmem:[%s257 + $0x3e] sm:$0xff]
      %v4218 = vld [vmem:[%s257 + $0x46] sm:$0xff]
      %v4219 = vld [vmem:[%s257 + $0x4e] sm:$0xff]
      %v4220 = vld [vmem:[%s257 + $0x56] sm:$0xff]
      %v4221 = vld [vmem:[%s257 + $0x5e] sm:$0xff]
      %v4222 = vld [vmem:[%s257 + $0x66] sm:$0xff]
      %v4223 = vld [vmem:[%s257 + $0x6e] sm:$0xff]
      %v4224 = vld [vmem:[%s257 + $0x76] sm:$0xff]
      %v4225 = vld [vmem:[%s257 + $0x7e] sm:$0xff]
      %v4226 = vld [vmem:[%s257 + $0x86] sm:$0xff]
      %v4227 = vld [vmem:[%s257 + $0x8e] sm:$0xff]
      %v4228 = vld [vmem:[%s257 + $0x96] sm:$0xff]
      %v4229 = vld [vmem:[%s257 + $0x9e] sm:$0xff]
      %v4230 = vld [vmem:[%s257 + $0xa6] sm:$0xff]
      %v4231 = vld [vmem:[%s257 + $0xae] sm:$0xff]
      %v4232 = vld [vmem:[%s257 + $0xb6] sm:$0xff]
      %v4233 = vld [vmem:[%s257 + $0xbe] sm:$0xff]
      %v4234 = vld [vmem:[%s257 + $0xc6] sm:$0xff]
      %v4235 = vld [vmem:[%s257 + $0xce] sm:$0xff]
      %v4236 = vld [vmem:[%s257 + $0xd6] sm:$0xff]
      %v4237 = vld [vmem:[%s257 + $0xde] sm:$0xff]
      %v4238 = vld [vmem:[%s257 + $0xe6] sm:$0xff]
      %v4239 = vld [vmem:[%s257 + $0xee] sm:$0xff]
      %v4240 = vld [vmem:[%s257 + $0xf6] sm:$0xff]
      %v4241 = vld [vmem:[%s257 + $0xfe] sm:$0xff]
      %v4242 = vld [vmem:[%s257 + $0x106] sm:$0xff]
      %v4243 = vld [vmem:[%s257 + $0x10e] sm:$0xff]
      %v4244 = vld [vmem:[%s257 + $0x116] sm:$0xff]
      %v4245 = vld [vmem:[%s257 + $0x11e] sm:$0xff]
      %v4246 = vld [vmem:[%s257 + $0x126] sm:$0xff]
      %v4247 = vld [vmem:[%s257 + $0x12e] sm:$0xff]
      %v4248 = vld [vmem:[%s257 + $0x136] sm:$0xff]
      %v4249 = vld [vmem:[%s257 + $0x13e] sm:$0xff]
      %s4250 = scalar_lea.vmem %s1, 32
      %v4251 = vld [vmem:[%s4250] sm:$0xf]
      %v4253 = vsel %vm306, %v4214, 0
      %v4256 = vsel %vm306, %v4215, 0
      %v4259 = vsel %vm306, %v4216, 0
      %v4262 = vsel %vm306, %v4217, 0
      %v4265 = vsel %vm306, %v4218, 0
      %v4268 = vsel %vm306, %v4219, 0
      %v4271 = vsel %vm306, %v4220, 0
      %v4274 = vsel %vm306, %v4221, 0
      %v4277 = vsel %vm306, %v4222, 0
      %v4280 = vsel %vm306, %v4223, 0
      %v4283 = vsel %vm306, %v4224, 0
      %v4286 = vsel %vm306, %v4225, 0
      %v4289 = vsel %vm306, %v4226, 0
      %v4292 = vsel %vm306, %v4227, 0
      %v4295 = vsel %vm306, %v4228, 0
      %v4298 = vsel %vm306, %v4229, 0
      %v4301 = vsel %vm306, %v4230, 0
      %v4304 = vsel %vm306, %v4231, 0
      %v4307 = vsel %vm306, %v4232, 0
      %v4310 = vsel %vm306, %v4233, 0
      %v4313 = vsel %vm306, %v4234, 0
      %v4316 = vsel %vm306, %v4235, 0
      %v4319 = vsel %vm306, %v4236, 0
      %v4322 = vsel %vm306, %v4237, 0
      %v4325 = vsel %vm306, %v4238, 0
      %v4328 = vsel %vm306, %v4239, 0
      %v4331 = vsel %vm306, %v4240, 0
      %v4334 = vsel %vm306, %v4241, 0
      %v4337 = vsel %vm306, %v4242, 0
      %v4340 = vsel %vm306, %v4243, 0
      %v4343 = vsel %vm306, %v4244, 0
      %v4346 = vsel %vm306, %v4245, 0
      %v4349 = vsel %vm306, %v4246, 0
      %v4352 = vsel %vm306, %v4247, 0
      %v4355 = vsel %vm306, %v4248, 0
      %v4358 = vsel %vm306, %v4249, 0
      %v4361 = vsel %vm415, %v4251, 0
      %4363 = vmatprep.subr.mxu0 0.0
      %4364 = vmatpush1.msra.mxu0 %v4361
      %4365 = vmatprep.subr.mxu0 0.0
      %4366 = vmatpush1.msra.mxu0 0.0
      %4367 = vmatprep.subr.mxu0 0.0
      %4368 = vmatpush1.msra.mxu0 0.0
      %4369 = vmatprep.subr.mxu0 0.0
      %4370 = vmatpush1.msra.mxu0 0.0
      %4371 = vmatprep.subr.mxu0 0.0
      %4372 = vmatpush1.msra.mxu0 0.0
      %4373 = vmatprep.subr.mxu0 0.0
      %4374 = vmatpush1.msra.mxu0 0.0
      %4375 = vmatprep.subr.mxu0 0.0
      %4376 = vmatpush1.msra.mxu0 0.0
      %4377 = vmatprep.subr.mxu0 0.0
      %4378 = vmatpush1.msra.mxu0 0.0
      %4379 = vmatprep.subr.mxu0 0.0
      %4380 = vmatpush1.msra.mxu0 0.0
      %4381 = vmatprep.subr.mxu0 0.0
      %4382 = vmatpush1.msra.mxu0 0.0
      %4383 = vmatprep.subr.mxu0 0.0
      %4384 = vmatpush1.msra.mxu0 0.0
      %4385 = vmatprep.subr.mxu0 0.0
      %4386 = vmatpush1.msra.mxu0 0.0
      %4387 = vmatprep.subr.mxu0 0.0
      %4388 = vmatpush1.msra.mxu0 0.0
      %4389 = vmatprep.subr.mxu0 0.0
      %4390 = vmatpush1.msra.mxu0 0.0
      %4391 = vmatprep.subr.mxu0 0.0
      %4392 = vmatpush1.msra.mxu0 0.0
      %4393 = vmatprep.subr.mxu0 0.0
      %4394 = vmatpush1.msra.mxu0 0.0
      %4395 = vmatprep.subr.mxu0 0.0
      %4396 = vmatpush1.msra.mxu0 0.0
      %4397 = vmatprep.subr.mxu0 0.0
      %4398 = vmatpush1.msra.mxu0 0.0
      %4399 = vmatprep.subr.mxu0 0.0
      %4400 = vmatpush1.msra.mxu0 0.0
      %4401 = vmatprep.subr.mxu0 0.0
      %4402 = vmatpush1.msra.mxu0 0.0
      %4403 = vmatprep.subr.mxu0 0.0
      %4404 = vmatpush1.msra.mxu0 0.0
      %4405 = vmatprep.subr.mxu0 0.0
      %4406 = vmatpush1.msra.mxu0 0.0
      %4407 = vmatprep.subr.mxu0 0.0
      %4408 = vmatpush1.msra.mxu0 0.0
      %4409 = vmatprep.subr.mxu0 0.0
      %4410 = vmatpush1.msra.mxu0 0.0
      %4411 = vmatprep.subr.mxu0 0.0
      %4412 = vmatpush1.msra.mxu0 0.0
      %4413 = vmatprep.subr.mxu0 0.0
      %4414 = vmatpush1.msra.mxu0 0.0
      %4415 = vmatprep.subr.mxu0 0.0
      %4416 = vmatpush1.msra.mxu0 0.0
      %4417 = vmatprep.subr.mxu0 0.0
      %4418 = vmatpush1.msra.mxu0 0.0
      %4419 = vmatprep.subr.mxu0 0.0
      %4420 = vmatpush1.msra.mxu0 0.0
      %4421 = vmatprep.subr.mxu0 0.0
      %4422 = vmatpush1.msra.mxu0 0.0
      %4423 = vmatprep.subr.mxu0 0.0
      %4424 = vmatpush1.msra.mxu0 0.0
      %4425 = vmatprep.subr.mxu0 0.0
      %4426 = vmatpush1.msra.mxu0 0.0
      %4427 = vmatprep.mubr.f32.mxu0 0.0
      %4428 = vmatmul.mubr.f32.gmra.mrb[0].mxu0 %v4253
      %v4429 = vpop.f32.mrb[0].mxu0
      %v4430 = vadd.f32 0.0, %v4429
      %v4431 = vpop.f32.mrb[0].mxu0
      %4432 = vmatprep.mubr.f32.mxu0 0.0
      %4433 = vmatmul.mubr.f32.gmra.mrb[0].mxu0 %v4256
      %v4434 = vpop.f32.mrb[0].mxu0
      %v4435 = vadd.f32 0.0, %v4434
      %v4436 = vpop.f32.mrb[0].mxu0
      %4437 = vmatprep.mubr.f32.mxu0 0.0
      %4438 = vmatmul.mubr.f32.gmra.mrb[0].mxu0 %v4259
      %v4439 = vpop.f32.mrb[0].mxu0
      %v4440 = vadd.f32 0.0, %v4439
      %v4441 = vpop.f32.mrb[0].mxu0
      %4442 = vmatprep.mubr.f32.mxu0 0.0
      %4443 = vmatmul.mubr.f32.gmra.mrb[0].mxu0 %v4262
      %v4444 = vpop.f32.mrb[0].mxu0
      %v4445 = vadd.f32 0.0, %v4444
      %v4446 = vpop.f32.mrb[0].mxu0
      %4447 = vmatprep.mubr.f32.mxu0 0.0
      %4448 = vmatmul.mubr.f32.gmra.mrb[0].mxu0 %v4265
      %v4449 = vpop.f32.mrb[0].mxu0
      %v4450 = vadd.f32 0.0, %v4449
      %v4451 = vpop.f32.mrb[0].mxu0
      %4452 = vmatprep.mubr.f32.mxu0 0.0
      %4453 = vmatmul.mubr.f32.gmra.mrb[0].mxu0 %v4268
      %v4454 = vpop.f32.mrb[0].mxu0
      %v4455 = vadd.f32 0.0, %v4454
      %v4456 = vpop.f32.mrb[0].mxu0
      %4457 = vmatprep.mubr.f32.mxu0 0.0
      %4458 = vmatmul.mubr.f32.gmra.mrb[0].mxu0 %v4271
      %v4459 = vpop.f32.mrb[0].mxu0
      %v4460 = vadd.f32 0.0, %v4459
      %v4461 = vpop.f32.mrb[0].mxu0
      %4462 = vmatprep.mubr.f32.mxu0 0.0
      %4463 = vmatmul.mubr.f32.gmra.mrb[0].mxu0 %v4274
      %v4464 = vpop.f32.mrb[0].mxu0
      %v4465 = vadd.f32 0.0, %v4464
      %v4466 = vpop.f32.mrb[0].mxu0
      %4467 = vmatprep.mubr.f32.mxu0 0.0
      %4468 = vmatmul.mubr.f32.gmra.mrb[0].mxu0 %v4277
      %v4469 = vpop.f32.mrb[0].mxu0
      %v4470 = vadd.f32 0.0, %v4469
      %v4471 = vpop.f32.mrb[0].mxu0
      %4472 = vmatprep.mubr.f32.mxu0 0.0
      %4473 = vmatmul.mubr.f32.gmra.mrb[0].mxu0 %v4280
      %v4474 = vpop.f32.mrb[0].mxu0
      %v4475 = vadd.f32 0.0, %v4474
      %v4476 = vpop.f32.mrb[0].mxu0
      %4477 = vmatprep.mubr.f32.mxu0 0.0
      %4478 = vmatmul.mubr.f32.gmra.mrb[0].mxu0 %v4283
      %v4479 = vpop.f32.mrb[0].mxu0
      %v4480 = vadd.f32 0.0, %v4479
      %v4481 = vpop.f32.mrb[0].mxu0
      %4482 = vmatprep.mubr.f32.mxu0 0.0
      %4483 = vmatmul.mubr.f32.gmra.mrb[0].mxu0 %v4286
      %v4484 = vpop.f32.mrb[0].mxu0
      %v4485 = vadd.f32 0.0, %v4484
      %v4486 = vpop.f32.mrb[0].mxu0
      %4487 = vmatprep.mubr.f32.mxu0 0.0
      %4488 = vmatmul.mubr.f32.gmra.mrb[0].mxu0 %v4289
      %v4489 = vpop.f32.mrb[0].mxu0
      %v4490 = vadd.f32 0.0, %v4489
      %v4491 = vpop.f32.mrb[0].mxu0
      %4492 = vmatprep.mubr.f32.mxu0 0.0
      %4493 = vmatmul.mubr.f32.gmra.mrb[0].mxu0 %v4292
      %v4494 = vpop.f32.mrb[0].mxu0
      %v4495 = vadd.f32 0.0, %v4494
      %v4496 = vpop.f32.mrb[0].mxu0
      %4497 = vmatprep.mubr.f32.mxu0 0.0
      %4498 = vmatmul.mubr.f32.gmra.mrb[0].mxu0 %v4295
      %v4499 = vpop.f32.mrb[0].mxu0
      %v4500 = vadd.f32 0.0, %v4499
      %v4501 = vpop.f32.mrb[0].mxu0
      %4502 = vmatprep.mubr.f32.mxu0 0.0
      %4503 = vmatmul.mubr.f32.gmra.mrb[0].mxu0 %v4298
      %v4504 = vpop.f32.mrb[0].mxu0
      %v4505 = vadd.f32 0.0, %v4504
      %v4506 = vpop.f32.mrb[0].mxu0
      %4507 = vmatprep.mubr.f32.mxu0 0.0
      %4508 = vmatmul.mubr.f32.gmra.mrb[0].mxu0 %v4301
      %v4509 = vpop.f32.mrb[0].mxu0
      %v4510 = vadd.f32 0.0, %v4509
      %v4511 = vpop.f32.mrb[0].mxu0
      %4512 = vmatprep.mubr.f32.mxu0 0.0
      %4513 = vmatmul.mubr.f32.gmra.mrb[0].mxu0 %v4304
      %v4514 = vpop.f32.mrb[0].mxu0
      %v4515 = vadd.f32 0.0, %v4514
      %v4516 = vpop.f32.mrb[0].mxu0
      %4517 = vmatprep.mubr.f32.mxu0 0.0
      %4518 = vmatmul.mubr.f32.gmra.mrb[0].mxu0 %v4307
      %v4519 = vpop.f32.mrb[0].mxu0
      %v4520 = vadd.f32 0.0, %v4519
      %v4521 = vpop.f32.mrb[0].mxu0
      %4522 = vmatprep.mubr.f32.mxu0 0.0
      %4523 = vmatmul.mubr.f32.gmra.mrb[0].mxu0 %v4310
      %v4524 = vpop.f32.mrb[0].mxu0
      %v4525 = vadd.f32 0.0, %v4524
      %v4526 = vpop.f32.mrb[0].mxu0
      %4527 = vmatprep.mubr.f32.mxu0 0.0
      %4528 = vmatmul.mubr.f32.gmra.mrb[0].mxu0 %v4313
      %v4529 = vpop.f32.mrb[0].mxu0
      %v4530 = vadd.f32 0.0, %v4529
      %v4531 = vpop.f32.mrb[0].mxu0
      %4532 = vmatprep.mubr.f32.mxu0 0.0
      %4533 = vmatmul.mubr.f32.gmra.mrb[0].mxu0 %v4316
      %v4534 = vpop.f32.mrb[0].mxu0
      %v4535 = vadd.f32 0.0, %v4534
      %v4536 = vpop.f32.mrb[0].mxu0
      %4537 = vmatprep.mubr.f32.mxu0 0.0
      %4538 = vmatmul.mubr.f32.gmra.mrb[0].mxu0 %v4319
      %v4539 = vpop.f32.mrb[0].mxu0
      %v4540 = vadd.f32 0.0, %v4539
      %v4541 = vpop.f32.mrb[0].mxu0
      %4542 = vmatprep.mubr.f32.mxu0 0.0
      %4543 = vmatmul.mubr.f32.gmra.mrb[0].mxu0 %v4322
      %v4544 = vpop.f32.mrb[0].mxu0
      %v4545 = vadd.f32 0.0, %v4544
      %v4546 = vpop.f32.mrb[0].mxu0
      %4547 = vmatprep.mubr.f32.mxu0 0.0
      %4548 = vmatmul.mubr.f32.gmra.mrb[0].mxu0 %v4325
      %v4549 = vpop.f32.mrb[0].mxu0
      %v4550 = vadd.f32 0.0, %v4549
      %v4551 = vpop.f32.mrb[0].mxu0
      %4552 = vmatprep.mubr.f32.mxu0 0.0
      %4553 = vmatmul.mubr.f32.gmra.mrb[0].mxu0 %v4328
      %v4554 = vpop.f32.mrb[0].mxu0
      %v4555 = vadd.f32 0.0, %v4554
      %v4556 = vpop.f32.mrb[0].mxu0
      %4557 = vmatprep.mubr.f32.mxu0 0.0
      %4558 = vmatmul.mubr.f32.gmra.mrb[0].mxu0 %v4331
      %v4559 = vpop.f32.mrb[0].mxu0
      %v4560 = vadd.f32 0.0, %v4559
      %v4561 = vpop.f32.mrb[0].mxu0
      %4562 = vmatprep.mubr.f32.mxu0 0.0
      %4563 = vmatmul.mubr.f32.gmra.mrb[0].mxu0 %v4334
      %v4564 = vpop.f32.mrb[0].mxu0
      %v4565 = vadd.f32 0.0, %v4564
      %v4566 = vpop.f32.mrb[0].mxu0
      %4567 = vmatprep.mubr.f32.mxu0 0.0
      %4568 = vmatmul.mubr.f32.gmra.mrb[0].mxu0 %v4337
      %v4569 = vpop.f32.mrb[0].mxu0
      %v4570 = vadd.f32 0.0, %v4569
      %v4571 = vpop.f32.mrb[0].mxu0
      %4572 = vmatprep.mubr.f32.mxu0 0.0
      %4573 = vmatmul.mubr.f32.gmra.mrb[0].mxu0 %v4340
      %v4574 = vpop.f32.mrb[0].mxu0
      %v4575 = vadd.f32 0.0, %v4574
      %v4576 = vpop.f32.mrb[0].mxu0
      %4577 = vmatprep.mubr.f32.mxu0 0.0
      %4578 = vmatmul.mubr.f32.gmra.mrb[0].mxu0 %v4343
      %v4579 = vpop.f32.mrb[0].mxu0
      %v4580 = vadd.f32 0.0, %v4579
      %v4581 = vpop.f32.mrb[0].mxu0
      %4582 = vmatprep.mubr.f32.mxu0 0.0
      %4583 = vmatmul.mubr.f32.gmra.mrb[0].mxu0 %v4346
      %v4584 = vpop.f32.mrb[0].mxu0
      %v4585 = vadd.f32 0.0, %v4584
      %v4586 = vpop.f32.mrb[0].mxu0
      %4587 = vmatprep.mubr.f32.mxu0 0.0
      %4588 = vmatmul.mubr.f32.gmra.mrb[0].mxu0 %v4349
      %v4589 = vpop.f32.mrb[0].mxu0
      %v4590 = vadd.f32 0.0, %v4589
      %v4591 = vpop.f32.mrb[0].mxu0
      %4592 = vmatprep.mubr.f32.mxu0 0.0
      %4593 = vmatmul.mubr.f32.gmra.mrb[0].mxu0 %v4352
      %v4594 = vpop.f32.mrb[0].mxu0
      %v4595 = vadd.f32 0.0, %v4594
      %v4596 = vpop.f32.mrb[0].mxu0
      %4597 = vmatprep.mubr.f32.mxu0 0.0
      %4598 = vmatmul.mubr.f32.gmra.mrb[0].mxu0 %v4355
      %v4599 = vpop.f32.mrb[0].mxu0
      %v4600 = vadd.f32 0.0, %v4599
      %v4601 = vpop.f32.mrb[0].mxu0
      %4602 = vmatprep.mubr.f32.mxu0 0.0
      %4603 = vmatmul.mubr.f32.gmra.mrb[0].mxu0 %v4358
      %v4604 = vpop.f32.mrb[0].mxu0
      %v4605 = vadd.f32 0.0, %v4604
      %v4606 = vpop.f32.mrb[0].mxu0
      %4607 = vdwg.mxu0
      %v4608 = vld [vmem:[#allocation2] sm:$0xff]
      %v4609 = vld [vmem:[#allocation2 + $0x8] sm:$0xff]
      %v4610 = vld [vmem:[#allocation2 + $0x10] sm:$0xff]
      %v4611 = vld [vmem:[#allocation2 + $0x18] sm:$0xff]
      %v4612 = vld [vmem:[#allocation2 + $0x20] sm:$0xff]
      %v4613 = vld [vmem:[#allocation2 + $0x28] sm:$0xff]
      %v4614 = vld [vmem:[#allocation2 + $0x30] sm:$0xff]
      %v4615 = vld [vmem:[#allocation2 + $0x38] sm:$0xff]
      %v4616 = vld [vmem:[#allocation2 + $0x40] sm:$0xff]
      %v4617 = vld [vmem:[#allocation2 + $0x48] sm:$0xff]
      %v4618 = vld [vmem:[#allocation2 + $0x50] sm:$0xff]
      %v4619 = vld [vmem:[#allocation2 + $0x58] sm:$0xff]
      %v4620 = vld [vmem:[#allocation2 + $0x60] sm:$0xff]
      %v4621 = vld [vmem:[#allocation2 + $0x68] sm:$0xff]
      %v4622 = vld [vmem:[#allocation2 + $0x70] sm:$0xff]
      %v4623 = vld [vmem:[#allocation2 + $0x78] sm:$0xff]
      %v4624 = vld [vmem:[#allocation2 + $0x80] sm:$0xff]
      %v4625 = vld [vmem:[#allocation2 + $0x88] sm:$0xff]
      %v4626 = vld [vmem:[#allocation2 + $0x90] sm:$0xff]
      %v4627 = vld [vmem:[#allocation2 + $0x98] sm:$0xff]
      %v4628 = vld [vmem:[#allocation2 + $0xa0] sm:$0xff]
      %v4629 = vld [vmem:[#allocation2 + $0xa8] sm:$0xff]
      %v4630 = vld [vmem:[#allocation2 + $0xb0] sm:$0xff]
      %v4631 = vld [vmem:[#allocation2 + $0xb8] sm:$0xff]
      %v4632 = vld [vmem:[#allocation2 + $0xc0] sm:$0xff]
      %v4633 = vld [vmem:[#allocation2 + $0xc8] sm:$0xff]
      %v4634 = vld [vmem:[#allocation2 + $0xd0] sm:$0xff]
      %v4635 = vld [vmem:[#allocation2 + $0xd8] sm:$0xff]
      %v4636 = vld [vmem:[#allocation2 + $0xe0] sm:$0xff]
      %v4637 = vld [vmem:[#allocation2 + $0xe8] sm:$0xff]
      %v4638 = vld [vmem:[#allocation2 + $0xf0] sm:$0xff]
      %v4639 = vld [vmem:[#allocation2 + $0xf8] sm:$0xff]
      %v4640 = vld [vmem:[#allocation2 + $0x100] sm:$0xff]
      %v4641 = vld [vmem:[#allocation2 + $0x108] sm:$0xff]
      %v4642 = vld [vmem:[#allocation2 + $0x110] sm:$0xff]
      %v4643 = vld [vmem:[#allocation2 + $0x118] sm:$0xff]
      %v4644 = vadd.f32 %v4608, %v4430
      %v4645 = vadd.f32 %v4609, %v4435
      %v4646 = vadd.f32 %v4610, %v4440
      %v4647 = vadd.f32 %v4611, %v4445
      %v4648 = vadd.f32 %v4612, %v4450
      %v4649 = vadd.f32 %v4613, %v4455
      %v4650 = vadd.f32 %v4614, %v4460
      %v4651 = vadd.f32 %v4615, %v4465
      %v4652 = vadd.f32 %v4616, %v4470
      %v4653 = vadd.f32 %v4617, %v4475
      %v4654 = vadd.f32 %v4618, %v4480
      %v4655 = vadd.f32 %v4619, %v4485
      %v4656 = vadd.f32 %v4620, %v4490
      %v4657 = vadd.f32 %v4621, %v4495
      %v4658 = vadd.f32 %v4622, %v4500
      %v4659 = vadd.f32 %v4623, %v4505
      %v4660 = vadd.f32 %v4624, %v4510
      %v4661 = vadd.f32 %v4625, %v4515
      %v4662 = vadd.f32 %v4626, %v4520
      %v4663 = vadd.f32 %v4627, %v4525
      %v4664 = vadd.f32 %v4628, %v4530
      %v4665 = vadd.f32 %v4629, %v4535
      %v4666 = vadd.f32 %v4630, %v4540
      %v4667 = vadd.f32 %v4631, %v4545
      %v4668 = vadd.f32 %v4632, %v4550
      %v4669 = vadd.f32 %v4633, %v4555
      %v4670 = vadd.f32 %v4634, %v4560
      %v4671 = vadd.f32 %v4635, %v4565
      %v4672 = vadd.f32 %v4636, %v4570
      %v4673 = vadd.f32 %v4637, %v4575
      %v4674 = vadd.f32 %v4638, %v4580
      %v4675 = vadd.f32 %v4639, %v4585
      %v4676 = vadd.f32 %v4640, %v4590
      %v4677 = vadd.f32 %v4641, %v4595
      %v4678 = vadd.f32 %v4642, %v4600
      %v4679 = vadd.f32 %v4643, %v4605
      %4680 = vst [vmem:[#allocation2] sm:$0xff] %v4644
      %4681 = vst [vmem:[#allocation2 + $0x8] sm:$0xff] %v4645
      %4682 = vst [vmem:[#allocation2 + $0x10] sm:$0xff] %v4646
      %4683 = vst [vmem:[#allocation2 + $0x18] sm:$0xff] %v4647
      %4684 = vst [vmem:[#allocation2 + $0x20] sm:$0xff] %v4648
      %4685 = vst [vmem:[#allocation2 + $0x28] sm:$0xff] %v4649
      %4686 = vst [vmem:[#allocation2 + $0x30] sm:$0xff] %v4650
      %4687 = vst [vmem:[#allocation2 + $0x38] sm:$0xff] %v4651
      %4688 = vst [vmem:[#allocation2 + $0x40] sm:$0xff] %v4652
      %4689 = vst [vmem:[#allocation2 + $0x48] sm:$0xff] %v4653
      %4690 = vst [vmem:[#allocation2 + $0x50] sm:$0xff] %v4654
      %4691 = vst [vmem:[#allocation2 + $0x58] sm:$0xff] %v4655
      %4692 = vst [vmem:[#allocation2 + $0x60] sm:$0xff] %v4656
      %4693 = vst [vmem:[#allocation2 + $0x68] sm:$0xff] %v4657
      %4694 = vst [vmem:[#allocation2 + $0x70] sm:$0xff] %v4658
      %4695 = vst [vmem:[#allocation2 + $0x78] sm:$0xff] %v4659
      %4696 = vst [vmem:[#allocation2 + $0x80] sm:$0xff] %v4660
      %4697 = vst [vmem:[#allocation2 + $0x88] sm:$0xff] %v4661
      %4698 = vst [vmem:[#allocation2 + $0x90] sm:$0xff] %v4662
      %4699 = vst [vmem:[#allocation2 + $0x98] sm:$0xff] %v4663
      %4700 = vst [vmem:[#allocation2 + $0xa0] sm:$0xff] %v4664
      %4701 = vst [vmem:[#allocation2 + $0xa8] sm:$0xff] %v4665
      %4702 = vst [vmem:[#allocation2 + $0xb0] sm:$0xff] %v4666
      %4703 = vst [vmem:[#allocation2 + $0xb8] sm:$0xff] %v4667
      %4704 = vst [vmem:[#allocation2 + $0xc0] sm:$0xff] %v4668
      %4705 = vst [vmem:[#allocation2 + $0xc8] sm:$0xff] %v4669
      %4706 = vst [vmem:[#allocation2 + $0xd0] sm:$0xff] %v4670
      %4707 = vst [vmem:[#allocation2 + $0xd8] sm:$0xff] %v4671
      %4708 = vst [vmem:[#allocation2 + $0xe0] sm:$0xff] %v4672
      %4709 = vst [vmem:[#allocation2 + $0xe8] sm:$0xff] %v4673
      %4710 = vst [vmem:[#allocation2 + $0xf0] sm:$0xff] %v4674
      %4711 = vst [vmem:[#allocation2 + $0xf8] sm:$0xff] %v4675
      %4712 = vst [vmem:[#allocation2 + $0x100] sm:$0xff] %v4676
      %4713 = vst [vmem:[#allocation2 + $0x108] sm:$0xff] %v4677
      %4714 = vst [vmem:[#allocation2 + $0x110] sm:$0xff] %v4678
      %4715 = vst [vmem:[#allocation2 + $0x118] sm:$0xff] %v4679
      %v4716 = vld [vmem:[#allocation2] sm:$0xff]
      %v4717 = vld [vmem:[#allocation2 + $0x8] sm:$0xff]
      %v4718 = vld [vmem:[#allocation2 + $0x10] sm:$0xff]
      %v4719 = vld [vmem:[#allocation2 + $0x18] sm:$0xff]
      %v4720 = vld [vmem:[#allocation2 + $0x20] sm:$0xff]
      %v4721 = vld [vmem:[#allocation2 + $0x28] sm:$0xff]
      %v4722 = vld [vmem:[#allocation2 + $0x30] sm:$0xff]
      %v4723 = vld [vmem:[#allocation2 + $0x38] sm:$0xff]
      %v4724 = vld [vmem:[#allocation2 + $0x40] sm:$0xff]
      %v4725 = vld [vmem:[#allocation2 + $0x48] sm:$0xff]
      %v4726 = vld [vmem:[#allocation2 + $0x50] sm:$0xff]
      %v4727 = vld [vmem:[#allocation2 + $0x58] sm:$0xff]
      %v4728 = vld [vmem:[#allocation2 + $0x60] sm:$0xff]
      %v4729 = vld [vmem:[#allocation2 + $0x68] sm:$0xff]
      %v4730 = vld [vmem:[#allocation2 + $0x70] sm:$0xff]
      %v4731 = vld [vmem:[#allocation2 + $0x78] sm:$0xff]
      %v4732 = vld [vmem:[#allocation2 + $0x80] sm:$0xff]
      %v4733 = vld [vmem:[#allocation2 + $0x88] sm:$0xff]
      %v4734 = vld [vmem:[#allocation2 + $0x90] sm:$0xff]
      %v4735 = vld [vmem:[#allocation2 + $0x98] sm:$0xff]
      %v4736 = vld [vmem:[#allocation2 + $0xa0] sm:$0xff]
      %v4737 = vld [vmem:[#allocation2 + $0xa8] sm:$0xff]
      %v4738 = vld [vmem:[#allocation2 + $0xb0] sm:$0xff]
      %v4739 = vld [vmem:[#allocation2 + $0xb8] sm:$0xff]
      %v4740 = vld [vmem:[#allocation2 + $0xc0] sm:$0xff]
      %v4741 = vld [vmem:[#allocation2 + $0xc8] sm:$0xff]
      %v4742 = vld [vmem:[#allocation2 + $0xd0] sm:$0xff]
      %v4743 = vld [vmem:[#allocation2 + $0xd8] sm:$0xff]
      %v4744 = vld [vmem:[#allocation2 + $0xe0] sm:$0xff]
      %v4745 = vld [vmem:[#allocation2 + $0xe8] sm:$0xff]
      %v4746 = vld [vmem:[#allocation2 + $0xf0] sm:$0xff]
      %v4747 = vld [vmem:[#allocation2 + $0xf8] sm:$0xff]
      %v4748 = vld [vmem:[#allocation2 + $0x100] sm:$0xff]
      %v4749 = vld [vmem:[#allocation2 + $0x108] sm:$0xff]
      %v4750 = vld [vmem:[#allocation2 + $0x110] sm:$0xff]
      %v4751 = vld [vmem:[#allocation2 + $0x118] sm:$0xff]
      %v4752 = vld [vmem:[%s2] sm:$0x1]
      %v4754 = vlaneseq
      %v4755 = vshrl.u32 %v4754, 7
      %v4756 = vsub.s32 0, %v4755
      %v4757 = vrot.slane %v4752, %v4756
      %v4759 = vadd.f32 %v4716, %v4757
      %v4760 = vadd.f32 %v4717, %v4757
      %v4761 = vadd.f32 %v4718, %v4757
      %v4762 = vadd.f32 %v4719, %v4757
      %v4763 = vadd.f32 %v4720, %v4757
      %v4764 = vadd.f32 %v4721, %v4757
      %v4765 = vadd.f32 %v4722, %v4757
      %v4766 = vadd.f32 %v4723, %v4757
      %v4767 = vadd.f32 %v4724, %v4757
      %v4768 = vadd.f32 %v4725, %v4757
      %v4769 = vadd.f32 %v4726, %v4757
      %v4770 = vadd.f32 %v4727, %v4757
      %v4771 = vadd.f32 %v4728, %v4757
      %v4772 = vadd.f32 %v4729, %v4757
      %v4773 = vadd.f32 %v4730, %v4757
      %v4774 = vadd.f32 %v4731, %v4757
      %v4775 = vadd.f32 %v4732, %v4757
      %v4776 = vadd.f32 %v4733, %v4757
      %v4777 = vadd.f32 %v4734, %v4757
      %v4778 = vadd.f32 %v4735, %v4757
      %v4779 = vadd.f32 %v4736, %v4757
      %v4780 = vadd.f32 %v4737, %v4757
      %v4781 = vadd.f32 %v4738, %v4757
      %v4782 = vadd.f32 %v4739, %v4757
      %v4783 = vadd.f32 %v4740, %v4757
      %v4784 = vadd.f32 %v4741, %v4757
      %v4785 = vadd.f32 %v4742, %v4757
      %v4786 = vadd.f32 %v4743, %v4757
      %v4787 = vadd.f32 %v4744, %v4757
      %v4788 = vadd.f32 %v4745, %v4757
      %v4789 = vadd.f32 %v4746, %v4757
      %v4790 = vadd.f32 %v4747, %v4757
      %v4791 = vadd.f32 %v4748, %v4757
      %v4792 = vadd.f32 %v4749, %v4757
      %v4793 = vadd.f32 %v4750, %v4757
      %v4794 = vadd.f32 %v4751, %v4757
      %4795 = vst [vmem:[%s262] sm:$0xff] %v4759
      %4796 = vst [vmem:[%s262 + $0x8] sm:$0xff] %v4760
      %4797 = vst [vmem:[%s262 + $0x10] sm:$0xff] %v4761
      %4798 = vst [vmem:[%s262 + $0x18] sm:$0xff] %v4762
      %4799 = vst [vmem:[%s262 + $0x20] sm:$0xff] %v4763
      %4800 = vst [vmem:[%s262 + $0x28] sm:$0xff] %v4764
      %4801 = vst [vmem:[%s262 + $0x30] sm:$0xff] %v4765
      %4802 = vst [vmem:[%s262 + $0x38] sm:$0xff] %v4766
      %4803 = vst [vmem:[%s262 + $0x40] sm:$0xff] %v4767
      %4804 = vst [vmem:[%s262 + $0x48] sm:$0xff] %v4768
      %4805 = vst [vmem:[%s262 + $0x50] sm:$0xff] %v4769
      %4806 = vst [vmem:[%s262 + $0x58] sm:$0xff] %v4770
      %4807 = vst [vmem:[%s262 + $0x60] sm:$0xff] %v4771
      %4808 = vst [vmem:[%s262 + $0x68] sm:$0xff] %v4772
      %4809 = vst [vmem:[%s262 + $0x70] sm:$0xff] %v4773
      %4810 = vst [vmem:[%s262 + $0x78] sm:$0xff] %v4774
      %4811 = vst [vmem:[%s262 + $0x80] sm:$0xff] %v4775
      %4812 = vst [vmem:[%s262 + $0x88] sm:$0xff] %v4776
      %4813 = vst [vmem:[%s262 + $0x90] sm:$0xff] %v4777
      %4814 = vst [vmem:[%s262 + $0x98] sm:$0xff] %v4778
      %4815 = vst [vmem:[%s262 + $0xa0] sm:$0xff] %v4779
      %4816 = vst [vmem:[%s262 + $0xa8] sm:$0xff] %v4780
      %4817 = vst [vmem:[%s262 + $0xb0] sm:$0xff] %v4781
      %4818 = vst [vmem:[%s262 + $0xb8] sm:$0xff] %v4782
      %4819 = vst [vmem:[%s262 + $0xc0] sm:$0xff] %v4783
      %4820 = vst [vmem:[%s262 + $0xc8] sm:$0xff] %v4784
      %4821 = vst [vmem:[%s262 + $0xd0] sm:$0xff] %v4785
      %4822 = vst [vmem:[%s262 + $0xd8] sm:$0xff] %v4786
      %4823 = vst [vmem:[%s262 + $0xe0] sm:$0xff] %v4787
      %4824 = vst [vmem:[%s262 + $0xe8] sm:$0xff] %v4788
      %4825 = vst [vmem:[%s262 + $0xf0] sm:$0xff] %v4789
      %4826 = vst [vmem:[%s262 + $0xf8] sm:$0xff] %v4790
      %4827 = vst [vmem:[%s262 + $0x100] sm:$0xff] %v4791
      %4828 = vst [vmem:[%s262 + $0x108] sm:$0xff] %v4792
      %4829 = vst [vmem:[%s262 + $0x110] sm:$0xff] %v4793
      %4830 = vst [vmem:[%s262 + $0x118] sm:$0xff] %v4794
      %v4831 = vld [vmem:[%s3] sm:$0xff]
      %v4832 = vld [vmem:[%s3 + $0x8] sm:$0xff]
      %v4833 = vld [vmem:[%s3 + $0x10] sm:$0xff]
      %v4834 = vld [vmem:[%s3 + $0x18] sm:$0xff]
      %v4835 = vld [vmem:[%s3 + $0x20] sm:$0xff]
      %v4836 = vld [vmem:[%s3 + $0x28] sm:$0xff]
      %v4837 = vld [vmem:[%s3 + $0x30] sm:$0xff]
      %v4838 = vld [vmem:[%s3 + $0x38] sm:$0xff]
      %v4839 = vld [vmem:[%s3 + $0x40] sm:$0xff]
      %v4840 = vld [vmem:[%s3 + $0x48] sm:$0xff]
      %v4841 = vld [vmem:[%s3 + $0x50] sm:$0xff]
      %v4842 = vld [vmem:[%s3 + $0x58] sm:$0xff]
      %v4843 = vld [vmem:[%s3 + $0x60] sm:$0xff]
      %v4844 = vld [vmem:[%s3 + $0x68] sm:$0xff]
      %v4845 = vld [vmem:[%s3 + $0x70] sm:$0xff]
      %v4846 = vld [vmem:[%s3 + $0x78] sm:$0xff]
      %v4847 = vld [vmem:[%s3 + $0x80] sm:$0xff]
      %v4848 = vld [vmem:[%s3 + $0x88] sm:$0xff]
      %v4849 = vld [vmem:[%s3 + $0x90] sm:$0xff]
      %v4850 = vld [vmem:[%s3 + $0x98] sm:$0xff]
      %v4851 = vld [vmem:[%s3 + $0xa0] sm:$0xff]
      %v4852 = vld [vmem:[%s3 + $0xa8] sm:$0xff]
      %v4853 = vld [vmem:[%s3 + $0xb0] sm:$0xff]
      %v4854 = vld [vmem:[%s3 + $0xb8] sm:$0xff]
      %v4855 = vld [vmem:[%s3 + $0xc0] sm:$0xff]
      %v4856 = vld [vmem:[%s3 + $0xc8] sm:$0xff]
      %v4857 = vld [vmem:[%s3 + $0xd0] sm:$0xff]
      %v4858 = vld [vmem:[%s3 + $0xd8] sm:$0xff]
      %v4859 = vld [vmem:[%s3 + $0xe0] sm:$0xff]
      %v4860 = vld [vmem:[%s3 + $0xe8] sm:$0xff]
      %v4861 = vld [vmem:[%s3 + $0xf0] sm:$0xff]
      %v4862 = vld [vmem:[%s3 + $0xf8] sm:$0xff]
      %v4863 = vld [vmem:[%s3 + $0x100] sm:$0xff]
      %v4864 = vld [vmem:[%s3 + $0x108] sm:$0xff]
      %v4865 = vld [vmem:[%s3 + $0x110] sm:$0xff]
      %v4866 = vld [vmem:[%s3 + $0x118] sm:$0xff]
      %4868 = vset.pattern.permute.xlu0 0
      %4869 = vperm.xlu0 %4868, %v4831
      %v4870 = vpop.permute.xlu0 %4869
      %4873 = vset.pattern.permute.xlu0 0
      %4874 = vperm.xlu0 %4873, %v4832
      %v4875 = vpop.permute.xlu0 %4874
      %4878 = vset.pattern.permute.xlu0 0
      %4879 = vperm.xlu0 %4878, %v4833
      %v4880 = vpop.permute.xlu0 %4879
      %4883 = vset.pattern.permute.xlu0 0
      %4884 = vperm.xlu0 %4883, %v4834
      %v4885 = vpop.permute.xlu0 %4884
      %4888 = vset.pattern.permute.xlu0 0
      %4889 = vperm.xlu0 %4888, %v4835
      %v4890 = vpop.permute.xlu0 %4889
      %4893 = vset.pattern.permute.xlu0 0
      %4894 = vperm.xlu0 %4893, %v4836
      %v4895 = vpop.permute.xlu0 %4894
      %4898 = vset.pattern.permute.xlu0 0
      %4899 = vperm.xlu0 %4898, %v4837
      %v4900 = vpop.permute.xlu0 %4899
      %4903 = vset.pattern.permute.xlu0 0
      %4904 = vperm.xlu0 %4903, %v4838
      %v4905 = vpop.permute.xlu0 %4904
      %4908 = vset.pattern.permute.xlu0 0
      %4909 = vperm.xlu0 %4908, %v4839
      %v4910 = vpop.permute.xlu0 %4909
      %4913 = vset.pattern.permute.xlu0 0
      %4914 = vperm.xlu0 %4913, %v4840
      %v4915 = vpop.permute.xlu0 %4914
      %4918 = vset.pattern.permute.xlu0 0
      %4919 = vperm.xlu0 %4918, %v4841
      %v4920 = vpop.permute.xlu0 %4919
      %4923 = vset.pattern.permute.xlu0 0
      %4924 = vperm.xlu0 %4923, %v4842
      %v4925 = vpop.permute.xlu0 %4924
      %4928 = vset.pattern.permute.xlu0 0
      %4929 = vperm.xlu0 %4928, %v4843
      %v4930 = vpop.permute.xlu0 %4929
      %4933 = vset.pattern.permute.xlu0 0
      %4934 = vperm.xlu0 %4933, %v4844
      %v4935 = vpop.permute.xlu0 %4934
      %4938 = vset.pattern.permute.xlu0 0
      %4939 = vperm.xlu0 %4938, %v4845
      %v4940 = vpop.permute.xlu0 %4939
      %4943 = vset.pattern.permute.xlu0 0
      %4944 = vperm.xlu0 %4943, %v4846
      %v4945 = vpop.permute.xlu0 %4944
      %4948 = vset.pattern.permute.xlu0 0
      %4949 = vperm.xlu0 %4948, %v4847
      %v4950 = vpop.permute.xlu0 %4949
      %4953 = vset.pattern.permute.xlu0 0
      %4954 = vperm.xlu0 %4953, %v4848
      %v4955 = vpop.permute.xlu0 %4954
      %4958 = vset.pattern.permute.xlu0 0
      %4959 = vperm.xlu0 %4958, %v4849
      %v4960 = vpop.permute.xlu0 %4959
      %4963 = vset.pattern.permute.xlu0 0
      %4964 = vperm.xlu0 %4963, %v4850
      %v4965 = vpop.permute.xlu0 %4964
      %4968 = vset.pattern.permute.xlu0 0
      %4969 = vperm.xlu0 %4968, %v4851
      %v4970 = vpop.permute.xlu0 %4969
      %4973 = vset.pattern.permute.xlu0 0
      %4974 = vperm.xlu0 %4973, %v4852
      %v4975 = vpop.permute.xlu0 %4974
      %4978 = vset.pattern.permute.xlu0 0
      %4979 = vperm.xlu0 %4978, %v4853
      %v4980 = vpop.permute.xlu0 %4979
      %4983 = vset.pattern.permute.xlu0 0
      %4984 = vperm.xlu0 %4983, %v4854
      %v4985 = vpop.permute.xlu0 %4984
      %4988 = vset.pattern.permute.xlu0 0
      %4989 = vperm.xlu0 %4988, %v4855
      %v4990 = vpop.permute.xlu0 %4989
      %4993 = vset.pattern.permute.xlu0 0
      %4994 = vperm.xlu0 %4993, %v4856
      %v4995 = vpop.permute.xlu0 %4994
      %4998 = vset.pattern.permute.xlu0 0
      %4999 = vperm.xlu0 %4998, %v4857
      %v5000 = vpop.permute.xlu0 %4999
      %5003 = vset.pattern.permute.xlu0 0
      %5004 = vperm.xlu0 %5003, %v4858
      %v5005 = vpop.permute.xlu0 %5004
      %5008 = vset.pattern.permute.xlu0 0
      %5009 = vperm.xlu0 %5008, %v4859
      %v5010 = vpop.permute.xlu0 %5009
      %5013 = vset.pattern.permute.xlu0 0
      %5014 = vperm.xlu0 %5013, %v4860
      %v5015 = vpop.permute.xlu0 %5014
      %5018 = vset.pattern.permute.xlu0 0
      %5019 = vperm.xlu0 %5018, %v4861
      %v5020 = vpop.permute.xlu0 %5019
      %5023 = vset.pattern.permute.xlu0 0
      %5024 = vperm.xlu0 %5023, %v4862
      %v5025 = vpop.permute.xlu0 %5024
      %5028 = vset.pattern.permute.xlu0 0
      %5029 = vperm.xlu0 %5028, %v4863
      %v5030 = vpop.permute.xlu0 %5029
      %5033 = vset.pattern.permute.xlu0 0
      %5034 = vperm.xlu0 %5033, %v4864
      %v5035 = vpop.permute.xlu0 %5034
      %5038 = vset.pattern.permute.xlu0 0
      %5039 = vperm.xlu0 %5038, %v4865
      %v5040 = vpop.permute.xlu0 %5039
      %5043 = vset.pattern.permute.xlu0 0
      %5044 = vperm.xlu0 %5043, %v4866
      %v5045 = vpop.permute.xlu0 %5044
      %v5047 = vmul.f32 %v4716, %v4870
      %v5048 = vmul.f32 %v4717, %v4875
      %v5049 = vmul.f32 %v4718, %v4880
      %v5050 = vmul.f32 %v4719, %v4885
      %v5051 = vmul.f32 %v4720, %v4890
      %v5052 = vmul.f32 %v4721, %v4895
      %v5053 = vmul.f32 %v4722, %v4900
      %v5054 = vmul.f32 %v4723, %v4905
      %v5055 = vmul.f32 %v4724, %v4910
      %v5056 = vmul.f32 %v4725, %v4915
      %v5057 = vmul.f32 %v4726, %v4920
      %v5058 = vmul.f32 %v4727, %v4925
      %v5059 = vmul.f32 %v4728, %v4930
      %v5060 = vmul.f32 %v4729, %v4935
      %v5061 = vmul.f32 %v4730, %v4940
      %v5062 = vmul.f32 %v4731, %v4945
      %v5063 = vmul.f32 %v4732, %v4950
      %v5064 = vmul.f32 %v4733, %v4955
      %v5065 = vmul.f32 %v4734, %v4960
      %v5066 = vmul.f32 %v4735, %v4965
      %v5067 = vmul.f32 %v4736, %v4970
      %v5068 = vmul.f32 %v4737, %v4975
      %v5069 = vmul.f32 %v4738, %v4980
      %v5070 = vmul.f32 %v4739, %v4985
      %v5071 = vmul.f32 %v4740, %v4990
      %v5072 = vmul.f32 %v4741, %v4995
      %v5073 = vmul.f32 %v4742, %v5000
      %v5074 = vmul.f32 %v4743, %v5005
      %v5075 = vmul.f32 %v4744, %v5010
      %v5076 = vmul.f32 %v4745, %v5015
      %v5077 = vmul.f32 %v4746, %v5020
      %v5078 = vmul.f32 %v4747, %v5025
      %v5079 = vmul.f32 %v4748, %v5030
      %v5080 = vmul.f32 %v4749, %v5035
      %v5081 = vmul.f32 %v4750, %v5040
      %v5082 = vmul.f32 %v4751, %v5045
      %v5083 = vadd.f32 %v5047, %v5048
      %v5084 = vadd.f32 %v5083, %v5049
      %v5085 = vadd.f32 %v5084, %v5050
      %v5086 = vadd.f32 %v5085, %v5051
      %v5087 = vadd.f32 %v5086, %v5052
      %v5088 = vadd.f32 %v5087, %v5053
      %v5089 = vadd.f32 %v5088, %v5054
      %v5090 = vadd.f32 %v5089, %v5055
      %v5091 = vadd.f32 %v5090, %v5056
      %v5092 = vadd.f32 %v5091, %v5057
      %v5093 = vadd.f32 %v5092, %v5058
      %v5094 = vadd.f32 %v5093, %v5059
      %v5095 = vadd.f32 %v5094, %v5060
      %v5096 = vadd.f32 %v5095, %v5061
      %v5097 = vadd.f32 %v5096, %v5062
      %v5098 = vadd.f32 %v5097, %v5063
      %v5099 = vadd.f32 %v5098, %v5064
      %v5100 = vadd.f32 %v5099, %v5065
      %v5101 = vadd.f32 %v5100, %v5066
      %v5102 = vadd.f32 %v5101, %v5067
      %v5103 = vadd.f32 %v5102, %v5068
      %v5104 = vadd.f32 %v5103, %v5069
      %v5105 = vadd.f32 %v5104, %v5070
      %v5106 = vadd.f32 %v5105, %v5071
      %v5107 = vadd.f32 %v5106, %v5072
      %v5108 = vadd.f32 %v5107, %v5073
      %v5109 = vadd.f32 %v5108, %v5074
      %v5110 = vadd.f32 %v5109, %v5075
      %v5111 = vadd.f32 %v5110, %v5076
      %v5112 = vadd.f32 %v5111, %v5077
      %v5113 = vadd.f32 %v5112, %v5078
      %v5114 = vadd.f32 %v5113, %v5079
      %v5115 = vadd.f32 %v5114, %v5080
      %v5116 = vadd.f32 %v5115, %v5081
      %v5117 = vadd.f32 %v5116, %v5082
      %v5118 = vrot.slane %v5117, 4
      %v5119 = vadd.f32 %v5117, %v5118
      %v5120 = vrot.slane %v5119, 2
      %v5121 = vadd.f32 %v5119, %v5120
      %v5122 = vrot.slane %v5121, 1
      %v5123 = vadd.f32 %v5121, %v5122
      %5124 = vst [vmem:[%s265] sm:$0x1] %v5123
      %v5125 = vmul.f32 %v5047, %v4716
      %v5126 = vmul.f32 %v5048, %v4717
      %v5127 = vmul.f32 %v5049, %v4718
      %v5128 = vmul.f32 %v5050, %v4719
      %v5129 = vmul.f32 %v5051, %v4720
      %v5130 = vmul.f32 %v5052, %v4721
      %v5131 = vmul.f32 %v5053, %v4722
      %v5132 = vmul.f32 %v5054, %v4723
      %v5133 = vmul.f32 %v5055, %v4724
      %v5134 = vmul.f32 %v5056, %v4725
      %v5135 = vmul.f32 %v5057, %v4726
      %v5136 = vmul.f32 %v5058, %v4727
      %v5137 = vmul.f32 %v5059, %v4728
      %v5138 = vmul.f32 %v5060, %v4729
      %v5139 = vmul.f32 %v5061, %v4730
      %v5140 = vmul.f32 %v5062, %v4731
      %v5141 = vmul.f32 %v5063, %v4732
      %v5142 = vmul.f32 %v5064, %v4733
      %v5143 = vmul.f32 %v5065, %v4734
      %v5144 = vmul.f32 %v5066, %v4735
      %v5145 = vmul.f32 %v5067, %v4736
      %v5146 = vmul.f32 %v5068, %v4737
      %v5147 = vmul.f32 %v5069, %v4738
      %v5148 = vmul.f32 %v5070, %v4739
      %v5149 = vmul.f32 %v5071, %v4740
      %v5150 = vmul.f32 %v5072, %v4741
      %v5151 = vmul.f32 %v5073, %v4742
      %v5152 = vmul.f32 %v5074, %v4743
      %v5153 = vmul.f32 %v5075, %v4744
      %v5154 = vmul.f32 %v5076, %v4745
      %v5155 = vmul.f32 %v5077, %v4746
      %v5156 = vmul.f32 %v5078, %v4747
      %v5157 = vmul.f32 %v5079, %v4748
      %v5158 = vmul.f32 %v5080, %v4749
      %v5159 = vmul.f32 %v5081, %v4750
      %v5160 = vmul.f32 %v5082, %v4751
      %v5161 = vadd.f32 %v5125, %v5126
      %v5162 = vadd.f32 %v5161, %v5127
      %v5163 = vadd.f32 %v5162, %v5128
      %v5164 = vadd.f32 %v5163, %v5129
      %v5165 = vadd.f32 %v5164, %v5130
      %v5166 = vadd.f32 %v5165, %v5131
      %v5167 = vadd.f32 %v5166, %v5132
      %v5168 = vadd.f32 %v5167, %v5133
      %v5169 = vadd.f32 %v5168, %v5134
      %v5170 = vadd.f32 %v5169, %v5135
      %v5171 = vadd.f32 %v5170, %v5136
      %v5172 = vadd.f32 %v5171, %v5137
      %v5173 = vadd.f32 %v5172, %v5138
      %v5174 = vadd.f32 %v5173, %v5139
      %v5175 = vadd.f32 %v5174, %v5140
      %v5176 = vadd.f32 %v5175, %v5141
      %v5177 = vadd.f32 %v5176, %v5142
      %v5178 = vadd.f32 %v5177, %v5143
      %v5179 = vadd.f32 %v5178, %v5144
      %v5180 = vadd.f32 %v5179, %v5145
      %v5181 = vadd.f32 %v5180, %v5146
      %v5182 = vadd.f32 %v5181, %v5147
      %v5183 = vadd.f32 %v5182, %v5148
      %v5184 = vadd.f32 %v5183, %v5149
      %v5185 = vadd.f32 %v5184, %v5150
      %v5186 = vadd.f32 %v5185, %v5151
      %v5187 = vadd.f32 %v5186, %v5152
      %v5188 = vadd.f32 %v5187, %v5153
      %v5189 = vadd.f32 %v5188, %v5154
      %v5190 = vadd.f32 %v5189, %v5155
      %v5191 = vadd.f32 %v5190, %v5156
      %v5192 = vadd.f32 %v5191, %v5157
      %v5193 = vadd.f32 %v5192, %v5158
      %v5194 = vadd.f32 %v5193, %v5159
      %v5195 = vadd.f32 %v5194, %v5160
      %v5196 = vrot.slane %v5195, 4
      %v5197 = vadd.f32 %v5195, %v5196
      %v5198 = vrot.slane %v5197, 2
      %v5199 = vadd.f32 %v5197, %v5198
      %v5200 = vrot.slane %v5199, 1
      %v5201 = vadd.f32 %v5199, %v5200
      %5202 = vst [vmem:[%s268] sm:$0x1] %v5201
      %p5203 = scmp.lt.s32.totalorder %s18, 1
      %s5204 = scalar_select %p5203, %s18, 1
      %s5205 = smul.addr %s5204, 36
      %s5206 = smul.addr %s5205, 8
      %s5207 = scalar_lea.vmem %s4, %s5206
      %p5208 = scmp.lt.s32.totalorder %s18, 1
      %s5209 = scalar_select %p5208, %s18, 1
      %s5210 = scalar_lea.vmem %s5, %s5209
      %p5211 = scmp.lt.s32.totalorder %s18, 1
      %s5212 = scalar_select %p5211, %s18, 1
      %s5213 = scalar_lea.vmem %s6, %s5212
      // Predicated region
      $region37: #{convolutional_block.2} parent=35 // pred_check
        %p5214 = pneg %p125
      $region38: #{convolutional_block.2} parent=35 // pred_check_branch
        %5216 = sbr.rel (%p5214) target = $region40
      $region39: #{convolutional_block.2} parent=35 // pred_region
        _
      $region40: #{convolutional_block.2} parent=35 // pred_fallthru
        _
      // Predicated region
      $region41: #{convolutional_block.2} parent=35 // pred_check
        %p5217 = pneg %p151
      $region42: #{convolutional_block.2} parent=35 // pred_check_branch
        %5219 = sbr.rel (%p5217) target = $region44
      $region43: #{convolutional_block.2} parent=35 // pred_region
        _
      $region44: #{convolutional_block.2} parent=35 // pred_fallthru
        _
      // Predicated region
      $region45: #{convolutional_block.2} parent=35 // pred_check
        %p5220 = pneg %p177
      $region46: #{convolutional_block.2} parent=35 // pred_check_branch
        %5222 = sbr.rel (%p5220) target = $region48
      $region47: #{convolutional_block.2} parent=35 // pred_region
        _
      $region48: #{convolutional_block.2} parent=35 // pred_fallthru
        _
    $region36: #{convolutional_block.2} parent=5 // pred_fallthru
      _
    %p5223 = scmp.le.s32.totalorder 2, %s13
    // Predicated region
    $region49: #{convolutional_block.2} parent=5 // pred_check
      %p5224 = pneg %p5223
    $region50: #{convolutional_block.2} parent=5 // pred_check_branch
      %5226 = sbr.rel (%p5224) target = $region52
    $region51: #{convolutional_block.2} parent=5 // pred_region
      %s5227 = ssub.s32 %s13, 2
      // Predicated region
      $region53: #{convolutional_block.2} parent=51 // pred_check
        %p5228 = pneg %p131
      $region54: #{convolutional_block.2} parent=51 // pred_check_branch
        %5230 = sbr.rel (%p5228) target = $region56
      $region55: #{convolutional_block.2} parent=51 // pred_region
        %p5231 = scmp.lt.s32.totalorder %s19, 1
        %s5232 = scalar_select %p5231, %s19, 1
        %s5233 = smul.addr %s5232, 36
        %s5234 = smul.addr %s5233, 8
        %s5235 = scalar_lea.vmem %s4, %s5234
      $region56: #{convolutional_block.2} parent=51 // pred_fallthru
        _
      // Predicated region
      $region57: #{convolutional_block.2} parent=51 // pred_check
        %p5236 = pneg %p157
      $region58: #{convolutional_block.2} parent=51 // pred_check_branch
        %5238 = sbr.rel (%p5236) target = $region60
      $region59: #{convolutional_block.2} parent=51 // pred_region
        %p5239 = scmp.lt.s32.totalorder %s19, 1
        %s5240 = scalar_select %p5239, %s19, 1
        %s5241 = scalar_lea.vmem %s5, %s5240
      $region60: #{convolutional_block.2} parent=51 // pred_fallthru
        _
      // Predicated region
      $region61: #{convolutional_block.2} parent=51 // pred_check
        %p5242 = pneg %p183
      $region62: #{convolutional_block.2} parent=51 // pred_check_branch
        %5244 = sbr.rel (%p5242) target = $region64
      $region63: #{convolutional_block.2} parent=51 // pred_region
        %p5245 = scmp.lt.s32.totalorder %s19, 1
        %s5246 = scalar_select %p5245, %s19, 1
        %s5247 = scalar_lea.vmem %s6, %s5246
      $region64: #{convolutional_block.2} parent=51 // pred_fallthru
        _
    $region52: #{convolutional_block.2} parent=5 // pred_fallthru
      _
  $region6: #{convolutional_block.2} parent=0 // loop_footer
    %s17 = sadd.s32 1, %s13
  $region7: #{convolutional_block.2} parent=0 // loop_footer_branch
    %12 = sbr.rel target = $region3
  $region8: #{convolutional_block.2} parent=0 // loop_exit
    _

</llo_original>
